<compile_context>
chip_gen: v7x
topology: tpu7x:2x2x1
jax: 0.10.0
libtpu: 0.0.40
codegen_flags: <defaults>
</compile_context>

<pallas_src>
import jax
import jax.numpy as jnp
from jax.experimental import pallas as pl
from jax.experimental.pallas import tpu as pltpu

# --- hyper-params (mirror train.py) ---
N_EMBED = 128
BLOCK_SIZE = 256
N_HEAD = 2
N_LAYER = 2
HEAD_SIZE = N_HEAD // N_HEAD          # == 1, exactly as in the PyTorch code
VOCAB_SIZE = 65                        # len(chars); synthetic (tiny-shakespeare charset)
LN_EPS = 1e-5
BF16 = jnp.bfloat16
F32 = jnp.float32


def _layer_norm(h, g, b):
    mu = jnp.mean(h, axis=-1, keepdims=True)
    var = jnp.mean((h - mu) ** 2, axis=-1, keepdims=True)
    return (h - mu) * jax.lax.rsqrt(var + LN_EPS) * g + b


def bigram_lm_kernel(x_in_ref,
                     wqvT_ref, wk_ref, projwT_ref, projb_ref,
                     ln1g_ref, ln1b_ref, ln2g_ref, ln2b_ref,
                     w1T_ref, b1_ref, w2T_ref, b2_ref,
                     lnfg_ref, lnfb_ref, lmwT_ref, lmb_ref,
                     out_ref, x_sc):
    BB, T, D = x_in_ref.shape
    L = w1T_ref.shape[0]
    H = wk_ref.shape[1]
    N = BB * T
    Vp = lmwT_ref.shape[1]
    scale = float(D) ** -0.5            # PyTorch uses C = n_embed (not head_size) here

    # residual stream lives in a VMEM scratch so the per-batch-row attention
    # loop can read/write its rows with dynamic sublane slices (pl.ds).
    x_sc[...] = x_in_ref[...].reshape(N, D)

    # additive causal mask, hoisted once (no per-head selects)
    row = jax.lax.broadcasted_iota(jnp.int32, (T, T), 0)
    col = jax.lax.broadcasted_iota(jnp.int32, (T, T), 1)
    mask_add = jnp.where(col <= row, 0.0, -1e30).astype(F32)   # (T, T)

    for l in range(L):                  # static unroll over layers (L = 2)
        # per-layer weights hoisted out of the batch-row loop (already bf16)
        wqvT_l = wqvT_ref[l]            # (D, 2H) bf16 : [q heads | v heads]
        wk_l = wk_ref[l]                # (H, D)  bf16
        projwT_l = projwT_ref[l]        # (H, D)  f32
        ln1g = ln1g_ref[l:l + 1, :]
        ln1b = ln1b_ref[l:l + 1, :]
        projb = projb_ref[l:l + 1, :]

        # ---- multi-head causal self-attention (head_size == 1) ----
        # fori_loop (not an unrolled Python loop) bounds the live range of the
        # (T, T) score tiles to one batch row at a time -> no vreg spills.
        def attn_row(b, carry):
            lo = pl.multiple_of(b * T, T)
            xb = x_sc[pl.ds(lo, T), :]                                  # (T, D) f32
            xn = _layer_norm(xb, ln1g, ln1b)
            xn16 = xn.astype(BF16)
            # fused q/v projection: one (T, D) @ (D, 2H) bf16 MXU pass
            qv = jnp.dot(xn16, wqvT_l, preferred_element_type=F32)     # (T, 2H)
            # per-head k, produced lane-major (H, T) from this row block only
            kt = jnp.einsum('hd,td->ht', wk_l, xn16,
                            preferred_element_type=F32)                # (H, T)
            sa = jnp.zeros((T, D), F32)
            for h in range(H):          # static unroll over heads (H = 2)
                # rank-1 scores: outer product + additive causal mask
                s = qv[:, h:h + 1] * kt[h:h + 1, :] * scale + mask_add  # (T, T)
                m = jnp.max(s, axis=-1, keepdims=True)
                p = jnp.exp(s - m)                                      # unnormalized
                inv = pl.reciprocal(jnp.sum(p, axis=-1, keepdims=True), approx=True)
                # fold the head's output projection into V (rank-1): Veff_h
                veff = (qv[:, H + h:H + h + 1] * projwT_l[h:h + 1, :]).astype(BF16)  # (T, D)
                # lane-dense (T, T) @ (T, D) MXU matmul; normalize the (T, D)
                # output instead of the (T, T) probabilities (attn-dropout = id)
                o = jnp.dot(p.astype(BF16), veff, preferred_element_type=F32)
                sa = sa + inv * o
            x_sc[pl.ds(lo, T), :] = xb + sa + projb
            return carry

        jax.lax.fori_loop(0, BB, attn_row, 0)

        # ---- feed-forward on the whole (N, D) block (bf16 MXU, f32 acc) ----
        x = x_sc[...]
        xn2 = _layer_norm(x, ln2g_ref[l:l + 1, :], ln2b_ref[l:l + 1, :])
        h1 = jnp.dot(xn2.astype(BF16), w1T_ref[l], preferred_element_type=F32)
        h1 = jnp.maximum(h1 + b1_ref[l:l + 1, :], 0.0)                  # ReLU
        ff = jnp.dot(h1.astype(BF16), w2T_ref[l], preferred_element_type=F32)
        x_sc[...] = x + ff + b2_ref[l:l + 1, :]                         # dropout = identity

    # ---- final LN + lm_head ----
    xf = _layer_norm(x_sc[...], lnfg_ref[...], lnfb_ref[...])
    logits = jnp.dot(xf.astype(BF16), lmwT_ref[...],
                     preferred_element_type=F32) + lmb_ref[...]
    out_ref[...] = logits.reshape(BB, T, Vp)


def _pick_bb(B):
    # Cap rows-per-step at 4 so the working set fits v5e's 16 MiB default
    # scoped VMEM; prefer a grid of length >= 2 so dimension_semantics
    # ("parallel",) can shard batch blocks across v7x's two TensorCores.
    for bb in range(min(4, B), 0, -1):
        if B % bb == 0 and B // bb >= 2:
            return bb
    return min(4, B) if B % min(4, B) == 0 else 1


def bigram_lm_forward(params, idx):
    B, T = idx.shape
    D = params['tok_emb'].shape[1]
    L, H, _ = params['wq'].shape
    D4 = params['w1T'].shape[2]
    Vp = params['lm_wT'].shape[1]

    # host-side glue: embedding gather + position add
    x_in = jnp.take(params['tok_emb'], idx, axis=0) + params['pos_emb'][:T]   # (B, T, D)

    # fuse per-head q and v weights into one (L, D, 2H) matrix; pre-cast all
    # MXU weights to bf16 so no per-grid-step casts run inside the kernel.
    wqvT = jnp.swapaxes(jnp.concatenate([params['wq'], params['wv']], axis=1),
                        1, 2).astype(BF16)
    wk16 = params['wk'].astype(BF16)
    w1T16 = params['w1T'].astype(BF16)
    w2T16 = params['w2T'].astype(BF16)
    lmwT16 = params['lm_wT'].astype(BF16)

    BB = _pick_bb(B)
    N = BB * T

    def full(shape):
        return pl.BlockSpec(shape, lambda b, _s=len(shape): (0,) * _s)

    grid_spec = pltpu.PrefetchScalarGridSpec(
        num_scalar_prefetch=0,
        grid=(B // BB,),
        in_specs=[
            pl.BlockSpec((BB, T, D), lambda b: (b, 0, 0)),       # tok+pos embeddings
            full((L, D, 2 * H)),                                  # fused q/v weights (bf16)
            full((L, H, D)),                                      # k weights (bf16)
            full((L, H, D)), full((L, D)),                        # proj W^T (f32), proj bias
            full((L, D)), full((L, D)), full((L, D)), full((L, D)),  # ln1_g/b, ln2_g/b
            full((L, D, D4)), full((L, D4)),                      # ffn W1^T (bf16), b1
            full((L, D4, D)), full((L, D)),                       # ffn W2^T (bf16), b2
            full((1, D)), full((1, D)),                           # ln_f gamma/beta
            full((D, Vp)), full((1, Vp)),                         # lm_head W^T (bf16, padded), bias
        ],
        out_specs=pl.BlockSpec((BB, T, Vp), lambda b: (b, 0, 0)),
        scratch_shapes=[pltpu.VMEM((N, D), F32)],                 # residual stream
    )
    logits_padded = pl.pallas_call(
        bigram_lm_kernel,
        out_shape=jax.ShapeDtypeStruct((B, T, Vp), jnp.float32),
        grid_spec=grid_spec,
        compiler_params=pltpu.CompilerParams(dimension_semantics=("parallel",)),
    )(x_in, wqvT, wk16,
      params['proj_wT'], params['proj_b'],
      params['ln1_g'], params['ln1_b'], params['ln2_g'], params['ln2_b'],
      w1T16, params['b1'], w2T16, params['b2'],
      params['lnf_g'], params['lnf_b'], lmwT16, params['lm_b'])
    return logits_padded[:, :, :VOCAB_SIZE]


def bigram_lm_reference(params, idx):
    """Pure-JAX f32 mirror of the PyTorch forward (targets=None branch)."""
    B, T = idx.shape
    D = params['tok_emb'].shape[1]
    L, H, _ = params['wq'].shape
    x = params['tok_emb'][idx] + params['pos_emb'][:T]
    scale = float(D) ** -0.5
    neg_mask = jnp.tril(jnp.ones((T, T))) == 0

    def ln(h, g, b):
        mu = h.mean(-1, keepdims=True)
        var = ((h - mu) ** 2).mean(-1, keepdims=True)
        return (h - mu) / jnp.sqrt(var + LN_EPS) * g + b

    for l in range(L):
        xn = ln(x, params['ln1_g'][l], params['ln1_b'][l])
        heads = []
        for h in range(H):
            q = xn @ params['wq'][l, h]          # (B, T)
            k = xn @ params['wk'][l, h]
            v = xn @ params['wv'][l, h]
            wei = q[:, :, None] * k[:, None, :] * scale
            wei = jnp.where(neg_mask, -jnp.inf, wei)
            wei = jax.nn.softmax(wei, axis=-1)
            heads.append(jnp.einsum('bts,bs->bt', wei, v))
        cat = jnp.stack(heads, axis=-1)          # (B, T, H)
        x = x + (cat @ params['proj_wT'][l] + params['proj_b'][l])
        xn2 = ln(x, params['ln2_g'][l], params['ln2_b'][l])
        h1 = jax.nn.relu(xn2 @ params['w1T'][l] + params['b1'][l])
        x = x + (h1 @ params['w2T'][l] + params['b2'][l])
    xf = ln(x, params['lnf_g'][0], params['lnf_b'][0])
    logits = xf @ params['lm_wT'] + params['lm_b'][0]
    return logits[:, :, :VOCAB_SIZE]


def init_params(key):
    D, L, H, D4 = N_EMBED, N_LAYER, N_HEAD, 4 * N_EMBED
    Vp = ((VOCAB_SIZE + 127) // 128) * 128
    ks = jax.random.split(key, 20)

    def n(k, shape, s=0.02):
        return (s * jax.random.normal(k, shape)).astype(jnp.float32)

    lm_w = n(ks[17], (VOCAB_SIZE, D))
    lm_b_v = n(ks[18], (VOCAB_SIZE,))
    lm_wT = jnp.zeros((D, Vp), jnp.float32).at[:, :VOCAB_SIZE].set(lm_w.T)
    lm_b = jnp.zeros((1, Vp), jnp.float32).at[0, :VOCAB_SIZE].set(lm_b_v)

    return dict(
        tok_emb=n(ks[0], (VOCAB_SIZE, D), 0.1),
        pos_emb=n(ks[1], (BLOCK_SIZE, D), 0.1),
        wq=n(ks[2], (L, H, D)),          # per-head key/query/value: Linear(D, 1, bias=False)
        wk=n(ks[3], (L, H, D)),
        wv=n(ks[4], (L, H, D)),
        proj_wT=n(ks[5], (L, H, D)),     # Linear(H*1, D) weight, pre-transposed
        proj_b=n(ks[6], (L, D)),
        ln1_g=1.0 + n(ks[7], (L, D), 0.1),
        ln1_b=n(ks[8], (L, D), 0.1),
        ln2_g=1.0 + n(ks[9], (L, D), 0.1),
        ln2_b=n(ks[10], (L, D), 0.1),
        w1T=n(ks[11], (L, D, D4)),       # Linear(D, 4D) weight, pre-transposed
        b1=n(ks[12], (L, D4)),
        w2T=n(ks[13], (L, D4, D)),       # Linear(4D, D) weight, pre-transposed
        b2=n(ks[14], (L, D)),
        lnf_g=1.0 + n(ks[15], (1, D), 0.1),
        lnf_b=n(ks[16], (1, D), 0.1),
        lm_wT=lm_wT,                     # (D, Vp) zero-padded beyond vocab
        lm_b=lm_b,                       # (1, Vp)
    )


if __name__ == "__main__":
    key = jax.random.PRNGKey(0)
    pkey, ikey = jax.random.split(key)
    params = init_params(pkey)

    B, T = 2, 8                          # small shapes, T <= block_size
    idx = jax.random.randint(ikey, (B, T), 0, VOCAB_SIZE, dtype=jnp.int32)

    logits = jax.block_until_ready(bigram_lm_forward(params, idx))
    assert logits.shape == (B, T, VOCAB_SIZE), logits.shape

    with jax.default_matmul_precision("highest"):
        ref = jax.block_until_ready(bigram_lm_reference(params, idx))
    max_err = float(jnp.max(jnp.abs(logits - ref)))
    # bf16 MXU matmuls + approx-reciprocal softmax vs. an f32 HIGHEST reference:
    # compare at bf16-level tolerance.
    assert jnp.allclose(logits, ref, atol=2e-2, rtol=2e-2), f"max_err={max_err}"

    print("KERNEL_OK")
</pallas_src>

<mosaic_0001>
module attributes {stable_mosaic.version = 11 : i64} {
  func.func @bigram_lm_kernel(%arg0: i32, %arg1: memref<1x8x128xf32, #tpu.memory_space<vmem>>, %arg2: memref<2x128x4xbf16, #tpu.memory_space<vmem>>, %arg3: memref<2x2x128xbf16, #tpu.memory_space<vmem>>, %arg4: memref<2x2x128xf32, #tpu.memory_space<vmem>>, %arg5: memref<2x128xf32, #tpu.memory_space<vmem>>, %arg6: memref<2x128xf32, #tpu.memory_space<vmem>>, %arg7: memref<2x128xf32, #tpu.memory_space<vmem>>, %arg8: memref<2x128xf32, #tpu.memory_space<vmem>>, %arg9: memref<2x128xf32, #tpu.memory_space<vmem>>, %arg10: memref<2x128x512xbf16, #tpu.memory_space<vmem>>, %arg11: memref<2x512xf32, #tpu.memory_space<vmem>>, %arg12: memref<2x512x128xbf16, #tpu.memory_space<vmem>>, %arg13: memref<2x128xf32, #tpu.memory_space<vmem>>, %arg14: memref<1x128xf32, #tpu.memory_space<vmem>>, %arg15: memref<1x128xf32, #tpu.memory_space<vmem>>, %arg16: memref<128x128xbf16, #tpu.memory_space<vmem>>, %arg17: memref<1x128xf32, #tpu.memory_space<vmem>>, %arg18: memref<1x8x128xf32, #tpu.memory_space<vmem>>, %arg19: memref<8x128xf32, #tpu.memory_space<vmem>>) attributes {dimension_semantics = [#tpu.dimension_semantics<parallel>], iteration_bounds = array<i64: 2>, scalar_prefetch = 0 : i64, scratch_operands = 1 : i64, tpu.core_type = #tpu.core_type<tc>, window_params = [{transform_indices = @transform_0, window_bounds = array<i64: 1, 8, 128>}, {pipeline_mode = #tpu.pipeline_mode<synchronous>, transform_indices = @transform_1, window_bounds = array<i64: 2, 128, 4>}, {pipeline_mode = #tpu.pipeline_mode<synchronous>, transform_indices = @transform_2, window_bounds = array<i64: 2, 2, 128>}, {pipeline_mode = #tpu.pipeline_mode<synchronous>, transform_indices = @transform_3, window_bounds = array<i64: 2, 2, 128>}, {pipeline_mode = #tpu.pipeline_mode<synchronous>, transform_indices = @transform_4, window_bounds = array<i64: 2, 128>}, {pipeline_mode = #tpu.pipeline_mode<synchronous>, transform_indices = @transform_5, window_bounds = array<i64: 2, 128>}, {pipeline_mode = #tpu.pipeline_mode<synchronous>, transform_indices = @transform_6, window_bounds = array<i64: 2, 128>}, {pipeline_mode = #tpu.pipeline_mode<synchronous>, transform_indices = @transform_7, window_bounds = array<i64: 2, 128>}, {pipeline_mode = #tpu.pipeline_mode<synchronous>, transform_indices = @transform_8, window_bounds = array<i64: 2, 128>}, {pipeline_mode = #tpu.pipeline_mode<synchronous>, transform_indices = @transform_9, window_bounds = array<i64: 2, 128, 512>}, {pipeline_mode = #tpu.pipeline_mode<synchronous>, transform_indices = @transform_10, window_bounds = array<i64: 2, 512>}, {pipeline_mode = #tpu.pipeline_mode<synchronous>, transform_indices = @transform_11, window_bounds = array<i64: 2, 512, 128>}, {pipeline_mode = #tpu.pipeline_mode<synchronous>, transform_indices = @transform_12, window_bounds = array<i64: 2, 128>}, {pipeline_mode = #tpu.pipeline_mode<synchronous>, transform_indices = @transform_13, window_bounds = array<i64: 1, 128>}, {pipeline_mode = #tpu.pipeline_mode<synchronous>, transform_indices = @transform_14, window_bounds = array<i64: 1, 128>}, {pipeline_mode = #tpu.pipeline_mode<synchronous>, transform_indices = @transform_15, window_bounds = array<i64: 128, 128>}, {pipeline_mode = #tpu.pipeline_mode<synchronous>, transform_indices = @transform_16, window_bounds = array<i64: 1, 128>}, {transform_indices = @transform_17, window_bounds = array<i64: 1, 8, 128>}]} {
    %c0 = arith.constant 0 : index
    %c0_0 = arith.constant 0 : index
    %c0_1 = arith.constant 0 : index
    %0 = vector.load %arg1[%c0, %c0_0, %c0_1] : memref<1x8x128xf32, #tpu.memory_space<vmem>>, vector<1x8x128xf32>
    %1 = vector.shape_cast %0 : vector<1x8x128xf32> to vector<8x128xf32>
    %c0_2 = arith.constant 0 : index
    %c0_3 = arith.constant 0 : index
    %2 = vector.load %arg19[%c0_2, %c0_3] : memref<8x128xf32, #tpu.memory_space<vmem>>, vector<8x128xf32>
    tpu.vector_store %arg19[%c0_2, %c0_3], %1 {strides = array<i32>} : memref<8x128xf32, #tpu.memory_space<vmem>>, vector<8x128xf32>,
    %3 = tpu.iota {dimensions = array<i32: 0>} : vector<8x8xi32>
    %4 = tpu.iota {dimensions = array<i32: 1>} : vector<8x8xi32>
    %5 = arith.cmpi sle, %4, %3 : vector<8x8xi32>
    %cst = arith.constant 0.000000e+00 : f32
    %cst_4 = arith.constant -1.000000e+30 : f32
    %6 = vector.broadcast %cst : f32 to vector<8x8xf32>
    %7 = vector.broadcast %cst_4 : f32 to vector<8x8xf32>
    %8 = arith.select %5, %6, %7 : vector<8x8xi1>, vector<8x8xf32>
    %c0_5 = arith.constant 0 : index
    %c0_6 = arith.constant 0 : index
    %c0_7 = arith.constant 0 : index
    %9 = vector.load %arg2[%c0_5, %c0_6, %c0_7] : memref<2x128x4xbf16, #tpu.memory_space<vmem>>, vector<1x128x4xbf16>
    %10 = vector.shape_cast %9 : vector<1x128x4xbf16> to vector<128x4xbf16>
    %c0_8 = arith.constant 0 : index
    %c0_9 = arith.constant 0 : index
    %c0_10 = arith.constant 0 : index
    %11 = vector.load %arg3[%c0_8, %c0_9, %c0_10] : memref<2x2x128xbf16, #tpu.memory_space<vmem>>, vector<1x2x128xbf16>
    %12 = vector.shape_cast %11 : vector<1x2x128xbf16> to vector<2x128xbf16>
    %c0_11 = arith.constant 0 : index
    %c0_12 = arith.constant 0 : index
    %c0_13 = arith.constant 0 : index
    %13 = vector.load %arg4[%c0_11, %c0_12, %c0_13] : memref<2x2x128xf32, #tpu.memory_space<vmem>>, vector<1x2x128xf32>
    %14 = vector.shape_cast %13 : vector<1x2x128xf32> to vector<2x128xf32>
    %c0_14 = arith.constant 0 : index
    %c0_15 = arith.constant 0 : index
    %15 = vector.load %arg6[%c0_14, %c0_15] : memref<2x128xf32, #tpu.memory_space<vmem>>, vector<1x128xf32>
    %c0_16 = arith.constant 0 : index
    %c0_17 = arith.constant 0 : index
    %16 = vector.load %arg7[%c0_16, %c0_17] : memref<2x128xf32, #tpu.memory_space<vmem>>, vector<1x128xf32>
    %c0_18 = arith.constant 0 : index
    %c0_19 = arith.constant 0 : index
    %17 = vector.load %arg5[%c0_18, %c0_19] : memref<2x128xf32, #tpu.memory_space<vmem>>, vector<1x128xf32>
    %c0_i32 = arith.constant 0 : i32
    %c8_i32 = arith.constant 8 : i32
    %18 = arith.muli %c0_i32, %c8_i32 : i32
    %19 = tpu.assume_multiple %18, 8 : i32
    %20 = arith.index_cast %19 : i32 to index
    %c0_20 = arith.constant 0 : index
    %21 = vector.load %arg19[%20, %c0_20] : memref<8x128xf32, #tpu.memory_space<vmem>>, vector<8x128xf32>
    %cst_21 = arith.constant dense<0.000000e+00> : vector<8xf32>
    %22 = vector.multi_reduction <add>, %21, %cst_21 [1] : vector<8x128xf32> to vector<8xf32>
    %23 = vector.shape_cast %22 : vector<8xf32> to vector<8x1xf32>
    %cst_22 = arith.constant 1.280000e+02 : f32
    %24 = vector.broadcast %cst_22 : f32 to vector<8x1xf32>
    %25 = arith.divf %23, %24 : vector<8x1xf32>
    %26 = vector.broadcast %25 : vector<8x1xf32> to vector<8x128xf32>
    %27 = arith.subf %21, %26 : vector<8x128xf32>
    %28 = arith.mulf %27, %27 : vector<8x128xf32>
    %cst_23 = arith.constant dense<0.000000e+00> : vector<8xf32>
    %29 = vector.multi_reduction <add>, %28, %cst_23 [1] : vector<8x128xf32> to vector<8xf32>
    %30 = vector.shape_cast %29 : vector<8xf32> to vector<8x1xf32>
    %cst_24 = arith.constant 1.280000e+02 : f32
    %31 = vector.broadcast %cst_24 : f32 to vector<8x1xf32>
    %32 = arith.divf %30, %31 : vector<8x1xf32>
    %33 = vector.broadcast %25 : vector<8x1xf32> to vector<8x128xf32>
    %34 = arith.subf %21, %33 : vector<8x128xf32>
    %cst_25 = arith.constant 9.99999974E-6 : f32
    %35 = vector.broadcast %cst_25 : f32 to vector<8x1xf32>
    %36 = arith.addf %32, %35 : vector<8x1xf32>
    %37 = math.rsqrt %36 : vector<8x1xf32>
    %38 = vector.broadcast %37 : vector<8x1xf32> to vector<8x128xf32>
    %39 = arith.mulf %34, %38 : vector<8x128xf32>
    %40 = vector.broadcast %15 : vector<1x128xf32> to vector<8x128xf32>
    %41 = arith.mulf %39, %40 : vector<8x128xf32>
    %42 = vector.broadcast %16 : vector<1x128xf32> to vector<8x128xf32>
    %43 = arith.addf %41, %42 : vector<8x128xf32>
    %44 = arith.truncf %43 : vector<8x128xf32> to vector<8x128xbf16>
    %cst_26 = arith.constant dense<0.000000e+00> : vector<8x4xf32>
    %45 = tpu.matmul %44, %10, %cst_26 {dimension_numbers = #tpu.dot_dimension_numbers<[1], [0], [0], [1], [0, 0, 1, 1], [], []>} : vector<8x128xbf16>, vector<128x4xbf16>, vector<8x4xf32> -> vector<8x4xf32>
    "tpu.trace_start"() <{level = 10 : i32, message = "hd,td->ht"}> : () -> ()
    %cst_27 = arith.constant dense<0.000000e+00> : vector<2x8xf32>
    %46 = tpu.matmul %12, %44, %cst_27 {dimension_numbers = #tpu.dot_dimension_numbers<[1], [1], [0], [0], [0, 0, 1, 0], [], []>} : vector<2x128xbf16>, vector<8x128xbf16>, vector<2x8xf32> -> vector<2x8xf32>
    %cst_28 = arith.constant 0.000000e+00 : f32
    "tpu.trace_stop"() : () -> ()
    %47 = vector.broadcast %cst_28 : f32 to vector<8x128xf32>
    %48 = vector.extract_strided_slice %45 {offsets = [0, 0], sizes = [8, 1], strides = [1, 1]} : vector<8x4xf32> to vector<8x1xf32>
    %49 = vector.extract_strided_slice %46 {offsets = [0, 0], sizes = [1, 8], strides = [1, 1]} : vector<2x8xf32> to vector<1x8xf32>
    %50 = vector.broadcast %48 : vector<8x1xf32> to vector<8x8xf32>
    %51 = vector.broadcast %49 : vector<1x8xf32> to vector<8x8xf32>
    %52 = arith.mulf %50, %51 : vector<8x8xf32>
    %cst_29 = arith.constant 0.0883883461 : f32
    %53 = vector.broadcast %cst_29 : f32 to vector<8x8xf32>
    %54 = arith.mulf %52, %53 : vector<8x8xf32>
    %55 = arith.addf %54, %8 : vector<8x8xf32>
    %cst_30 = arith.constant dense<0xFF800000> : vector<8xf32>
    %56 = vector.multi_reduction <maximumf>, %55, %cst_30 [1] : vector<8x8xf32> to vector<8xf32>
    %57 = vector.shape_cast %56 : vector<8xf32> to vector<8x1xf32>
    %58 = vector.broadcast %57 : vector<8x1xf32> to vector<8x8xf32>
    %59 = arith.subf %55, %58 : vector<8x8xf32>
    %60 = math.exp %59 : vector<8x8xf32>
    %cst_31 = arith.constant dense<0.000000e+00> : vector<8xf32>
    %61 = vector.multi_reduction <add>, %60, %cst_31 [1] : vector<8x8xf32> to vector<8xf32>
    %62 = vector.shape_cast %61 : vector<8xf32> to vector<8x1xf32>
    %63 = tpu.reciprocal %62 {approx = true} : vector<8x1xf32> -> vector<8x1xf32>
    %64 = vector.extract_strided_slice %45 {offsets = [0, 2], sizes = [8, 1], strides = [1, 1]} : vector<8x4xf32> to vector<8x1xf32>
    %65 = vector.extract_strided_slice %14 {offsets = [0, 0], sizes = [1, 128], strides = [1, 1]} : vector<2x128xf32> to vector<1x128xf32>
    %66 = vector.broadcast %64 : vector<8x1xf32> to vector<8x128xf32>
    %67 = vector.broadcast %65 : vector<1x128xf32> to vector<8x128xf32>
    %68 = arith.mulf %66, %67 : vector<8x128xf32>
    %69 = arith.truncf %68 : vector<8x128xf32> to vector<8x128xbf16>
    %70 = arith.truncf %60 : vector<8x8xf32> to vector<8x8xbf16>
    %cst_32 = arith.constant dense<0.000000e+00> : vector<8x128xf32>
    %71 = tpu.matmul %70, %69, %cst_32 {dimension_numbers = #tpu.dot_dimension_numbers<[1], [0], [0], [1], [0, 0, 1, 1], [], []>} : vector<8x8xbf16>, vector<8x128xbf16>, vector<8x128xf32> -> vector<8x128xf32>
    %72 = vector.broadcast %63 : vector<8x1xf32> to vector<8x128xf32>
    %73 = arith.mulf %72, %71 : vector<8x128xf32>
    %74 = arith.addf %47, %73 : vector<8x128xf32>
    %75 = vector.extract_strided_slice %45 {offsets = [0, 1], sizes = [8, 1], strides = [1, 1]} : vector<8x4xf32> to vector<8x1xf32>
    %76 = vector.extract_strided_slice %46 {offsets = [1, 0], sizes = [1, 8], strides = [1, 1]} : vector<2x8xf32> to vector<1x8xf32>
    %77 = vector.broadcast %75 : vector<8x1xf32> to vector<8x8xf32>
    %78 = vector.broadcast %76 : vector<1x8xf32> to vector<8x8xf32>
    %79 = arith.mulf %77, %78 : vector<8x8xf32>
    %cst_33 = arith.constant 0.0883883461 : f32
    %80 = vector.broadcast %cst_33 : f32 to vector<8x8xf32>
    %81 = arith.mulf %79, %80 : vector<8x8xf32>
    %82 = arith.addf %81, %8 : vector<8x8xf32>
    %cst_34 = arith.constant dense<0xFF800000> : vector<8xf32>
    %83 = vector.multi_reduction <maximumf>, %82, %cst_34 [1] : vector<8x8xf32> to vector<8xf32>
    %84 = vector.shape_cast %83 : vector<8xf32> to vector<8x1xf32>
    %85 = vector.broadcast %84 : vector<8x1xf32> to vector<8x8xf32>
    %86 = arith.subf %82, %85 : vector<8x8xf32>
    %87 = math.exp %86 : vector<8x8xf32>
    %cst_35 = arith.constant dense<0.000000e+00> : vector<8xf32>
    %88 = vector.multi_reduction <add>, %87, %cst_35 [1] : vector<8x8xf32> to vector<8xf32>
    %89 = vector.shape_cast %88 : vector<8xf32> to vector<8x1xf32>
    %90 = tpu.reciprocal %89 {approx = true} : vector<8x1xf32> -> vector<8x1xf32>
    %91 = vector.extract_strided_slice %45 {offsets = [0, 3], sizes = [8, 1], strides = [1, 1]} : vector<8x4xf32> to vector<8x1xf32>
    %92 = vector.extract_strided_slice %14 {offsets = [1, 0], sizes = [1, 128], strides = [1, 1]} : vector<2x128xf32> to vector<1x128xf32>
    %93 = vector.broadcast %91 : vector<8x1xf32> to vector<8x128xf32>
    %94 = vector.broadcast %92 : vector<1x128xf32> to vector<8x128xf32>
    %95 = arith.mulf %93, %94 : vector<8x128xf32>
    %96 = arith.truncf %95 : vector<8x128xf32> to vector<8x128xbf16>
    %97 = arith.truncf %87 : vector<8x8xf32> to vector<8x8xbf16>
    %cst_36 = arith.constant dense<0.000000e+00> : vector<8x128xf32>
    %98 = tpu.matmul %97, %96, %cst_36 {dimension_numbers = #tpu.dot_dimension_numbers<[1], [0], [0], [1], [0, 0, 1, 1], [], []>} : vector<8x8xbf16>, vector<8x128xbf16>, vector<8x128xf32> -> vector<8x128xf32>
    %99 = vector.broadcast %90 : vector<8x1xf32> to vector<8x128xf32>
    %100 = arith.mulf %99, %98 : vector<8x128xf32>
    %101 = arith.addf %74, %100 : vector<8x128xf32>
    %102 = arith.addf %21, %101 : vector<8x128xf32>
    %103 = vector.broadcast %17 : vector<1x128xf32> to vector<8x128xf32>
    %104 = arith.addf %102, %103 : vector<8x128xf32>
    %105 = arith.index_cast %19 : i32 to index
    %c0_37 = arith.constant 0 : index
    %106 = vector.load %arg19[%105, %c0_37] : memref<8x128xf32, #tpu.memory_space<vmem>>, vector<8x128xf32>
    tpu.vector_store %arg19[%105, %c0_37], %104 {strides = array<i32>} : memref<8x128xf32, #tpu.memory_space<vmem>>, vector<8x128xf32>,
    %c1_i32 = arith.constant 1 : i32
    %c0_38 = arith.constant 0 : index
    %c0_39 = arith.constant 0 : index
    %107 = vector.load %arg19[%c0_38, %c0_39] : memref<8x128xf32, #tpu.memory_space<vmem>>, vector<8x128xf32>
    %c0_40 = arith.constant 0 : index
    %c0_41 = arith.constant 0 : index
    %108 = vector.load %arg8[%c0_40, %c0_41] : memref<2x128xf32, #tpu.memory_space<vmem>>, vector<1x128xf32>
    %c0_42 = arith.constant 0 : index
    %c0_43 = arith.constant 0 : index
    %109 = vector.load %arg9[%c0_42, %c0_43] : memref<2x128xf32, #tpu.memory_space<vmem>>, vector<1x128xf32>
    %cst_44 = arith.constant dense<0.000000e+00> : vector<8xf32>
    %110 = vector.multi_reduction <add>, %107, %cst_44 [1] : vector<8x128xf32> to vector<8xf32>
    %111 = vector.shape_cast %110 : vector<8xf32> to vector<8x1xf32>
    %cst_45 = arith.constant 1.280000e+02 : f32
    %112 = vector.broadcast %cst_45 : f32 to vector<8x1xf32>
    %113 = arith.divf %111, %112 : vector<8x1xf32>
    %114 = vector.broadcast %113 : vector<8x1xf32> to vector<8x128xf32>
    %115 = arith.subf %107, %114 : vector<8x128xf32>
    %116 = arith.mulf %115, %115 : vector<8x128xf32>
    %cst_46 = arith.constant dense<0.000000e+00> : vector<8xf32>
    %117 = vector.multi_reduction <add>, %116, %cst_46 [1] : vector<8x128xf32> to vector<8xf32>
    %118 = vector.shape_cast %117 : vector<8xf32> to vector<8x1xf32>
    %cst_47 = arith.constant 1.280000e+02 : f32
    %119 = vector.broadcast %cst_47 : f32 to vector<8x1xf32>
    %120 = arith.divf %118, %119 : vector<8x1xf32>
    %121 = vector.broadcast %113 : vector<8x1xf32> to vector<8x128xf32>
    %122 = arith.subf %107, %121 : vector<8x128xf32>
    %cst_48 = arith.constant 9.99999974E-6 : f32
    %123 = vector.broadcast %cst_48 : f32 to vector<8x1xf32>
    %124 = arith.addf %120, %123 : vector<8x1xf32>
    %125 = math.rsqrt %124 : vector<8x1xf32>
    %126 = vector.broadcast %125 : vector<8x1xf32> to vector<8x128xf32>
    %127 = arith.mulf %122, %126 : vector<8x128xf32>
    %128 = vector.broadcast %108 : vector<1x128xf32> to vector<8x128xf32>
    %129 = arith.mulf %127, %128 : vector<8x128xf32>
    %130 = vector.broadcast %109 : vector<1x128xf32> to vector<8x128xf32>
    %131 = arith.addf %129, %130 : vector<8x128xf32>
    %132 = arith.truncf %131 : vector<8x128xf32> to vector<8x128xbf16>
    %c0_49 = arith.constant 0 : index
    %c0_50 = arith.constant 0 : index
    %c0_51 = arith.constant 0 : index
    %133 = vector.load %arg10[%c0_49, %c0_50, %c0_51] : memref<2x128x512xbf16, #tpu.memory_space<vmem>>, vector<1x128x512xbf16>
    %134 = vector.shape_cast %133 : vector<1x128x512xbf16> to vector<128x512xbf16>
    %cst_52 = arith.constant dense<0.000000e+00> : vector<8x512xf32>
    %135 = tpu.matmul %132, %134, %cst_52 {dimension_numbers = #tpu.dot_dimension_numbers<[1], [0], [0], [1], [0, 0, 1, 1], [], []>} : vector<8x128xbf16>, vector<128x512xbf16>, vector<8x512xf32> -> vector<8x512xf32>
    %c0_53 = arith.constant 0 : index
    %c0_54 = arith.constant 0 : index
    %136 = vector.load %arg11[%c0_53, %c0_54] : memref<2x512xf32, #tpu.memory_space<vmem>>, vector<1x512xf32>
    %137 = vector.broadcast %136 : vector<1x512xf32> to vector<8x512xf32>
    %138 = arith.addf %135, %137 : vector<8x512xf32>
    %cst_55 = arith.constant 0.000000e+00 : f32
    %139 = vector.broadcast %cst_55 : f32 to vector<8x512xf32>
    %140 = arith.maximumf %138, %139 : vector<8x512xf32>
    %141 = arith.truncf %140 : vector<8x512xf32> to vector<8x512xbf16>
    %c0_56 = arith.constant 0 : index
    %c0_57 = arith.constant 0 : index
    %c0_58 = arith.constant 0 : index
    %142 = vector.load %arg12[%c0_56, %c0_57, %c0_58] : memref<2x512x128xbf16, #tpu.memory_space<vmem>>, vector<1x512x128xbf16>
    %143 = vector.shape_cast %142 : vector<1x512x128xbf16> to vector<512x128xbf16>
    %cst_59 = arith.constant dense<0.000000e+00> : vector<8x128xf32>
    %144 = tpu.matmul %141, %143, %cst_59 {dimension_numbers = #tpu.dot_dimension_numbers<[1], [0], [0], [1], [0, 0, 1, 1], [], []>} : vector<8x512xbf16>, vector<512x128xbf16>, vector<8x128xf32> -> vector<8x128xf32>
    %145 = arith.addf %107, %144 : vector<8x128xf32>
    %c0_60 = arith.constant 0 : index
    %c0_61 = arith.constant 0 : index
    %146 = vector.load %arg13[%c0_60, %c0_61] : memref<2x128xf32, #tpu.memory_space<vmem>>, vector<1x128xf32>
    %147 = vector.broadcast %146 : vector<1x128xf32> to vector<8x128xf32>
    %148 = arith.addf %145, %147 : vector<8x128xf32>
    %c0_62 = arith.constant 0 : index
    %c0_63 = arith.constant 0 : index
    %149 = vector.load %arg19[%c0_62, %c0_63] : memref<8x128xf32, #tpu.memory_space<vmem>>, vector<8x128xf32>
    tpu.vector_store %arg19[%c0_62, %c0_63], %148 {strides = array<i32>} : memref<8x128xf32, #tpu.memory_space<vmem>>, vector<8x128xf32>,
    %c1 = arith.constant 1 : index
    %c0_64 = arith.constant 0 : index
    %c0_65 = arith.constant 0 : index
    %150 = vector.load %arg2[%c1, %c0_64, %c0_65] : memref<2x128x4xbf16, #tpu.memory_space<vmem>>, vector<1x128x4xbf16>
    %151 = vector.shape_cast %150 : vector<1x128x4xbf16> to vector<128x4xbf16>
    %c1_66 = arith.constant 1 : index
    %c0_67 = arith.constant 0 : index
    %c0_68 = arith.constant 0 : index
    %152 = vector.load %arg3[%c1_66, %c0_67, %c0_68] : memref<2x2x128xbf16, #tpu.memory_space<vmem>>, vector<1x2x128xbf16>
    %153 = vector.shape_cast %152 : vector<1x2x128xbf16> to vector<2x128xbf16>
    %c1_69 = arith.constant 1 : index
    %c0_70 = arith.constant 0 : index
    %c0_71 = arith.constant 0 : index
    %154 = vector.load %arg4[%c1_69, %c0_70, %c0_71] : memref<2x2x128xf32, #tpu.memory_space<vmem>>, vector<1x2x128xf32>
    %155 = vector.shape_cast %154 : vector<1x2x128xf32> to vector<2x128xf32>
    %c1_72 = arith.constant 1 : index
    %c0_73 = arith.constant 0 : index
    %156 = vector.load %arg6[%c1_72, %c0_73] : memref<2x128xf32, #tpu.memory_space<vmem>>, vector<1x128xf32>
    %c1_74 = arith.constant 1 : index
    %c0_75 = arith.constant 0 : index
    %157 = vector.load %arg7[%c1_74, %c0_75] : memref<2x128xf32, #tpu.memory_space<vmem>>, vector<1x128xf32>
    %c1_76 = arith.constant 1 : index
    %c0_77 = arith.constant 0 : index
    %158 = vector.load %arg5[%c1_76, %c0_77] : memref<2x128xf32, #tpu.memory_space<vmem>>, vector<1x128xf32>
    %c0_i32_78 = arith.constant 0 : i32
    %c8_i32_79 = arith.constant 8 : i32
    %159 = arith.muli %c0_i32_78, %c8_i32_79 : i32
    %160 = tpu.assume_multiple %159, 8 : i32
    %161 = arith.index_cast %160 : i32 to index
    %c0_80 = arith.constant 0 : index
    %162 = vector.load %arg19[%161, %c0_80] : memref<8x128xf32, #tpu.memory_space<vmem>>, vector<8x128xf32>
    %cst_81 = arith.constant dense<0.000000e+00> : vector<8xf32>
    %163 = vector.multi_reduction <add>, %162, %cst_81 [1] : vector<8x128xf32> to vector<8xf32>
    %164 = vector.shape_cast %163 : vector<8xf32> to vector<8x1xf32>
    %cst_82 = arith.constant 1.280000e+02 : f32
    %165 = vector.broadcast %cst_82 : f32 to vector<8x1xf32>
    %166 = arith.divf %164, %165 : vector<8x1xf32>
    %167 = vector.broadcast %166 : vector<8x1xf32> to vector<8x128xf32>
    %168 = arith.subf %162, %167 : vector<8x128xf32>
    %169 = arith.mulf %168, %168 : vector<8x128xf32>
    %cst_83 = arith.constant dense<0.000000e+00> : vector<8xf32>
    %170 = vector.multi_reduction <add>, %169, %cst_83 [1] : vector<8x128xf32> to vector<8xf32>
    %171 = vector.shape_cast %170 : vector<8xf32> to vector<8x1xf32>
    %cst_84 = arith.constant 1.280000e+02 : f32
    %172 = vector.broadcast %cst_84 : f32 to vector<8x1xf32>
    %173 = arith.divf %171, %172 : vector<8x1xf32>
    %174 = vector.broadcast %166 : vector<8x1xf32> to vector<8x128xf32>
    %175 = arith.subf %162, %174 : vector<8x128xf32>
    %cst_85 = arith.constant 9.99999974E-6 : f32
    %176 = vector.broadcast %cst_85 : f32 to vector<8x1xf32>
    %177 = arith.addf %173, %176 : vector<8x1xf32>
    %178 = math.rsqrt %177 : vector<8x1xf32>
    %179 = vector.broadcast %178 : vector<8x1xf32> to vector<8x128xf32>
    %180 = arith.mulf %175, %179 : vector<8x128xf32>
    %181 = vector.broadcast %156 : vector<1x128xf32> to vector<8x128xf32>
    %182 = arith.mulf %180, %181 : vector<8x128xf32>
    %183 = vector.broadcast %157 : vector<1x128xf32> to vector<8x128xf32>
    %184 = arith.addf %182, %183 : vector<8x128xf32>
    %185 = arith.truncf %184 : vector<8x128xf32> to vector<8x128xbf16>
    %cst_86 = arith.constant dense<0.000000e+00> : vector<8x4xf32>
    %186 = tpu.matmul %185, %151, %cst_86 {dimension_numbers = #tpu.dot_dimension_numbers<[1], [0], [0], [1], [0, 0, 1, 1], [], []>} : vector<8x128xbf16>, vector<128x4xbf16>, vector<8x4xf32> -> vector<8x4xf32>
    "tpu.trace_start"() <{level = 10 : i32, message = "hd,td->ht"}> : () -> ()
    %cst_87 = arith.constant dense<0.000000e+00> : vector<2x8xf32>
    %187 = tpu.matmul %153, %185, %cst_87 {dimension_numbers = #tpu.dot_dimension_numbers<[1], [1], [0], [0], [0, 0, 1, 0], [], []>} : vector<2x128xbf16>, vector<8x128xbf16>, vector<2x8xf32> -> vector<2x8xf32>
    %cst_88 = arith.constant 0.000000e+00 : f32
    "tpu.trace_stop"() : () -> ()
    %188 = vector.broadcast %cst_88 : f32 to vector<8x128xf32>
    %189 = vector.extract_strided_slice %186 {offsets = [0, 0], sizes = [8, 1], strides = [1, 1]} : vector<8x4xf32> to vector<8x1xf32>
    %190 = vector.extract_strided_slice %187 {offsets = [0, 0], sizes = [1, 8], strides = [1, 1]} : vector<2x8xf32> to vector<1x8xf32>
    %191 = vector.broadcast %189 : vector<8x1xf32> to vector<8x8xf32>
    %192 = vector.broadcast %190 : vector<1x8xf32> to vector<8x8xf32>
    %193 = arith.mulf %191, %192 : vector<8x8xf32>
    %cst_89 = arith.constant 0.0883883461 : f32
    %194 = vector.broadcast %cst_89 : f32 to vector<8x8xf32>
    %195 = arith.mulf %193, %194 : vector<8x8xf32>
    %196 = arith.addf %195, %8 : vector<8x8xf32>
    %cst_90 = arith.constant dense<0xFF800000> : vector<8xf32>
    %197 = vector.multi_reduction <maximumf>, %196, %cst_90 [1] : vector<8x8xf32> to vector<8xf32>
    %198 = vector.shape_cast %197 : vector<8xf32> to vector<8x1xf32>
    %199 = vector.broadcast %198 : vector<8x1xf32> to vector<8x8xf32>
    %200 = arith.subf %196, %199 : vector<8x8xf32>
    %201 = math.exp %200 : vector<8x8xf32>
    %cst_91 = arith.constant dense<0.000000e+00> : vector<8xf32>
    %202 = vector.multi_reduction <add>, %201, %cst_91 [1] : vector<8x8xf32> to vector<8xf32>
    %203 = vector.shape_cast %202 : vector<8xf32> to vector<8x1xf32>
    %204 = tpu.reciprocal %203 {approx = true} : vector<8x1xf32> -> vector<8x1xf32>
    %205 = vector.extract_strided_slice %186 {offsets = [0, 2], sizes = [8, 1], strides = [1, 1]} : vector<8x4xf32> to vector<8x1xf32>
    %206 = vector.extract_strided_slice %155 {offsets = [0, 0], sizes = [1, 128], strides = [1, 1]} : vector<2x128xf32> to vector<1x128xf32>
    %207 = vector.broadcast %205 : vector<8x1xf32> to vector<8x128xf32>
    %208 = vector.broadcast %206 : vector<1x128xf32> to vector<8x128xf32>
    %209 = arith.mulf %207, %208 : vector<8x128xf32>
    %210 = arith.truncf %209 : vector<8x128xf32> to vector<8x128xbf16>
    %211 = arith.truncf %201 : vector<8x8xf32> to vector<8x8xbf16>
    %cst_92 = arith.constant dense<0.000000e+00> : vector<8x128xf32>
    %212 = tpu.matmul %211, %210, %cst_92 {dimension_numbers = #tpu.dot_dimension_numbers<[1], [0], [0], [1], [0, 0, 1, 1], [], []>} : vector<8x8xbf16>, vector<8x128xbf16>, vector<8x128xf32> -> vector<8x128xf32>
    %213 = vector.broadcast %204 : vector<8x1xf32> to vector<8x128xf32>
    %214 = arith.mulf %213, %212 : vector<8x128xf32>
    %215 = arith.addf %188, %214 : vector<8x128xf32>
    %216 = vector.extract_strided_slice %186 {offsets = [0, 1], sizes = [8, 1], strides = [1, 1]} : vector<8x4xf32> to vector<8x1xf32>
    %217 = vector.extract_strided_slice %187 {offsets = [1, 0], sizes = [1, 8], strides = [1, 1]} : vector<2x8xf32> to vector<1x8xf32>
    %218 = vector.broadcast %216 : vector<8x1xf32> to vector<8x8xf32>
    %219 = vector.broadcast %217 : vector<1x8xf32> to vector<8x8xf32>
    %220 = arith.mulf %218, %219 : vector<8x8xf32>
    %cst_93 = arith.constant 0.0883883461 : f32
    %221 = vector.broadcast %cst_93 : f32 to vector<8x8xf32>
    %222 = arith.mulf %220, %221 : vector<8x8xf32>
    %223 = arith.addf %222, %8 : vector<8x8xf32>
    %cst_94 = arith.constant dense<0xFF800000> : vector<8xf32>
    %224 = vector.multi_reduction <maximumf>, %223, %cst_94 [1] : vector<8x8xf32> to vector<8xf32>
    %225 = vector.shape_cast %224 : vector<8xf32> to vector<8x1xf32>
    %226 = vector.broadcast %225 : vector<8x1xf32> to vector<8x8xf32>
    %227 = arith.subf %223, %226 : vector<8x8xf32>
    %228 = math.exp %227 : vector<8x8xf32>
    %cst_95 = arith.constant dense<0.000000e+00> : vector<8xf32>
    %229 = vector.multi_reduction <add>, %228, %cst_95 [1] : vector<8x8xf32> to vector<8xf32>
    %230 = vector.shape_cast %229 : vector<8xf32> to vector<8x1xf32>
    %231 = tpu.reciprocal %230 {approx = true} : vector<8x1xf32> -> vector<8x1xf32>
    %232 = vector.extract_strided_slice %186 {offsets = [0, 3], sizes = [8, 1], strides = [1, 1]} : vector<8x4xf32> to vector<8x1xf32>
    %233 = vector.extract_strided_slice %155 {offsets = [1, 0], sizes = [1, 128], strides = [1, 1]} : vector<2x128xf32> to vector<1x128xf32>
    %234 = vector.broadcast %232 : vector<8x1xf32> to vector<8x128xf32>
    %235 = vector.broadcast %233 : vector<1x128xf32> to vector<8x128xf32>
    %236 = arith.mulf %234, %235 : vector<8x128xf32>
    %237 = arith.truncf %236 : vector<8x128xf32> to vector<8x128xbf16>
    %238 = arith.truncf %228 : vector<8x8xf32> to vector<8x8xbf16>
    %cst_96 = arith.constant dense<0.000000e+00> : vector<8x128xf32>
    %239 = tpu.matmul %238, %237, %cst_96 {dimension_numbers = #tpu.dot_dimension_numbers<[1], [0], [0], [1], [0, 0, 1, 1], [], []>} : vector<8x8xbf16>, vector<8x128xbf16>, vector<8x128xf32> -> vector<8x128xf32>
    %240 = vector.broadcast %231 : vector<8x1xf32> to vector<8x128xf32>
    %241 = arith.mulf %240, %239 : vector<8x128xf32>
    %242 = arith.addf %215, %241 : vector<8x128xf32>
    %243 = arith.addf %162, %242 : vector<8x128xf32>
    %244 = vector.broadcast %158 : vector<1x128xf32> to vector<8x128xf32>
    %245 = arith.addf %243, %244 : vector<8x128xf32>
    %246 = arith.index_cast %160 : i32 to index
    %c0_97 = arith.constant 0 : index
    %247 = vector.load %arg19[%246, %c0_97] : memref<8x128xf32, #tpu.memory_space<vmem>>, vector<8x128xf32>
    tpu.vector_store %arg19[%246, %c0_97], %245 {strides = array<i32>} : memref<8x128xf32, #tpu.memory_space<vmem>>, vector<8x128xf32>,
    %c1_i32_98 = arith.constant 1 : i32
    %c0_99 = arith.constant 0 : index
    %c0_100 = arith.constant 0 : index
    %248 = vector.load %arg19[%c0_99, %c0_100] : memref<8x128xf32, #tpu.memory_space<vmem>>, vector<8x128xf32>
    %c1_101 = arith.constant 1 : index
    %c0_102 = arith.constant 0 : index
    %249 = vector.load %arg8[%c1_101, %c0_102] : memref<2x128xf32, #tpu.memory_space<vmem>>, vector<1x128xf32>
    %c1_103 = arith.constant 1 : index
    %c0_104 = arith.constant 0 : index
    %250 = vector.load %arg9[%c1_103, %c0_104] : memref<2x128xf32, #tpu.memory_space<vmem>>, vector<1x128xf32>
    %cst_105 = arith.constant dense<0.000000e+00> : vector<8xf32>
    %251 = vector.multi_reduction <add>, %248, %cst_105 [1] : vector<8x128xf32> to vector<8xf32>
    %252 = vector.shape_cast %251 : vector<8xf32> to vector<8x1xf32>
    %cst_106 = arith.constant 1.280000e+02 : f32
    %253 = vector.broadcast %cst_106 : f32 to vector<8x1xf32>
    %254 = arith.divf %252, %253 : vector<8x1xf32>
    %255 = vector.broadcast %254 : vector<8x1xf32> to vector<8x128xf32>
    %256 = arith.subf %248, %255 : vector<8x128xf32>
    %257 = arith.mulf %256, %256 : vector<8x128xf32>
    %cst_107 = arith.constant dense<0.000000e+00> : vector<8xf32>
    %258 = vector.multi_reduction <add>, %257, %cst_107 [1] : vector<8x128xf32> to vector<8xf32>
    %259 = vector.shape_cast %258 : vector<8xf32> to vector<8x1xf32>
    %cst_108 = arith.constant 1.280000e+02 : f32
    %260 = vector.broadcast %cst_108 : f32 to vector<8x1xf32>
    %261 = arith.divf %259, %260 : vector<8x1xf32>
    %262 = vector.broadcast %254 : vector<8x1xf32> to vector<8x128xf32>
    %263 = arith.subf %248, %262 : vector<8x128xf32>
    %cst_109 = arith.constant 9.99999974E-6 : f32
    %264 = vector.broadcast %cst_109 : f32 to vector<8x1xf32>
    %265 = arith.addf %261, %264 : vector<8x1xf32>
    %266 = math.rsqrt %265 : vector<8x1xf32>
    %267 = vector.broadcast %266 : vector<8x1xf32> to vector<8x128xf32>
    %268 = arith.mulf %263, %267 : vector<8x128xf32>
    %269 = vector.broadcast %249 : vector<1x128xf32> to vector<8x128xf32>
    %270 = arith.mulf %268, %269 : vector<8x128xf32>
    %271 = vector.broadcast %250 : vector<1x128xf32> to vector<8x128xf32>
    %272 = arith.addf %270, %271 : vector<8x128xf32>
    %273 = arith.truncf %272 : vector<8x128xf32> to vector<8x128xbf16>
    %c1_110 = arith.constant 1 : index
    %c0_111 = arith.constant 0 : index
    %c0_112 = arith.constant 0 : index
    %274 = vector.load %arg10[%c1_110, %c0_111, %c0_112] : memref<2x128x512xbf16, #tpu.memory_space<vmem>>, vector<1x128x512xbf16>
    %275 = vector.shape_cast %274 : vector<1x128x512xbf16> to vector<128x512xbf16>
    %cst_113 = arith.constant dense<0.000000e+00> : vector<8x512xf32>
    %276 = tpu.matmul %273, %275, %cst_113 {dimension_numbers = #tpu.dot_dimension_numbers<[1], [0], [0], [1], [0, 0, 1, 1], [], []>} : vector<8x128xbf16>, vector<128x512xbf16>, vector<8x512xf32> -> vector<8x512xf32>
    %c1_114 = arith.constant 1 : index
    %c0_115 = arith.constant 0 : index
    %277 = vector.load %arg11[%c1_114, %c0_115] : memref<2x512xf32, #tpu.memory_space<vmem>>, vector<1x512xf32>
    %278 = vector.broadcast %277 : vector<1x512xf32> to vector<8x512xf32>
    %279 = arith.addf %276, %278 : vector<8x512xf32>
    %cst_116 = arith.constant 0.000000e+00 : f32
    %280 = vector.broadcast %cst_116 : f32 to vector<8x512xf32>
    %281 = arith.maximumf %279, %280 : vector<8x512xf32>
    %282 = arith.truncf %281 : vector<8x512xf32> to vector<8x512xbf16>
    %c1_117 = arith.constant 1 : index
    %c0_118 = arith.constant 0 : index
    %c0_119 = arith.constant 0 : index
    %283 = vector.load %arg12[%c1_117, %c0_118, %c0_119] : memref<2x512x128xbf16, #tpu.memory_space<vmem>>, vector<1x512x128xbf16>
    %284 = vector.shape_cast %283 : vector<1x512x128xbf16> to vector<512x128xbf16>
    %cst_120 = arith.constant dense<0.000000e+00> : vector<8x128xf32>
    %285 = tpu.matmul %282, %284, %cst_120 {dimension_numbers = #tpu.dot_dimension_numbers<[1], [0], [0], [1], [0, 0, 1, 1], [], []>} : vector<8x512xbf16>, vector<512x128xbf16>, vector<8x128xf32> -> vector<8x128xf32>
    %286 = arith.addf %248, %285 : vector<8x128xf32>
    %c1_121 = arith.constant 1 : index
    %c0_122 = arith.constant 0 : index
    %287 = vector.load %arg13[%c1_121, %c0_122] : memref<2x128xf32, #tpu.memory_space<vmem>>, vector<1x128xf32>
    %288 = vector.broadcast %287 : vector<1x128xf32> to vector<8x128xf32>
    %289 = arith.addf %286, %288 : vector<8x128xf32>
    %c0_123 = arith.constant 0 : index
    %c0_124 = arith.constant 0 : index
    %290 = vector.load %arg19[%c0_123, %c0_124] : memref<8x128xf32, #tpu.memory_space<vmem>>, vector<8x128xf32>
    tpu.vector_store %arg19[%c0_123, %c0_124], %289 {strides = array<i32>} : memref<8x128xf32, #tpu.memory_space<vmem>>, vector<8x128xf32>,
    %c0_125 = arith.constant 0 : index
    %c0_126 = arith.constant 0 : index
    %291 = vector.load %arg19[%c0_125, %c0_126] : memref<8x128xf32, #tpu.memory_space<vmem>>, vector<8x128xf32>
    %c0_127 = arith.constant 0 : index
    %c0_128 = arith.constant 0 : index
    %292 = vector.load %arg14[%c0_127, %c0_128] : memref<1x128xf32, #tpu.memory_space<vmem>>, vector<1x128xf32>
    %c0_129 = arith.constant 0 : index
    %c0_130 = arith.constant 0 : index
    %293 = vector.load %arg15[%c0_129, %c0_130] : memref<1x128xf32, #tpu.memory_space<vmem>>, vector<1x128xf32>
    %cst_131 = arith.constant dense<0.000000e+00> : vector<8xf32>
    %294 = vector.multi_reduction <add>, %291, %cst_131 [1] : vector<8x128xf32> to vector<8xf32>
    %295 = vector.shape_cast %294 : vector<8xf32> to vector<8x1xf32>
    %cst_132 = arith.constant 1.280000e+02 : f32
    %296 = vector.broadcast %cst_132 : f32 to vector<8x1xf32>
    %297 = arith.divf %295, %296 : vector<8x1xf32>
    %298 = vector.broadcast %297 : vector<8x1xf32> to vector<8x128xf32>
    %299 = arith.subf %291, %298 : vector<8x128xf32>
    %300 = arith.mulf %299, %299 : vector<8x128xf32>
    %cst_133 = arith.constant dense<0.000000e+00> : vector<8xf32>
    %301 = vector.multi_reduction <add>, %300, %cst_133 [1] : vector<8x128xf32> to vector<8xf32>
    %302 = vector.shape_cast %301 : vector<8xf32> to vector<8x1xf32>
    %cst_134 = arith.constant 1.280000e+02 : f32
    %303 = vector.broadcast %cst_134 : f32 to vector<8x1xf32>
    %304 = arith.divf %302, %303 : vector<8x1xf32>
    %305 = vector.broadcast %297 : vector<8x1xf32> to vector<8x128xf32>
    %306 = arith.subf %291, %305 : vector<8x128xf32>
    %cst_135 = arith.constant 9.99999974E-6 : f32
    %307 = vector.broadcast %cst_135 : f32 to vector<8x1xf32>
    %308 = arith.addf %304, %307 : vector<8x1xf32>
    %309 = math.rsqrt %308 : vector<8x1xf32>
    %310 = vector.broadcast %309 : vector<8x1xf32> to vector<8x128xf32>
    %311 = arith.mulf %306, %310 : vector<8x128xf32>
    %312 = vector.broadcast %292 : vector<1x128xf32> to vector<8x128xf32>
    %313 = arith.mulf %311, %312 : vector<8x128xf32>
    %314 = vector.broadcast %293 : vector<1x128xf32> to vector<8x128xf32>
    %315 = arith.addf %313, %314 : vector<8x128xf32>
    %316 = arith.truncf %315 : vector<8x128xf32> to vector<8x128xbf16>
    %c0_136 = arith.constant 0 : index
    %c0_137 = arith.constant 0 : index
    %317 = vector.load %arg16[%c0_136, %c0_137] : memref<128x128xbf16, #tpu.memory_space<vmem>>, vector<128x128xbf16>
    %cst_138 = arith.constant dense<0.000000e+00> : vector<8x128xf32>
    %318 = tpu.matmul %316, %317, %cst_138 {dimension_numbers = #tpu.dot_dimension_numbers<[1], [0], [0], [1], [0, 0, 1, 1], [], []>} : vector<8x128xbf16>, vector<128x128xbf16>, vector<8x128xf32> -> vector<8x128xf32>
    %c0_139 = arith.constant 0 : index
    %c0_140 = arith.constant 0 : index
    %319 = vector.load %arg17[%c0_139, %c0_140] : memref<1x128xf32, #tpu.memory_space<vmem>>, vector<1x128xf32>
    %320 = vector.broadcast %319 : vector<1x128xf32> to vector<8x128xf32>
    %321 = arith.addf %318, %320 : vector<8x128xf32>
    %322 = vector.shape_cast %321 : vector<8x128xf32> to vector<1x8x128xf32>
    %c0_141 = arith.constant 0 : index
    %c0_142 = arith.constant 0 : index
    %c0_143 = arith.constant 0 : index
    %323 = vector.load %arg18[%c0_141, %c0_142, %c0_143] : memref<1x8x128xf32, #tpu.memory_space<vmem>>, vector<1x8x128xf32>
    tpu.vector_store %arg18[%c0_141, %c0_142, %c0_143], %322 {strides = array<i32>} : memref<1x8x128xf32, #tpu.memory_space<vmem>>, vector<1x8x128xf32>,
    return
  }
  func.func @transform_0(%arg0: i32) -> (i32, i32, i32) {
    %c0_i32 = arith.constant 0 : i32
    %c0_i32_0 = arith.constant 0 : i32
    %c0_i32_1 = arith.constant 0 : i32
    return %arg0, %c0_i32, %c0_i32_0 : i32, i32, i32
  }
  func.func @transform_1(%arg0: i32) -> (i32, i32, i32) {
    %c0_i32 = arith.constant 0 : i32
    %c0_i32_0 = arith.constant 0 : i32
    %c0_i32_1 = arith.constant 0 : i32
    %c0_i32_2 = arith.constant 0 : i32
    return %c0_i32, %c0_i32_0, %c0_i32_1 : i32, i32, i32
  }
  func.func @transform_2(%arg0: i32) -> (i32, i32, i32) {
    %c0_i32 = arith.constant 0 : i32
    %c0_i32_0 = arith.constant 0 : i32
    %c0_i32_1 = arith.constant 0 : i32
    %c0_i32_2 = arith.constant 0 : i32
    return %c0_i32, %c0_i32_0, %c0_i32_1 : i32, i32, i32
  }
  func.func @transform_3(%arg0: i32) -> (i32, i32, i32) {
    %c0_i32 = arith.constant 0 : i32
    %c0_i32_0 = arith.constant 0 : i32
    %c0_i32_1 = arith.constant 0 : i32
    %c0_i32_2 = arith.constant 0 : i32
    return %c0_i32, %c0_i32_0, %c0_i32_1 : i32, i32, i32
  }
  func.func @transform_4(%arg0: i32) -> (i32, i32) {
    %c0_i32 = arith.constant 0 : i32
    %c0_i32_0 = arith.constant 0 : i32
    %c0_i32_1 = arith.constant 0 : i32
    return %c0_i32, %c0_i32_0 : i32, i32
  }
  func.func @transform_5(%arg0: i32) -> (i32, i32) {
    %c0_i32 = arith.constant 0 : i32
    %c0_i32_0 = arith.constant 0 : i32
    %c0_i32_1 = arith.constant 0 : i32
    return %c0_i32, %c0_i32_0 : i32, i32
  }
  func.func @transform_6(%arg0: i32) -> (i32, i32) {
    %c0_i32 = arith.constant 0 : i32
    %c0_i32_0 = arith.constant 0 : i32
    %c0_i32_1 = arith.constant 0 : i32
    return %c0_i32, %c0_i32_0 : i32, i32
  }
  func.func @transform_7(%arg0: i32) -> (i32, i32) {
    %c0_i32 = arith.constant 0 : i32
    %c0_i32_0 = arith.constant 0 : i32
    %c0_i32_1 = arith.constant 0 : i32
    return %c0_i32, %c0_i32_0 : i32, i32
  }
  func.func @transform_8(%arg0: i32) -> (i32, i32) {
    %c0_i32 = arith.constant 0 : i32
    %c0_i32_0 = arith.constant 0 : i32
    %c0_i32_1 = arith.constant 0 : i32
    return %c0_i32, %c0_i32_0 : i32, i32
  }
  func.func @transform_9(%arg0: i32) -> (i32, i32, i32) {
    %c0_i32 = arith.constant 0 : i32
    %c0_i32_0 = arith.constant 0 : i32
    %c0_i32_1 = arith.constant 0 : i32
    %c0_i32_2 = arith.constant 0 : i32
    return %c0_i32, %c0_i32_0, %c0_i32_1 : i32, i32, i32
  }
  func.func @transform_10(%arg0: i32) -> (i32, i32) {
    %c0_i32 = arith.constant 0 : i32
    %c0_i32_0 = arith.constant 0 : i32
    %c0_i32_1 = arith.constant 0 : i32
    return %c0_i32, %c0_i32_0 : i32, i32
  }
  func.func @transform_11(%arg0: i32) -> (i32, i32, i32) {
    %c0_i32 = arith.constant 0 : i32
    %c0_i32_0 = arith.constant 0 : i32
    %c0_i32_1 = arith.constant 0 : i32
    %c0_i32_2 = arith.constant 0 : i32
    return %c0_i32, %c0_i32_0, %c0_i32_1 : i32, i32, i32
  }
  func.func @transform_12(%arg0: i32) -> (i32, i32) {
    %c0_i32 = arith.constant 0 : i32
    %c0_i32_0 = arith.constant 0 : i32
    %c0_i32_1 = arith.constant 0 : i32
    return %c0_i32, %c0_i32_0 : i32, i32
  }
  func.func @transform_13(%arg0: i32) -> (i32, i32) {
    %c0_i32 = arith.constant 0 : i32
    %c0_i32_0 = arith.constant 0 : i32
    %c0_i32_1 = arith.constant 0 : i32
    return %c0_i32, %c0_i32_0 : i32, i32
  }
  func.func @transform_14(%arg0: i32) -> (i32, i32) {
    %c0_i32 = arith.constant 0 : i32
    %c0_i32_0 = arith.constant 0 : i32
    %c0_i32_1 = arith.constant 0 : i32
    return %c0_i32, %c0_i32_0 : i32, i32
  }
  func.func @transform_15(%arg0: i32) -> (i32, i32) {
    %c0_i32 = arith.constant 0 : i32
    %c0_i32_0 = arith.constant 0 : i32
    %c0_i32_1 = arith.constant 0 : i32
    return %c0_i32, %c0_i32_0 : i32, i32
  }
  func.func @transform_16(%arg0: i32) -> (i32, i32) {
    %c0_i32 = arith.constant 0 : i32
    %c0_i32_0 = arith.constant 0 : i32
    %c0_i32_1 = arith.constant 0 : i32
    return %c0_i32, %c0_i32_0 : i32, i32
  }
  func.func @transform_17(%arg0: i32) -> (i32, i32, i32) {
    %c0_i32 = arith.constant 0 : i32
    %c0_i32_0 = arith.constant 0 : i32
    %c0_i32_1 = arith.constant 0 : i32
    return %arg0, %c0_i32, %c0_i32_0 : i32, i32, i32
  }
}

</mosaic_0001>

<llo_original>
// kernel: tpu_custom_call.1
$region0: #{tpu_custom_call.1}
  #allocation0 [shape = 'u32[]', space=smem, size = 0x4, offset = 0x4, fixed_abs, tag = 'smem constant byte address 0x4 - core index']
  #allocation1 [shape = 'u32[144,128]{1,0:T(1,128)}', space=vmem, size = 0x12000, scoped, tag = 'internal scratch']
  #allocation2 [shape = 'f32[8,128]{1,0:T(8,128)}', space=vmem, size = 0x1000, scoped, tag = 'scratch operand']
  %s0 = inlined_call_operand.vmem [shape: f32[2,8,128], index: 0, kind: input, shape index: {}]
  %s1 = inlined_call_operand.vmem [shape: bf16[2,128,4], index: 1, kind: input, shape index: {}]
  %s2 = inlined_call_operand.vmem [shape: bf16[2,2,128], index: 2, kind: input, shape index: {}]
  %s3 = inlined_call_operand.vmem [shape: f32[2,2,128], index: 3, kind: input, shape index: {}]
  %s4 = inlined_call_operand.vmem [shape: f32[2,128], index: 4, kind: input, shape index: {}]
  %s5 = inlined_call_operand.vmem [shape: f32[2,128], index: 5, kind: input, shape index: {}]
  %s6 = inlined_call_operand.vmem [shape: f32[2,128], index: 6, kind: input, shape index: {}]
  %s7 = inlined_call_operand.vmem [shape: f32[2,128], index: 7, kind: input, shape index: {}]
  %s8 = inlined_call_operand.vmem [shape: f32[2,128], index: 8, kind: input, shape index: {}]
  %s9 = inlined_call_operand.hbm [shape: bf16[2,128,512], index: 9, kind: input, shape index: {}]
  %s10 = inlined_call_operand.vmem [shape: f32[2,512], index: 10, kind: input, shape index: {}]
  %s11 = inlined_call_operand.hbm [shape: bf16[2,512,128], index: 11, kind: input, shape index: {}]
  %s12 = inlined_call_operand.vmem [shape: f32[2,128], index: 12, kind: input, shape index: {}]
  %s13 = inlined_call_operand.vmem [shape: f32[1,128], index: 13, kind: input, shape index: {}]
  %s14 = inlined_call_operand.vmem [shape: f32[1,128], index: 14, kind: input, shape index: {}]
  %s15 = inlined_call_operand.vmem [shape: bf16[128,128], index: 15, kind: input, shape index: {}]
  %s16 = inlined_call_operand.vmem [shape: f32[1,128], index: 16, kind: input, shape index: {}]
  %s17 = inlined_call_operand.hbm [shape: f32[2,8,128], index: 17, kind: output, shape index: {}]
  %s18 = sld [smem:[#allocation0]]
  $region109: #{tpu_custom_call.1} parent=0
    _
  %s20 = ssub.s32 1, %s18
  %s21 = scalar_select 0, %s20, %s18
  $region1: #{tpu_custom_call.1} parent=0
    #allocation3 [shape = 'u8[262144]{0}', space=vmem, size = 0x40000, scoped, tag = 'input window, operand 9, single buffered']
    #allocation4 [shape = 's32[2]{0}', space=sflag, size = 0x8, scoped, tag = 'scoped memory for tpu_custom_call.1']
    #allocation5 [shape = 's32[2]{0}', space=sflag, size = 0x8, scoped, tag = 'scoped memory for tpu_custom_call.1']
    #allocation6 [shape = 'u8[262144]{0}', space=vmem, size = 0x40000, scoped, tag = 'input window, operand 11, single buffered']
    #allocation7 [shape = 's32[1]{0}', space=sflag, size = 0x4, scoped, tag = 'scoped memory for tpu_custom_call.1']
    #allocation8 [shape = 'u8[8192]{0}', space=vmem, size = 0x2000, scoped, tag = 'output window, operand 0']
    %22 = vsyncpa [#allocation4], 0
    %23 = vsyncpa [#allocation7], 0
    %24 = vsyncpa [#allocation5], 0
    %s25 = scalar_lea.sflag [#allocation5], 1
    %26 = vsyncpa %s25, 0
    loop: start=0, step=1, limit=4
    $region2: #{tpu_custom_call.1} parent=1 // loop_pre_header
      _
    $region3: #{tpu_custom_call.1} parent=1 // loop_header
      %s28 = sphi 0, %s32
      %p29 = scmp.ge.s32.totalorder %s28, 4
      %s38 = sphi 0, %s40
      %s41 = sphi 0, %s38
      %s42 = sphi 0, %s41
      %s58 = sphi 0, %s42
      %s62 = sphi 0, %s62
      %s64 = sphi 0, %s62
      %s65 = sphi 0, %s64
      %s79 = sphi 0, %s65
      %s83 = sphi 0, %s83
      %s85 = sphi 0, %s83
      %s86 = sphi 0, %s85
      %s100 = sphi 0, %s86
      %s104 = sphi 0, %s104
      %s106 = sphi 0, %s104
      %s107 = sphi 0, %s106
      %s121 = sphi 0, %s107
      %s125 = sphi 0, %s125
      %s127 = sphi 0, %s125
      %s128 = sphi 0, %s127
      %s142 = sphi 0, %s128
      %s146 = sphi 0, %s146
      %s148 = sphi 0, %s146
      %s149 = sphi 0, %s148
      %s163 = sphi 0, %s149
      %s167 = sphi 0, %s167
      %s169 = sphi 0, %s167
      %s170 = sphi 0, %s169
      %s184 = sphi 0, %s170
      %s188 = sphi 0, %s188
      %s190 = sphi 0, %s188
      %s191 = sphi 0, %s190
      %s205 = sphi 0, %s191
      %s209 = sphi 0, %s209
      %s211 = sphi 0, %s209
      %s212 = sphi 0, %s211
      %s226 = sphi 0, %s212
      %s230 = sphi 0, %s230
      %s232 = sphi 0, %s230
      %s233 = sphi 0, %s232
      %s247 = sphi 0, %s233
      %s251 = sphi 0, %s251
      %s253 = sphi 0, %s251
      %s254 = sphi 0, %s253
      %s268 = sphi 0, %s254
      %s272 = sphi 0, %s272
      %s274 = sphi 0, %s272
      %s275 = sphi 0, %s274
      %s289 = sphi 0, %s275
      %s293 = sphi 0, %s293
      %s295 = sphi 0, %s293
      %s296 = sphi 0, %s295
      %s310 = sphi 0, %s296
      %s314 = sphi 0, %s314
      %s316 = sphi 0, %s314
      %s317 = sphi 0, %s316
      %s331 = sphi 0, %s317
      %s335 = sphi 0, %s335
      %s337 = sphi 0, %s335
      %s338 = sphi 0, %s337
      %s352 = sphi 0, %s338
      %s356 = sphi 0, %s356
      %s358 = sphi 0, %s356
      %s359 = sphi 0, %s358
      %s373 = sphi 0, %s359
      %s377 = sphi 0, %s377
      %s379 = sphi 0, %s377
      %s380 = sphi 0, %s379
      %s394 = sphi 0, %s380
      %s400 = sphi 0, %s402
      %s403 = sphi 0, %s400
      %s404 = sphi 0, %s403
      %s420 = sphi 0, %s404
    $region4: #{tpu_custom_call.1} parent=1 // loop_header_branch
      %31 = sbr.rel (%p29) target = $region8
    $region5: #{tpu_custom_call.1} parent=1 // loop_body
      %s33 = ssub.s32 %s28, 1
      %s34 = ssub.s32 %s28, 2
      %s35 = sadd.s32 %s28, 1
      %s36 = ssub.s32 %s28, %s35
      %p37 = scmp.eq.s32.totalorder %s36, 0
      %s39 = sadd.s32 %s38, 1
      %s40 = scalar_select %p37, %s38, %s39
      %p43 = pneg %p37
      %p44 = scmp.eq.s32.totalorder %s28, 1
      %p45 = por %p43, %p44
      %p46 = scmp.ne.s32.totalorder %s38, %s41
      %p47 = scmp.eq.s32.totalorder %s28, 0
      %p48 = por %p46, %p47
      %p49 = scmp.ne.s32.totalorder %s38, %s41
      %p50 = scmp.eq.s32.totalorder %s33, 1
      %p51 = por %p49, %p50
      %p52 = scmp.ne.s32.totalorder %s41, %s42
      %p53 = scmp.eq.s32.totalorder %s33, 0
      %p54 = por %p52, %p53
      %p55 = scmp.ne.s32.totalorder %s41, %s42
      %p56 = scmp.eq.s32.totalorder %s34, 1
      %p57 = por %p55, %p56
      %p59 = scmp.ne.s32.totalorder %s42, %s58
      %p60 = scmp.eq.s32.totalorder %s34, 0
      %p61 = por %p59, %p60
      %s63 = sadd.s32 %s62, 1
      %p66 = scmp.eq.s32.totalorder %s28, 1
      %p67 = scmp.ne.s32.totalorder %s62, %s64
      %p68 = scmp.eq.s32.totalorder %s28, 0
      %p69 = por %p67, %p68
      %p70 = scmp.ne.s32.totalorder %s62, %s64
      %p71 = scmp.eq.s32.totalorder %s33, 1
      %p72 = por %p70, %p71
      %p73 = scmp.ne.s32.totalorder %s64, %s65
      %p74 = scmp.eq.s32.totalorder %s33, 0
      %p75 = por %p73, %p74
      %p76 = scmp.ne.s32.totalorder %s64, %s65
      %p77 = scmp.eq.s32.totalorder %s34, 1
      %p78 = por %p76, %p77
      %p80 = scmp.ne.s32.totalorder %s65, %s79
      %p81 = scmp.eq.s32.totalorder %s34, 0
      %p82 = por %p80, %p81
      %s84 = sadd.s32 %s83, 1
      %p87 = scmp.eq.s32.totalorder %s28, 1
      %p88 = scmp.ne.s32.totalorder %s83, %s85
      %p89 = scmp.eq.s32.totalorder %s28, 0
      %p90 = por %p88, %p89
      %p91 = scmp.ne.s32.totalorder %s83, %s85
      %p92 = scmp.eq.s32.totalorder %s33, 1
      %p93 = por %p91, %p92
      %p94 = scmp.ne.s32.totalorder %s85, %s86
      %p95 = scmp.eq.s32.totalorder %s33, 0
      %p96 = por %p94, %p95
      %p97 = scmp.ne.s32.totalorder %s85, %s86
      %p98 = scmp.eq.s32.totalorder %s34, 1
      %p99 = por %p97, %p98
      %p101 = scmp.ne.s32.totalorder %s86, %s100
      %p102 = scmp.eq.s32.totalorder %s34, 0
      %p103 = por %p101, %p102
      %s105 = sadd.s32 %s104, 1
      %p108 = scmp.eq.s32.totalorder %s28, 1
      %p109 = scmp.ne.s32.totalorder %s104, %s106
      %p110 = scmp.eq.s32.totalorder %s28, 0
      %p111 = por %p109, %p110
      %p112 = scmp.ne.s32.totalorder %s104, %s106
      %p113 = scmp.eq.s32.totalorder %s33, 1
      %p114 = por %p112, %p113
      %p115 = scmp.ne.s32.totalorder %s106, %s107
      %p116 = scmp.eq.s32.totalorder %s33, 0
      %p117 = por %p115, %p116
      %p118 = scmp.ne.s32.totalorder %s106, %s107
      %p119 = scmp.eq.s32.totalorder %s34, 1
      %p120 = por %p118, %p119
      %p122 = scmp.ne.s32.totalorder %s107, %s121
      %p123 = scmp.eq.s32.totalorder %s34, 0
      %p124 = por %p122, %p123
      %s126 = sadd.s32 %s125, 1
      %p129 = scmp.eq.s32.totalorder %s28, 1
      %p130 = scmp.ne.s32.totalorder %s125, %s127
      %p131 = scmp.eq.s32.totalorder %s28, 0
      %p132 = por %p130, %p131
      %p133 = scmp.ne.s32.totalorder %s125, %s127
      %p134 = scmp.eq.s32.totalorder %s33, 1
      %p135 = por %p133, %p134
      %p136 = scmp.ne.s32.totalorder %s127, %s128
      %p137 = scmp.eq.s32.totalorder %s33, 0
      %p138 = por %p136, %p137
      %p139 = scmp.ne.s32.totalorder %s127, %s128
      %p140 = scmp.eq.s32.totalorder %s34, 1
      %p141 = por %p139, %p140
      %p143 = scmp.ne.s32.totalorder %s128, %s142
      %p144 = scmp.eq.s32.totalorder %s34, 0
      %p145 = por %p143, %p144
      %s147 = sadd.s32 %s146, 1
      %p150 = scmp.eq.s32.totalorder %s28, 1
      %p151 = scmp.ne.s32.totalorder %s146, %s148
      %p152 = scmp.eq.s32.totalorder %s28, 0
      %p153 = por %p151, %p152
      %p154 = scmp.ne.s32.totalorder %s146, %s148
      %p155 = scmp.eq.s32.totalorder %s33, 1
      %p156 = por %p154, %p155
      %p157 = scmp.ne.s32.totalorder %s148, %s149
      %p158 = scmp.eq.s32.totalorder %s33, 0
      %p159 = por %p157, %p158
      %p160 = scmp.ne.s32.totalorder %s148, %s149
      %p161 = scmp.eq.s32.totalorder %s34, 1
      %p162 = por %p160, %p161
      %p164 = scmp.ne.s32.totalorder %s149, %s163
      %p165 = scmp.eq.s32.totalorder %s34, 0
      %p166 = por %p164, %p165
      %s168 = sadd.s32 %s167, 1
      %p171 = scmp.eq.s32.totalorder %s28, 1
      %p172 = scmp.ne.s32.totalorder %s167, %s169
      %p173 = scmp.eq.s32.totalorder %s28, 0
      %p174 = por %p172, %p173
      %p175 = scmp.ne.s32.totalorder %s167, %s169
      %p176 = scmp.eq.s32.totalorder %s33, 1
      %p177 = por %p175, %p176
      %p178 = scmp.ne.s32.totalorder %s169, %s170
      %p179 = scmp.eq.s32.totalorder %s33, 0
      %p180 = por %p178, %p179
      %p181 = scmp.ne.s32.totalorder %s169, %s170
      %p182 = scmp.eq.s32.totalorder %s34, 1
      %p183 = por %p181, %p182
      %p185 = scmp.ne.s32.totalorder %s170, %s184
      %p186 = scmp.eq.s32.totalorder %s34, 0
      %p187 = por %p185, %p186
      %s189 = sadd.s32 %s188, 1
      %p192 = scmp.eq.s32.totalorder %s28, 1
      %p193 = scmp.ne.s32.totalorder %s188, %s190
      %p194 = scmp.eq.s32.totalorder %s28, 0
      %p195 = por %p193, %p194
      %p196 = scmp.ne.s32.totalorder %s188, %s190
      %p197 = scmp.eq.s32.totalorder %s33, 1
      %p198 = por %p196, %p197
      %p199 = scmp.ne.s32.totalorder %s190, %s191
      %p200 = scmp.eq.s32.totalorder %s33, 0
      %p201 = por %p199, %p200
      %p202 = scmp.ne.s32.totalorder %s190, %s191
      %p203 = scmp.eq.s32.totalorder %s34, 1
      %p204 = por %p202, %p203
      %p206 = scmp.ne.s32.totalorder %s191, %s205
      %p207 = scmp.eq.s32.totalorder %s34, 0
      %p208 = por %p206, %p207
      %s210 = sadd.s32 %s209, 1
      %p213 = scmp.eq.s32.totalorder %s28, 1
      %p214 = scmp.ne.s32.totalorder %s209, %s211
      %p215 = scmp.eq.s32.totalorder %s28, 0
      %p216 = por %p214, %p215
      %p217 = scmp.ne.s32.totalorder %s209, %s211
      %p218 = scmp.eq.s32.totalorder %s33, 1
      %p219 = por %p217, %p218
      %p220 = scmp.ne.s32.totalorder %s211, %s212
      %p221 = scmp.eq.s32.totalorder %s33, 0
      %p222 = por %p220, %p221
      %p223 = scmp.ne.s32.totalorder %s211, %s212
      %p224 = scmp.eq.s32.totalorder %s34, 1
      %p225 = por %p223, %p224
      %p227 = scmp.ne.s32.totalorder %s212, %s226
      %p228 = scmp.eq.s32.totalorder %s34, 0
      %p229 = por %p227, %p228
      %s231 = sadd.s32 %s230, 1
      %p234 = scmp.eq.s32.totalorder %s28, 1
      %p235 = scmp.ne.s32.totalorder %s230, %s232
      %p236 = scmp.eq.s32.totalorder %s28, 0
      %p237 = por %p235, %p236
      %p238 = scmp.ne.s32.totalorder %s230, %s232
      %p239 = scmp.eq.s32.totalorder %s33, 1
      %p240 = por %p238, %p239
      %p241 = scmp.ne.s32.totalorder %s232, %s233
      %p242 = scmp.eq.s32.totalorder %s33, 0
      %p243 = por %p241, %p242
      %p244 = scmp.ne.s32.totalorder %s232, %s233
      %p245 = scmp.eq.s32.totalorder %s34, 1
      %p246 = por %p244, %p245
      %p248 = scmp.ne.s32.totalorder %s233, %s247
      %p249 = scmp.eq.s32.totalorder %s34, 0
      %p250 = por %p248, %p249
      %s252 = sadd.s32 %s251, 1
      %p255 = scmp.eq.s32.totalorder %s28, 1
      %p256 = scmp.ne.s32.totalorder %s251, %s253
      %p257 = scmp.eq.s32.totalorder %s28, 0
      %p258 = por %p256, %p257
      %p259 = scmp.ne.s32.totalorder %s251, %s253
      %p260 = scmp.eq.s32.totalorder %s33, 1
      %p261 = por %p259, %p260
      %p262 = scmp.ne.s32.totalorder %s253, %s254
      %p263 = scmp.eq.s32.totalorder %s33, 0
      %p264 = por %p262, %p263
      %p265 = scmp.ne.s32.totalorder %s253, %s254
      %p266 = scmp.eq.s32.totalorder %s34, 1
      %p267 = por %p265, %p266
      %p269 = scmp.ne.s32.totalorder %s254, %s268
      %p270 = scmp.eq.s32.totalorder %s34, 0
      %p271 = por %p269, %p270
      %s273 = sadd.s32 %s272, 1
      %p276 = scmp.eq.s32.totalorder %s28, 1
      %p277 = scmp.ne.s32.totalorder %s272, %s274
      %p278 = scmp.eq.s32.totalorder %s28, 0
      %p279 = por %p277, %p278
      %p280 = scmp.ne.s32.totalorder %s272, %s274
      %p281 = scmp.eq.s32.totalorder %s33, 1
      %p282 = por %p280, %p281
      %p283 = scmp.ne.s32.totalorder %s274, %s275
      %p284 = scmp.eq.s32.totalorder %s33, 0
      %p285 = por %p283, %p284
      %p286 = scmp.ne.s32.totalorder %s274, %s275
      %p287 = scmp.eq.s32.totalorder %s34, 1
      %p288 = por %p286, %p287
      %p290 = scmp.ne.s32.totalorder %s275, %s289
      %p291 = scmp.eq.s32.totalorder %s34, 0
      %p292 = por %p290, %p291
      %s294 = sadd.s32 %s293, 1
      %p297 = scmp.eq.s32.totalorder %s28, 1
      %p298 = scmp.ne.s32.totalorder %s293, %s295
      %p299 = scmp.eq.s32.totalorder %s28, 0
      %p300 = por %p298, %p299
      %p301 = scmp.ne.s32.totalorder %s293, %s295
      %p302 = scmp.eq.s32.totalorder %s33, 1
      %p303 = por %p301, %p302
      %p304 = scmp.ne.s32.totalorder %s295, %s296
      %p305 = scmp.eq.s32.totalorder %s33, 0
      %p306 = por %p304, %p305
      %p307 = scmp.ne.s32.totalorder %s295, %s296
      %p308 = scmp.eq.s32.totalorder %s34, 1
      %p309 = por %p307, %p308
      %p311 = scmp.ne.s32.totalorder %s296, %s310
      %p312 = scmp.eq.s32.totalorder %s34, 0
      %p313 = por %p311, %p312
      %s315 = sadd.s32 %s314, 1
      %p318 = scmp.eq.s32.totalorder %s28, 1
      %p319 = scmp.ne.s32.totalorder %s314, %s316
      %p320 = scmp.eq.s32.totalorder %s28, 0
      %p321 = por %p319, %p320
      %p322 = scmp.ne.s32.totalorder %s314, %s316
      %p323 = scmp.eq.s32.totalorder %s33, 1
      %p324 = por %p322, %p323
      %p325 = scmp.ne.s32.totalorder %s316, %s317
      %p326 = scmp.eq.s32.totalorder %s33, 0
      %p327 = por %p325, %p326
      %p328 = scmp.ne.s32.totalorder %s316, %s317
      %p329 = scmp.eq.s32.totalorder %s34, 1
      %p330 = por %p328, %p329
      %p332 = scmp.ne.s32.totalorder %s317, %s331
      %p333 = scmp.eq.s32.totalorder %s34, 0
      %p334 = por %p332, %p333
      %s336 = sadd.s32 %s335, 1
      %p339 = scmp.eq.s32.totalorder %s28, 1
      %p340 = scmp.ne.s32.totalorder %s335, %s337
      %p341 = scmp.eq.s32.totalorder %s28, 0
      %p342 = por %p340, %p341
      %p343 = scmp.ne.s32.totalorder %s335, %s337
      %p344 = scmp.eq.s32.totalorder %s33, 1
      %p345 = por %p343, %p344
      %p346 = scmp.ne.s32.totalorder %s337, %s338
      %p347 = scmp.eq.s32.totalorder %s33, 0
      %p348 = por %p346, %p347
      %p349 = scmp.ne.s32.totalorder %s337, %s338
      %p350 = scmp.eq.s32.totalorder %s34, 1
      %p351 = por %p349, %p350
      %p353 = scmp.ne.s32.totalorder %s338, %s352
      %p354 = scmp.eq.s32.totalorder %s34, 0
      %p355 = por %p353, %p354
      %s357 = sadd.s32 %s356, 1
      %p360 = scmp.eq.s32.totalorder %s28, 1
      %p361 = scmp.ne.s32.totalorder %s356, %s358
      %p362 = scmp.eq.s32.totalorder %s28, 0
      %p363 = por %p361, %p362
      %p364 = scmp.ne.s32.totalorder %s356, %s358
      %p365 = scmp.eq.s32.totalorder %s33, 1
      %p366 = por %p364, %p365
      %p367 = scmp.ne.s32.totalorder %s358, %s359
      %p368 = scmp.eq.s32.totalorder %s33, 0
      %p369 = por %p367, %p368
      %p370 = scmp.ne.s32.totalorder %s358, %s359
      %p371 = scmp.eq.s32.totalorder %s34, 1
      %p372 = por %p370, %p371
      %p374 = scmp.ne.s32.totalorder %s359, %s373
      %p375 = scmp.eq.s32.totalorder %s34, 0
      %p376 = por %p374, %p375
      %s378 = sadd.s32 %s377, 1
      %p381 = scmp.eq.s32.totalorder %s28, 1
      %p382 = scmp.ne.s32.totalorder %s377, %s379
      %p383 = scmp.eq.s32.totalorder %s28, 0
      %p384 = por %p382, %p383
      %p385 = scmp.ne.s32.totalorder %s377, %s379
      %p386 = scmp.eq.s32.totalorder %s33, 1
      %p387 = por %p385, %p386
      %p388 = scmp.ne.s32.totalorder %s379, %s380
      %p389 = scmp.eq.s32.totalorder %s33, 0
      %p390 = por %p388, %p389
      %p391 = scmp.ne.s32.totalorder %s379, %s380
      %p392 = scmp.eq.s32.totalorder %s34, 1
      %p393 = por %p391, %p392
      %p395 = scmp.ne.s32.totalorder %s380, %s394
      %p396 = scmp.eq.s32.totalorder %s34, 0
      %p397 = por %p395, %p396
      %s398 = ssub.s32 %s28, %s35
      %p399 = scmp.eq.s32.totalorder %s398, 0
      %s401 = sadd.s32 %s400, 1
      %s402 = scalar_select %p399, %s400, %s401
      %p405 = pneg %p399
      %p406 = scmp.eq.s32.totalorder %s28, 1
      %p407 = por %p405, %p406
      %p408 = scmp.ne.s32.totalorder %s400, %s403
      %p409 = scmp.eq.s32.totalorder %s28, 0
      %p410 = por %p408, %p409
      %p411 = scmp.ne.s32.totalorder %s400, %s403
      %p412 = scmp.eq.s32.totalorder %s33, 1
      %p413 = por %p411, %p412
      %p414 = scmp.ne.s32.totalorder %s403, %s404
      %p415 = scmp.eq.s32.totalorder %s33, 0
      %p416 = por %p414, %p415
      %p417 = scmp.ne.s32.totalorder %s403, %s404
      %p418 = scmp.eq.s32.totalorder %s34, 1
      %p419 = por %p417, %p418
      %p421 = scmp.ne.s32.totalorder %s404, %s420
      %p422 = scmp.eq.s32.totalorder %s34, 0
      %p423 = por %p421, %p422
      %p424 = scmp.le.s32.totalorder 1, %s28
      %p425 = scmp.lt.s32.totalorder %s28, 3
      %p426 = pnand %p424, %p425
      %p427 = pneg %p426
      // Predicated region
      $region9: #{tpu_custom_call.1} parent=5 // pred_check
        _
      $region10: #{tpu_custom_call.1} parent=5 // pred_check_branch
        %429 = sbr.rel (%p426) target = $region12
      $region11: #{tpu_custom_call.1} parent=5 // pred_region
        %s430 = ssub.s32 %s28, 1
        // Predicated region
        $region13: #{tpu_custom_call.1} parent=11 // pred_check
          %p431 = pneg %p75
        $region14: #{tpu_custom_call.1} parent=11 // pred_check_branch
          %433 = sbr.rel (%p431) target = $region16
        $region15: #{tpu_custom_call.1} parent=11 // pred_region
          _
        $region16: #{tpu_custom_call.1} parent=11 // pred_fallthru
          _
        // Predicated region
        $region17: #{tpu_custom_call.1} parent=11 // pred_check
          %p434 = pneg %p96
        $region18: #{tpu_custom_call.1} parent=11 // pred_check_branch
          %436 = sbr.rel (%p434) target = $region20
        $region19: #{tpu_custom_call.1} parent=11 // pred_region
          _
        $region20: #{tpu_custom_call.1} parent=11 // pred_fallthru
          _
        // Predicated region
        $region21: #{tpu_custom_call.1} parent=11 // pred_check
          %p437 = pneg %p117
        $region22: #{tpu_custom_call.1} parent=11 // pred_check_branch
          %439 = sbr.rel (%p437) target = $region24
        $region23: #{tpu_custom_call.1} parent=11 // pred_region
          _
        $region24: #{tpu_custom_call.1} parent=11 // pred_fallthru
          _
        // Predicated region
        $region25: #{tpu_custom_call.1} parent=11 // pred_check
          %p440 = pneg %p138
        $region26: #{tpu_custom_call.1} parent=11 // pred_check_branch
          %442 = sbr.rel (%p440) target = $region28
        $region27: #{tpu_custom_call.1} parent=11 // pred_region
          _
        $region28: #{tpu_custom_call.1} parent=11 // pred_fallthru
          _
        // Predicated region
        $region29: #{tpu_custom_call.1} parent=11 // pred_check
          %p443 = pneg %p159
        $region30: #{tpu_custom_call.1} parent=11 // pred_check_branch
          %445 = sbr.rel (%p443) target = $region32
        $region31: #{tpu_custom_call.1} parent=11 // pred_region
          _
        $region32: #{tpu_custom_call.1} parent=11 // pred_fallthru
          _
        // Predicated region
        $region33: #{tpu_custom_call.1} parent=11 // pred_check
          %p446 = pneg %p180
        $region34: #{tpu_custom_call.1} parent=11 // pred_check_branch
          %448 = sbr.rel (%p446) target = $region36
        $region35: #{tpu_custom_call.1} parent=11 // pred_region
          _
        $region36: #{tpu_custom_call.1} parent=11 // pred_fallthru
          _
        // Predicated region
        $region37: #{tpu_custom_call.1} parent=11 // pred_check
          %p449 = pneg %p201
        $region38: #{tpu_custom_call.1} parent=11 // pred_check_branch
          %451 = sbr.rel (%p449) target = $region40
        $region39: #{tpu_custom_call.1} parent=11 // pred_region
          _
        $region40: #{tpu_custom_call.1} parent=11 // pred_fallthru
          _
        // Predicated region
        $region41: #{tpu_custom_call.1} parent=11 // pred_check
          %p452 = pneg %p222
        $region42: #{tpu_custom_call.1} parent=11 // pred_check_branch
          %454 = sbr.rel (%p452) target = $region44
        $region43: #{tpu_custom_call.1} parent=11 // pred_region
          _
        $region44: #{tpu_custom_call.1} parent=11 // pred_fallthru
          _
        // Predicated region
        $region45: #{tpu_custom_call.1} parent=11 // pred_check
          %p455 = pneg %p243
        $region46: #{tpu_custom_call.1} parent=11 // pred_check_branch
          %457 = sbr.rel (%p455) target = $region48
        $region47: #{tpu_custom_call.1} parent=11 // pred_region
          %s459 = ssub.s32 8192, 8192
          %460 = vsyncadd [#allocation4], %s459
          %s461 = sshll.u32 [#allocation3], 4
          %s462 = int_to_ptr.vmem [resolvable:$true] %s461
          %467 = dma.hbm_to_vmem [thread:$0]  %s9, 8192, %s462, [#allocation4], 256, 256, 16
        $region48: #{tpu_custom_call.1} parent=11 // pred_fallthru
          _
        // Predicated region
        $region49: #{tpu_custom_call.1} parent=11 // pred_check
          %p468 = pneg %p264
        $region50: #{tpu_custom_call.1} parent=11 // pred_check_branch
          %470 = sbr.rel (%p468) target = $region52
        $region51: #{tpu_custom_call.1} parent=11 // pred_region
          _
        $region52: #{tpu_custom_call.1} parent=11 // pred_fallthru
          _
        // Predicated region
        $region53: #{tpu_custom_call.1} parent=11 // pred_check
          %p471 = pneg %p285
        $region54: #{tpu_custom_call.1} parent=11 // pred_check_branch
          %473 = sbr.rel (%p471) target = $region56
        $region55: #{tpu_custom_call.1} parent=11 // pred_region
          %s475 = ssub.s32 8192, 8192
          %476 = vsyncadd [#allocation7], %s475
          %s477 = sshll.u32 [#allocation6], 4
          %s478 = int_to_ptr.vmem [resolvable:$true] %s477
          %483 = dma.hbm_to_vmem [thread:$0]  %s11, 8192, %s478, [#allocation7], 64, 64, 4
        $region56: #{tpu_custom_call.1} parent=11 // pred_fallthru
          _
        // Predicated region
        $region57: #{tpu_custom_call.1} parent=11 // pred_check
          %p484 = pneg %p306
        $region58: #{tpu_custom_call.1} parent=11 // pred_check_branch
          %486 = sbr.rel (%p484) target = $region60
        $region59: #{tpu_custom_call.1} parent=11 // pred_region
          _
        $region60: #{tpu_custom_call.1} parent=11 // pred_fallthru
          _
        // Predicated region
        $region61: #{tpu_custom_call.1} parent=11 // pred_check
          %p487 = pneg %p327
        $region62: #{tpu_custom_call.1} parent=11 // pred_check_branch
          %489 = sbr.rel (%p487) target = $region64
        $region63: #{tpu_custom_call.1} parent=11 // pred_region
          _
        $region64: #{tpu_custom_call.1} parent=11 // pred_fallthru
          _
        // Predicated region
        $region65: #{tpu_custom_call.1} parent=11 // pred_check
          %p490 = pneg %p348
        $region66: #{tpu_custom_call.1} parent=11 // pred_check_branch
          %492 = sbr.rel (%p490) target = $region68
        $region67: #{tpu_custom_call.1} parent=11 // pred_region
          _
        $region68: #{tpu_custom_call.1} parent=11 // pred_fallthru
          _
        // Predicated region
        $region69: #{tpu_custom_call.1} parent=11 // pred_check
          %p493 = pneg %p369
        $region70: #{tpu_custom_call.1} parent=11 // pred_check_branch
          %495 = sbr.rel (%p493) target = $region72
        $region71: #{tpu_custom_call.1} parent=11 // pred_region
          _
        $region72: #{tpu_custom_call.1} parent=11 // pred_fallthru
          _
        // Predicated region
        $region73: #{tpu_custom_call.1} parent=11 // pred_check
          %p496 = pneg %p390
        $region74: #{tpu_custom_call.1} parent=11 // pred_check_branch
          %498 = sbr.rel (%p496) target = $region76
        $region75: #{tpu_custom_call.1} parent=11 // pred_region
          _
        $region76: #{tpu_custom_call.1} parent=11 // pred_fallthru
          _
      $region12: #{tpu_custom_call.1} parent=5 // pred_fallthru
        _
      %p499 = scmp.lt.s32.totalorder %s28, 2
      // Predicated region
      $region77: #{tpu_custom_call.1} parent=5 // pred_check
        %p500 = pneg %p499
      $region78: #{tpu_custom_call.1} parent=5 // pred_check_branch
        %502 = sbr.rel (%p500) target = $region80
      $region79: #{tpu_custom_call.1} parent=5 // pred_region
        // Predicated region
        $region81: #{tpu_custom_call.1} parent=79 // pred_check
          %p503 = pneg %p48
        $region82: #{tpu_custom_call.1} parent=79 // pred_check_branch
          %505 = sbr.rel (%p503) target = $region84
        $region83: #{tpu_custom_call.1} parent=79 // pred_region
          %p506 = scmp.lt.s32.totalorder %s28, 1
          %s507 = scalar_select %p506, %s28, 1
          %s508 = smul.addr %s507, 8
          %s509 = scalar_lea.vmem %s0, %s508
        $region84: #{tpu_custom_call.1} parent=79 // pred_fallthru
          _
      $region80: #{tpu_custom_call.1} parent=5 // pred_fallthru
        _
      %p510 = scmp.le.s32.totalorder 1, %s28
      %p511 = scmp.lt.s32.totalorder %s28, 3
      %p512 = pnand %p510, %p511
      %p513 = pneg %p512
      // Predicated region
      $region85: #{tpu_custom_call.1} parent=5 // pred_check
        _
      $region86: #{tpu_custom_call.1} parent=5 // pred_check_branch
        %515 = sbr.rel (%p512) target = $region88
      $region87: #{tpu_custom_call.1} parent=5 // pred_region
        %s516 = ssub.s32 %s28, 1
        // Predicated region
        $region89: #{tpu_custom_call.1} parent=87 // pred_check
          %p517 = pneg %p243
        $region90: #{tpu_custom_call.1} parent=87 // pred_check_branch
          %519 = sbr.rel (%p517) target = $region92
        $region91: #{tpu_custom_call.1} parent=87 // pred_region
          %520 = dma.done [#allocation4], 8192
        $region92: #{tpu_custom_call.1} parent=87 // pred_fallthru
          _
        // Predicated region
        $region93: #{tpu_custom_call.1} parent=87 // pred_check
          %p521 = pneg %p285
        $region94: #{tpu_custom_call.1} parent=87 // pred_check_branch
          %523 = sbr.rel (%p521) target = $region96
        $region95: #{tpu_custom_call.1} parent=87 // pred_region
          %524 = dma.done [#allocation7], 8192
        $region96: #{tpu_custom_call.1} parent=87 // pred_fallthru
          _
        %p525 = scmp.lt.s32.totalorder %s33, 1
        %s526 = scalar_select %p525, %s33, 1
        %s527 = smul.addr %s526, 8
        %s528 = scalar_lea.vmem %s0, %s527
        %p529 = pneg %p54
        %p530 = pneg %p51
        %p531 = pneg %p75
        %p532 = pneg %p72
        %p533 = pneg %p96
        %p534 = pneg %p93
        %p535 = pneg %p117
        %p536 = pneg %p114
        %p537 = pneg %p138
        %p538 = pneg %p135
        %p539 = pneg %p159
        %p540 = pneg %p156
        %p541 = pneg %p180
        %p542 = pneg %p177
        %p543 = pneg %p201
        %p544 = pneg %p198
        %p545 = pneg %p222
        %p546 = pneg %p219
        %p547 = pneg %p243
        %p548 = pneg %p240
        %p549 = pneg %p264
        %p550 = pneg %p261
        %p551 = pneg %p285
        %p552 = pneg %p282
        %p553 = pneg %p306
        %p554 = pneg %p303
        %p555 = pneg %p327
        %p556 = pneg %p324
        %p557 = pneg %p348
        %p558 = pneg %p345
        %p559 = pneg %p369
        %p560 = pneg %p366
        %p561 = pneg %p390
        %p562 = pneg %p387
        %p563 = pneg %p416
        %p564 = pneg %p413
        %s565 = sand.u32 %s403, 1
        %s566 = scalar_lea.sflag [#allocation5], %s565
        %s567 = sand.u32 %s403, 1
        %s568 = smul.addr %s567, 8
        %s569 = scalar_lea.vmem [#allocation8], %s568
        %p570 = scmp.lt.s32.totalorder %s33, 1
        %s571 = scalar_select %p570, %s33, 1
        %s572 = smul.addr %s571, 8
        %s573 = scalar_lea.vmem %s0, %s572
        %v575 = vld [vmem:[%s573] sm:$0xff]
        %576 = vst [vmem:[#allocation2] sm:$0xff] %v575
        %v577 = vlaneseq
        %v578 = vshrl.u32 %v577, 7
        %v579 = vlaneseq
        %v580 = vand.u32 %v579, 127
        %vm581 = vcmp.le.s32.totalorder %v580, %v578
        %v582 = vsel %vm581, 0.0, -1e+30
        %v583 = vld [vmem:[%s1] sm:$0xf]
        %v584 = vld [vmem:[%s1 + $0x4] sm:$0xf]
        %v585 = vld [vmem:[%s1 + $0x8] sm:$0xf]
        %v586 = vld [vmem:[%s1 + $0xc] sm:$0xf]
        %v587 = vld [vmem:[%s1 + $0x10] sm:$0xf]
        %v588 = vld [vmem:[%s1 + $0x14] sm:$0xf]
        %v589 = vld [vmem:[%s1 + $0x18] sm:$0xf]
        %v590 = vld [vmem:[%s1 + $0x1c] sm:$0xf]
        %v591 = vld [vmem:[%s1 + $0x20] sm:$0xf]
        %v592 = vld [vmem:[%s1 + $0x24] sm:$0xf]
        %v593 = vld [vmem:[%s1 + $0x28] sm:$0xf]
        %v594 = vld [vmem:[%s1 + $0x2c] sm:$0xf]
        %v595 = vld [vmem:[%s1 + $0x30] sm:$0xf]
        %v596 = vld [vmem:[%s1 + $0x34] sm:$0xf]
        %v597 = vld [vmem:[%s1 + $0x38] sm:$0xf]
        %v598 = vld [vmem:[%s1 + $0x3c] sm:$0xf]
        %v599 = vld [vmem:[%s2] sm:$0x1]
        %v600 = vld [vmem:[%s3] sm:$0x3]
        %v601 = vld [vmem:[%s5] sm:$0x1]
        %v602 = vld [vmem:[%s6] sm:$0x1]
        %v603 = vld [vmem:[%s4] sm:$0x1]
        %v604 = vld [vmem:[#allocation2] sm:$0xff]
        %605 = vadd.xlane.f32.xlu0 %v604
        %v606 = vpop.xlane.xlu0 %605
        %v607 = vrcp.pop 128.0
        %v608 = vmul.f32 %v606, %v607
        %v609 = vsub.f32 %v604, %v608
        %v610 = vmul.f32 %v609, %v609
        %611 = vadd.xlane.f32.xlu0 %v610
        %v612 = vpop.xlane.xlu0 %611
        %v613 = vmul.f32 %v612, %v607
        %v614 = vadd.f32 %v613, 1e-05
        %v615 = vrsqrt.pop %v614
        %v616 = vmul.f32 %v609, %v615
        %v617 = vlaneseq
        %v618 = vshrl.u32 %v617, 7
        %v619 = vsub.s32 0, %v618
        %v620 = vrot.slane %v601, %v619
        %v621 = vmul.f32 %v616, %v620
        %v622 = vlaneseq
        %v623 = vshrl.u32 %v622, 7
        %v624 = vsub.s32 0, %v623
        %v625 = vrot.slane %v602, %v624
        %v626 = vadd.f32 %v621, %v625
        %v627 = vpack.c.bf16 %v626, %v626
        %v644 = vunpack.c.l.b16 %v583
        %v645 = vunpack.c.l.b16 %v584
        %v646 = vunpack.c.l.b16 %v585
        %v647 = vunpack.c.l.b16 %v586
        %v648 = vunpack.c.l.b16 %v587
        %v649 = vunpack.c.l.b16 %v588
        %v650 = vunpack.c.l.b16 %v589
        %v651 = vunpack.c.l.b16 %v590
        %v652 = vunpack.c.l.b16 %v591
        %v653 = vunpack.c.l.b16 %v592
        %v654 = vunpack.c.l.b16 %v593
        %v655 = vunpack.c.l.b16 %v594
        %v656 = vunpack.c.l.b16 %v595
        %v657 = vunpack.c.l.b16 %v596
        %v658 = vunpack.c.l.b16 %v597
        %v659 = vunpack.c.l.b16 %v598
        %v660 = vpack.c.b16 %v645, %v644
        %v661 = vpack.c.b16 %v647, %v646
        %v662 = vpack.c.b16 %v649, %v648
        %v663 = vpack.c.b16 %v651, %v650
        %v664 = vpack.c.b16 %v653, %v652
        %v665 = vpack.c.b16 %v655, %v654
        %v666 = vpack.c.b16 %v657, %v656
        %v667 = vpack.c.b16 %v659, %v658
        %676 = vmatprep.subr.bf16.mxu0 0
        %677 = vmatpush1.bf16.msra.mxu0 %v660
        %678 = vmatprep.subr.bf16.mxu0 0
        %679 = vmatpush1.bf16.msra.mxu0 %v661
        %680 = vmatprep.subr.bf16.mxu0 0
        %681 = vmatpush1.bf16.msra.mxu0 %v662
        %682 = vmatprep.subr.bf16.mxu0 0
        %683 = vmatpush1.bf16.msra.mxu0 %v663
        %684 = vmatprep.subr.bf16.mxu0 0
        %685 = vmatpush1.bf16.msra.mxu0 %v664
        %686 = vmatprep.subr.bf16.mxu0 0
        %687 = vmatpush1.bf16.msra.mxu0 %v665
        %688 = vmatprep.subr.bf16.mxu0 0
        %689 = vmatpush1.bf16.msra.mxu0 %v666
        %690 = vmatprep.subr.bf16.mxu0 0
        %691 = vmatpush1.bf16.msra.mxu0 %v667
        %692 = vmatprep.subr.bf16.mxu0 0
        %693 = vmatpush1.bf16.msra.mxu0 0
        %694 = vmatprep.subr.bf16.mxu0 0
        %695 = vmatpush1.bf16.msra.mxu0 0
        %696 = vmatprep.subr.bf16.mxu0 0
        %697 = vmatpush1.bf16.msra.mxu0 0
        %698 = vmatprep.subr.bf16.mxu0 0
        %699 = vmatpush1.bf16.msra.mxu0 0
        %700 = vmatprep.subr.bf16.mxu0 0
        %701 = vmatpush1.bf16.msra.mxu0 0
        %702 = vmatprep.subr.bf16.mxu0 0
        %703 = vmatpush1.bf16.msra.mxu0 0
        %704 = vmatprep.subr.bf16.mxu0 0
        %705 = vmatpush1.bf16.msra.mxu0 0
        %706 = vmatprep.subr.bf16.mxu0 0
        %707 = vmatpush1.bf16.msra.mxu0 0
        %708 = vmatprep.mubr.bf16.mxu0 0
        %709 = vmatmul.mubr.bf16.gmra.mrb[0].mxu0 %v627
        %v710 = vpop.f32.mrb[0].mxu0
        %v711 = vadd.f32 0.0, %v710
        %v712 = vpop.f32.mrb[0].mxu0
        %v713 = vpop.f32.mrb[0].mxu0
        %v714 = vpop.f32.mrb[0].mxu0
        %715 = vdwg.mxu0
        %716 = vmatprep.subr.bf16.mxu0 0
        %717 = vmatpush1.bf16.xpose.msra.mxu0 %v627
        %718 = vmatprep.subr.bf16.mxu0 0
        %719 = vmatpush1.bf16.xpose.msra.mxu0 0
        %720 = vmatprep.subr.bf16.mxu0 0
        %721 = vmatpush1.bf16.xpose.msra.mxu0 0
        %722 = vmatprep.subr.bf16.mxu0 0
        %723 = vmatpush1.bf16.xpose.msra.mxu0 0
        %724 = vmatprep.subr.bf16.mxu0 0
        %725 = vmatpush1.bf16.xpose.msra.mxu0 0
        %726 = vmatprep.subr.bf16.mxu0 0
        %727 = vmatpush1.bf16.xpose.msra.mxu0 0
        %728 = vmatprep.subr.bf16.mxu0 0
        %729 = vmatpush1.bf16.xpose.msra.mxu0 0
        %730 = vmatprep.subr.bf16.mxu0 0
        %731 = vmatpush1.bf16.xpose.msra.mxu0 0
        %732 = vmatprep.subr.bf16.mxu0 0
        %733 = vmatpush1.bf16.xpose.msra.mxu0 0
        %734 = vmatprep.subr.bf16.mxu0 0
        %735 = vmatpush1.bf16.xpose.msra.mxu0 0
        %736 = vmatprep.subr.bf16.mxu0 0
        %737 = vmatpush1.bf16.xpose.msra.mxu0 0
        %738 = vmatprep.subr.bf16.mxu0 0
        %739 = vmatpush1.bf16.xpose.msra.mxu0 0
        %740 = vmatprep.subr.bf16.mxu0 0
        %741 = vmatpush1.bf16.xpose.msra.mxu0 0
        %742 = vmatprep.subr.bf16.mxu0 0
        %743 = vmatpush1.bf16.xpose.msra.mxu0 0
        %744 = vmatprep.subr.bf16.mxu0 0
        %745 = vmatpush1.bf16.xpose.msra.mxu0 0
        %746 = vmatprep.subr.bf16.mxu0 0
        %747 = vmatpush1.bf16.xpose.msra.mxu0 0
        %748 = vmatprep.mubr.bf16.mxu0 0
        %749 = vmatmul.mubr.bf16.gmra.mrb[0].mxu0 %v599
        %v750 = vpop.f32.mrb[0].mxu0
        %v751 = vadd.f32 0.0, %v750
        %v752 = vpop.f32.mrb[0].mxu0
        %v753 = vpop.f32.mrb[0].mxu0
        %v754 = vpop.f32.mrb[0].mxu0
        %755 = vdwg.mxu0
        %757 = vset.pattern.permute.xlu0 0
        %758 = vperm.xlu0 %757, %v711
        %v759 = vpop.permute.xlu0 %758
        %v761 = vlaneseq
        %v762 = vshrl.u32 %v761, 7
        %v763 = vsub.s32 0, %v762
        %v764 = vrot.slane %v751, %v763
        %v765 = vmul.f32 %v759, %v764
        %v766 = vmul.f32 %v765, 0.088388346
        %v767 = vadd.f32 %v766, %v582
        %vm768 = vcmask 64512
        %v769 = vsel %vm768, %v767, -inf
        %770 = vmax.xlane.f32.xlu0 %v769
        %v771 = vpop.xlane.xlu0 %770
        %v772 = vsub.f32 %v767, %v771
        %v773 = vmul.f32 %v772, 1.442695
        %v774 = vpow.pop %v773
        %v775 = vsel %vm768, %v774, 0.0
        %776 = vadd.xlane.f32.xlu0 %v775
        %v777 = vpop.xlane.xlu0 %776
        %v778 = vrcp.pop %v777
        %779 = vset.pattern.permute.xlu0 2
        %780 = vperm.xlu0 %779, %v711
        %v781 = vpop.permute.xlu0 %780
        %v783 = vlaneseq
        %v784 = vshrl.u32 %v783, 7
        %v785 = vsub.s32 0, %v784
        %v786 = vrot.slane %v600, %v785
        %v787 = vmul.f32 %v781, %v786
        %v788 = vpack.c.bf16 %v787, %v787
        %v789 = vpack.c.bf16 %v774, %v774
        %v791 = vsel %vm768, %v789, 0
        %vm793 = vcmask 1043456
        %v795 = vsel %vm793, %v788, 0
        %797 = vmatprep.subr.bf16.mxu0 0
        %798 = vmatpush1.bf16.msra.mxu0 %v795
        %799 = vmatprep.subr.bf16.mxu0 0
        %800 = vmatpush1.bf16.msra.mxu0 0
        %801 = vmatprep.subr.bf16.mxu0 0
        %802 = vmatpush1.bf16.msra.mxu0 0
        %803 = vmatprep.subr.bf16.mxu0 0
        %804 = vmatpush1.bf16.msra.mxu0 0
        %805 = vmatprep.subr.bf16.mxu0 0
        %806 = vmatpush1.bf16.msra.mxu0 0
        %807 = vmatprep.subr.bf16.mxu0 0
        %808 = vmatpush1.bf16.msra.mxu0 0
        %809 = vmatprep.subr.bf16.mxu0 0
        %810 = vmatpush1.bf16.msra.mxu0 0
        %811 = vmatprep.subr.bf16.mxu0 0
        %812 = vmatpush1.bf16.msra.mxu0 0
        %813 = vmatprep.subr.bf16.mxu0 0
        %814 = vmatpush1.bf16.msra.mxu0 0
        %815 = vmatprep.subr.bf16.mxu0 0
        %816 = vmatpush1.bf16.msra.mxu0 0
        %817 = vmatprep.subr.bf16.mxu0 0
        %818 = vmatpush1.bf16.msra.mxu0 0
        %819 = vmatprep.subr.bf16.mxu0 0
        %820 = vmatpush1.bf16.msra.mxu0 0
        %821 = vmatprep.subr.bf16.mxu0 0
        %822 = vmatpush1.bf16.msra.mxu0 0
        %823 = vmatprep.subr.bf16.mxu0 0
        %824 = vmatpush1.bf16.msra.mxu0 0
        %825 = vmatprep.subr.bf16.mxu0 0
        %826 = vmatpush1.bf16.msra.mxu0 0
        %827 = vmatprep.subr.bf16.mxu0 0
        %828 = vmatpush1.bf16.msra.mxu0 0
        %829 = vmatprep.mubr.bf16.mxu0 0
        %830 = vmatmul.mubr.bf16.gmra.mrb[0].mxu0 %v791
        %v831 = vpop.f32.mrb[0].mxu0
        %v832 = vadd.f32 0.0, %v831
        %v833 = vpop.f32.mrb[0].mxu0
        %v834 = vpop.f32.mrb[0].mxu0
        %v835 = vpop.f32.mrb[0].mxu0
        %836 = vdwg.mxu0
        %v837 = vmul.f32 %v778, %v832
        %v838 = vadd.f32 %v837, 0.0
        %839 = vset.pattern.permute.xlu0 1
        %840 = vperm.xlu0 %839, %v711
        %v841 = vpop.permute.xlu0 %840
        %v843 = vlaneseq
        %v844 = vshrl.u32 %v843, 7
        %v845 = vsub.s32 1, %v844
        %v846 = vrot.slane %v751, %v845
        %v847 = vmul.f32 %v841, %v846
        %v848 = vmul.f32 %v847, 0.088388346
        %v849 = vadd.f32 %v848, %v582
        %v850 = vsel %vm768, %v849, -inf
        %851 = vmax.xlane.f32.xlu0 %v850
        %v852 = vpop.xlane.xlu0 %851
        %v853 = vsub.f32 %v849, %v852
        %v854 = vmul.f32 %v853, 1.442695
        %v855 = vpow.pop %v854
        %v856 = vsel %vm768, %v855, 0.0
        %857 = vadd.xlane.f32.xlu0 %v856
        %v858 = vpop.xlane.xlu0 %857
        %v859 = vrcp.pop %v858
        %860 = vset.pattern.permute.xlu0 3
        %861 = vperm.xlu0 %860, %v711
        %v862 = vpop.permute.xlu0 %861
        %v864 = vlaneseq
        %v865 = vshrl.u32 %v864, 7
        %v866 = vsub.s32 1, %v865
        %v867 = vrot.slane %v600, %v866
        %v868 = vmul.f32 %v862, %v867
        %v869 = vpack.c.bf16 %v868, %v868
        %v870 = vpack.c.bf16 %v855, %v855
        %v872 = vsel %vm768, %v870, 0
        %v875 = vsel %vm793, %v869, 0
        %877 = vmatprep.subr.bf16.mxu0 0
        %878 = vmatpush1.bf16.msra.mxu0 %v875
        %879 = vmatprep.subr.bf16.mxu0 0
        %880 = vmatpush1.bf16.msra.mxu0 0
        %881 = vmatprep.subr.bf16.mxu0 0
        %882 = vmatpush1.bf16.msra.mxu0 0
        %883 = vmatprep.subr.bf16.mxu0 0
        %884 = vmatpush1.bf16.msra.mxu0 0
        %885 = vmatprep.subr.bf16.mxu0 0
        %886 = vmatpush1.bf16.msra.mxu0 0
        %887 = vmatprep.subr.bf16.mxu0 0
        %888 = vmatpush1.bf16.msra.mxu0 0
        %889 = vmatprep.subr.bf16.mxu0 0
        %890 = vmatpush1.bf16.msra.mxu0 0
        %891 = vmatprep.subr.bf16.mxu0 0
        %892 = vmatpush1.bf16.msra.mxu0 0
        %893 = vmatprep.subr.bf16.mxu0 0
        %894 = vmatpush1.bf16.msra.mxu0 0
        %895 = vmatprep.subr.bf16.mxu0 0
        %896 = vmatpush1.bf16.msra.mxu0 0
        %897 = vmatprep.subr.bf16.mxu0 0
        %898 = vmatpush1.bf16.msra.mxu0 0
        %899 = vmatprep.subr.bf16.mxu0 0
        %900 = vmatpush1.bf16.msra.mxu0 0
        %901 = vmatprep.subr.bf16.mxu0 0
        %902 = vmatpush1.bf16.msra.mxu0 0
        %903 = vmatprep.subr.bf16.mxu0 0
        %904 = vmatpush1.bf16.msra.mxu0 0
        %905 = vmatprep.subr.bf16.mxu0 0
        %906 = vmatpush1.bf16.msra.mxu0 0
        %907 = vmatprep.subr.bf16.mxu0 0
        %908 = vmatpush1.bf16.msra.mxu0 0
        %909 = vmatprep.mubr.bf16.mxu0 0
        %910 = vmatmul.mubr.bf16.gmra.mrb[0].mxu0 %v872
        %v911 = vpop.f32.mrb[0].mxu0
        %v912 = vadd.f32 0.0, %v911
        %v913 = vpop.f32.mrb[0].mxu0
        %v914 = vpop.f32.mrb[0].mxu0
        %v915 = vpop.f32.mrb[0].mxu0
        %916 = vdwg.mxu0
        %v917 = vmul.f32 %v859, %v912
        %v918 = vadd.f32 %v838, %v917
        %v919 = vadd.f32 %v604, %v918
        %v920 = vlaneseq
        %v921 = vshrl.u32 %v920, 7
        %v922 = vsub.s32 0, %v921
        %v923 = vrot.slane %v603, %v922
        %v924 = vadd.f32 %v919, %v923
        %925 = vst [vmem:[#allocation2] sm:$0xff] %v924
        %v926 = vld [vmem:[#allocation2] sm:$0xff]
        %v927 = vld [vmem:[%s7] sm:$0x1]
        %v928 = vld [vmem:[%s8] sm:$0x1]
        %929 = vadd.xlane.f32.xlu0 %v926
        %v930 = vpop.xlane.xlu0 %929
        %v931 = vmul.f32 %v930, %v607
        %v932 = vsub.f32 %v926, %v931
        %v933 = vmul.f32 %v932, %v932
        %934 = vadd.xlane.f32.xlu0 %v933
        %v935 = vpop.xlane.xlu0 %934
        %v936 = vmul.f32 %v935, %v607
        %v937 = vadd.f32 %v936, 1e-05
        %v938 = vrsqrt.pop %v937
        %v939 = vmul.f32 %v932, %v938
        %v940 = vlaneseq
        %v941 = vshrl.u32 %v940, 7
        %v942 = vsub.s32 0, %v941
        %v943 = vrot.slane %v927, %v942
        %v944 = vmul.f32 %v939, %v943
        %v945 = vlaneseq
        %v946 = vshrl.u32 %v945, 7
        %v947 = vsub.s32 0, %v946
        %v948 = vrot.slane %v928, %v947
        %v949 = vadd.f32 %v944, %v948
        %v950 = vpack.c.bf16 %v949, %v949
        %v951 = vld [vmem:[#allocation3] sm:$0xff]
        %v952 = vld [vmem:[#allocation3 + $0x8] sm:$0xff]
        %v953 = vld [vmem:[#allocation3 + $0x10] sm:$0xff]
        %v954 = vld [vmem:[#allocation3 + $0x18] sm:$0xff]
        %v955 = vld [vmem:[#allocation3 + $0x20] sm:$0xff]
        %v956 = vld [vmem:[#allocation3 + $0x28] sm:$0xff]
        %v957 = vld [vmem:[#allocation3 + $0x30] sm:$0xff]
        %v958 = vld [vmem:[#allocation3 + $0x38] sm:$0xff]
        %v959 = vld [vmem:[#allocation3 + $0x40] sm:$0xff]
        %v960 = vld [vmem:[#allocation3 + $0x48] sm:$0xff]
        %v961 = vld [vmem:[#allocation3 + $0x50] sm:$0xff]
        %v962 = vld [vmem:[#allocation3 + $0x58] sm:$0xff]
        %v963 = vld [vmem:[#allocation3 + $0x60] sm:$0xff]
        %v964 = vld [vmem:[#allocation3 + $0x68] sm:$0xff]
        %v965 = vld [vmem:[#allocation3 + $0x70] sm:$0xff]
        %v966 = vld [vmem:[#allocation3 + $0x78] sm:$0xff]
        %v967 = vld [vmem:[#allocation3 + $0x80] sm:$0xff]
        %v968 = vld [vmem:[#allocation3 + $0x88] sm:$0xff]
        %v969 = vld [vmem:[#allocation3 + $0x90] sm:$0xff]
        %v970 = vld [vmem:[#allocation3 + $0x98] sm:$0xff]
        %v971 = vld [vmem:[#allocation3 + $0xa0] sm:$0xff]
        %v972 = vld [vmem:[#allocation3 + $0xa8] sm:$0xff]
        %v973 = vld [vmem:[#allocation3 + $0xb0] sm:$0xff]
        %v974 = vld [vmem:[#allocation3 + $0xb8] sm:$0xff]
        %v975 = vld [vmem:[#allocation3 + $0xc0] sm:$0xff]
        %v976 = vld [vmem:[#allocation3 + $0xc8] sm:$0xff]
        %v977 = vld [vmem:[#allocation3 + $0xd0] sm:$0xff]
        %v978 = vld [vmem:[#allocation3 + $0xd8] sm:$0xff]
        %v979 = vld [vmem:[#allocation3 + $0xe0] sm:$0xff]
        %v980 = vld [vmem:[#allocation3 + $0xe8] sm:$0xff]
        %v981 = vld [vmem:[#allocation3 + $0xf0] sm:$0xff]
        %v982 = vld [vmem:[#allocation3 + $0xf8] sm:$0xff]
        %v983 = vld [vmem:[%s10] ss:$2 sm:$0xf]
        %v985 = vlaneseq
        %v986 = vshrl.u32 %v985, 7
        %v987 = vsub.s32 0, %v986
        %v988 = vrot.slane %v983, %v987
        %v989 = vlaneseq
        %v990 = vshrl.u32 %v989, 7
        %v991 = vsub.s32 1, %v990
        %v992 = vrot.slane %v983, %v991
        %v993 = vlaneseq
        %v994 = vshrl.u32 %v993, 7
        %v995 = vsub.s32 2, %v994
        %v996 = vrot.slane %v983, %v995
        %v997 = vlaneseq
        %v998 = vshrl.u32 %v997, 7
        %v999 = vsub.s32 3, %v998
        %v1000 = vrot.slane %v983, %v999
        %v1037 = vunpack.c.l.b16 %v951
        %v1038 = vunpack.c.h.b16 %v951
        %v1039 = vunpack.c.l.b16 %v952
        %v1040 = vunpack.c.h.b16 %v952
        %v1041 = vunpack.c.l.b16 %v953
        %v1042 = vunpack.c.h.b16 %v953
        %v1043 = vunpack.c.l.b16 %v954
        %v1044 = vunpack.c.h.b16 %v954
        %v1045 = vunpack.c.l.b16 %v955
        %v1046 = vunpack.c.h.b16 %v955
        %v1047 = vunpack.c.l.b16 %v956
        %v1048 = vunpack.c.h.b16 %v956
        %v1049 = vunpack.c.l.b16 %v957
        %v1050 = vunpack.c.h.b16 %v957
        %v1051 = vunpack.c.l.b16 %v958
        %v1052 = vunpack.c.h.b16 %v958
        %v1053 = vunpack.c.l.b16 %v959
        %v1054 = vunpack.c.h.b16 %v959
        %v1055 = vunpack.c.l.b16 %v960
        %v1056 = vunpack.c.h.b16 %v960
        %v1057 = vunpack.c.l.b16 %v961
        %v1058 = vunpack.c.h.b16 %v961
        %v1059 = vunpack.c.l.b16 %v962
        %v1060 = vunpack.c.h.b16 %v962
        %v1061 = vunpack.c.l.b16 %v963
        %v1062 = vunpack.c.h.b16 %v963
        %v1063 = vunpack.c.l.b16 %v964
        %v1064 = vunpack.c.h.b16 %v964
        %v1065 = vunpack.c.l.b16 %v965
        %v1066 = vunpack.c.h.b16 %v965
        %v1067 = vunpack.c.l.b16 %v966
        %v1068 = vunpack.c.h.b16 %v966
        %v1069 = vunpack.c.l.b16 %v967
        %v1070 = vunpack.c.h.b16 %v967
        %v1071 = vunpack.c.l.b16 %v968
        %v1072 = vunpack.c.h.b16 %v968
        %v1073 = vunpack.c.l.b16 %v969
        %v1074 = vunpack.c.h.b16 %v969
        %v1075 = vunpack.c.l.b16 %v970
        %v1076 = vunpack.c.h.b16 %v970
        %v1077 = vunpack.c.l.b16 %v971
        %v1078 = vunpack.c.h.b16 %v971
        %v1079 = vunpack.c.l.b16 %v972
        %v1080 = vunpack.c.h.b16 %v972
        %v1081 = vunpack.c.l.b16 %v973
        %v1082 = vunpack.c.h.b16 %v973
        %v1083 = vunpack.c.l.b16 %v974
        %v1084 = vunpack.c.h.b16 %v974
        %v1085 = vunpack.c.l.b16 %v975
        %v1086 = vunpack.c.h.b16 %v975
        %v1087 = vunpack.c.l.b16 %v976
        %v1088 = vunpack.c.h.b16 %v976
        %v1089 = vunpack.c.l.b16 %v977
        %v1090 = vunpack.c.h.b16 %v977
        %v1091 = vunpack.c.l.b16 %v978
        %v1092 = vunpack.c.h.b16 %v978
        %v1093 = vunpack.c.l.b16 %v979
        %v1094 = vunpack.c.h.b16 %v979
        %v1095 = vunpack.c.l.b16 %v980
        %v1096 = vunpack.c.h.b16 %v980
        %v1097 = vunpack.c.l.b16 %v981
        %v1098 = vunpack.c.h.b16 %v981
        %v1099 = vunpack.c.l.b16 %v982
        %v1100 = vunpack.c.h.b16 %v982
        %v1101 = vpack.c.b16 %v1041, %v1037
        %v1102 = vpack.c.b16 %v1042, %v1038
        %v1103 = vpack.c.b16 %v1043, %v1039
        %v1104 = vpack.c.b16 %v1044, %v1040
        %v1105 = vpack.c.b16 %v1049, %v1045
        %v1106 = vpack.c.b16 %v1050, %v1046
        %v1107 = vpack.c.b16 %v1051, %v1047
        %v1108 = vpack.c.b16 %v1052, %v1048
        %v1109 = vpack.c.b16 %v1057, %v1053
        %v1110 = vpack.c.b16 %v1058, %v1054
        %v1111 = vpack.c.b16 %v1059, %v1055
        %v1112 = vpack.c.b16 %v1060, %v1056
        %v1113 = vpack.c.b16 %v1065, %v1061
        %v1114 = vpack.c.b16 %v1066, %v1062
        %v1115 = vpack.c.b16 %v1067, %v1063
        %v1116 = vpack.c.b16 %v1068, %v1064
        %v1117 = vpack.c.b16 %v1073, %v1069
        %v1118 = vpack.c.b16 %v1074, %v1070
        %v1119 = vpack.c.b16 %v1075, %v1071
        %v1120 = vpack.c.b16 %v1076, %v1072
        %v1121 = vpack.c.b16 %v1081, %v1077
        %v1122 = vpack.c.b16 %v1082, %v1078
        %v1123 = vpack.c.b16 %v1083, %v1079
        %v1124 = vpack.c.b16 %v1084, %v1080
        %v1125 = vpack.c.b16 %v1089, %v1085
        %v1126 = vpack.c.b16 %v1090, %v1086
        %v1127 = vpack.c.b16 %v1091, %v1087
        %v1128 = vpack.c.b16 %v1092, %v1088
        %v1129 = vpack.c.b16 %v1097, %v1093
        %v1130 = vpack.c.b16 %v1098, %v1094
        %v1131 = vpack.c.b16 %v1099, %v1095
        %v1132 = vpack.c.b16 %v1100, %v1096
        %1165 = vmatprep.subr.bf16.mxu0 %v1102
        %1166 = vmatpush1.bf16.msra.mxu0 %v1101
        %1167 = vmatprep.subr.bf16.mxu0 %v1106
        %1168 = vmatpush1.bf16.msra.mxu0 %v1105
        %1169 = vmatprep.subr.bf16.mxu0 %v1110
        %1170 = vmatpush1.bf16.msra.mxu0 %v1109
        %1171 = vmatprep.subr.bf16.mxu0 %v1114
        %1172 = vmatpush1.bf16.msra.mxu0 %v1113
        %1173 = vmatprep.subr.bf16.mxu0 %v1118
        %1174 = vmatpush1.bf16.msra.mxu0 %v1117
        %1175 = vmatprep.subr.bf16.mxu0 %v1122
        %1176 = vmatpush1.bf16.msra.mxu0 %v1121
        %1177 = vmatprep.subr.bf16.mxu0 %v1126
        %1178 = vmatpush1.bf16.msra.mxu0 %v1125
        %1179 = vmatprep.subr.bf16.mxu0 %v1130
        %1180 = vmatpush1.bf16.msra.mxu0 %v1129
        %1181 = vmatprep.subr.bf16.mxu0 0
        %1182 = vmatpush1.bf16.msra.mxu0 0
        %1183 = vmatprep.subr.bf16.mxu0 0
        %1184 = vmatpush1.bf16.msra.mxu0 0
        %1185 = vmatprep.subr.bf16.mxu0 0
        %1186 = vmatpush1.bf16.msra.mxu0 0
        %1187 = vmatprep.subr.bf16.mxu0 0
        %1188 = vmatpush1.bf16.msra.mxu0 0
        %1189 = vmatprep.subr.bf16.mxu0 0
        %1190 = vmatpush1.bf16.msra.mxu0 0
        %1191 = vmatprep.subr.bf16.mxu0 0
        %1192 = vmatpush1.bf16.msra.mxu0 0
        %1193 = vmatprep.subr.bf16.mxu0 0
        %1194 = vmatpush1.bf16.msra.mxu0 0
        %1195 = vmatprep.subr.bf16.mxu0 0
        %1196 = vmatpush1.bf16.msra.mxu0 0
        %1197 = vmatprep.mubr.bf16.mxu0 0
        %1198 = vmatmul.mubr.bf16.gmra.mrb[0].mxu0 %v950
        %v1199 = vpop.f32.mrb[0].mxu0
        %v1200 = vadd.f32 %v988, %v1199
        %v1201 = vpop.f32.mrb[0].mxu0
        %v1202 = vadd.f32 %v992, %v1201
        %v1203 = vpop.f32.mrb[0].mxu0
        %v1204 = vpop.f32.mrb[0].mxu0
        %1205 = vdwg.mxu0
        %1206 = vmatprep.subr.bf16.mxu0 %v1104
        %1207 = vmatpush1.bf16.msra.mxu0 %v1103
        %1208 = vmatprep.subr.bf16.mxu0 %v1108
        %1209 = vmatpush1.bf16.msra.mxu0 %v1107
        %1210 = vmatprep.subr.bf16.mxu0 %v1112
        %1211 = vmatpush1.bf16.msra.mxu0 %v1111
        %1212 = vmatprep.subr.bf16.mxu0 %v1116
        %1213 = vmatpush1.bf16.msra.mxu0 %v1115
        %1214 = vmatprep.subr.bf16.mxu0 %v1120
        %1215 = vmatpush1.bf16.msra.mxu0 %v1119
        %1216 = vmatprep.subr.bf16.mxu0 %v1124
        %1217 = vmatpush1.bf16.msra.mxu0 %v1123
        %1218 = vmatprep.subr.bf16.mxu0 %v1128
        %1219 = vmatpush1.bf16.msra.mxu0 %v1127
        %1220 = vmatprep.subr.bf16.mxu0 %v1132
        %1221 = vmatpush1.bf16.msra.mxu0 %v1131
        %1222 = vmatprep.subr.bf16.mxu0 0
        %1223 = vmatpush1.bf16.msra.mxu0 0
        %1224 = vmatprep.subr.bf16.mxu0 0
        %1225 = vmatpush1.bf16.msra.mxu0 0
        %1226 = vmatprep.subr.bf16.mxu0 0
        %1227 = vmatpush1.bf16.msra.mxu0 0
        %1228 = vmatprep.subr.bf16.mxu0 0
        %1229 = vmatpush1.bf16.msra.mxu0 0
        %1230 = vmatprep.subr.bf16.mxu0 0
        %1231 = vmatpush1.bf16.msra.mxu0 0
        %1232 = vmatprep.subr.bf16.mxu0 0
        %1233 = vmatpush1.bf16.msra.mxu0 0
        %1234 = vmatprep.subr.bf16.mxu0 0
        %1235 = vmatpush1.bf16.msra.mxu0 0
        %1236 = vmatprep.subr.bf16.mxu0 0
        %1237 = vmatpush1.bf16.msra.mxu0 0
        %1238 = vmatprep.mubr.bf16.mxu0 0
        %1239 = vmatmul.mubr.bf16.gmra.mrb[0].mxu0 %v950
        %v1240 = vpop.f32.mrb[0].mxu0
        %v1241 = vadd.f32 %v996, %v1240
        %v1242 = vpop.f32.mrb[0].mxu0
        %v1243 = vadd.f32 %v1000, %v1242
        %v1244 = vpop.f32.mrb[0].mxu0
        %v1245 = vpop.f32.mrb[0].mxu0
        %1246 = vdwg.mxu0
        %v1247 = vmax.f32 %v1200, 0.0
        %v1248 = vmax.f32 %v1202, 0.0
        %v1249 = vmax.f32 %v1241, 0.0
        %v1250 = vmax.f32 %v1243, 0.0
        %v1251 = vpack.c.bf16 %v1247, %v1247
        %v1252 = vpack.c.bf16 %v1248, %v1248
        %v1253 = vpack.c.bf16 %v1249, %v1249
        %v1254 = vpack.c.bf16 %v1250, %v1250
        %v1255 = vld [vmem:[#allocation6] sm:$0xf]
        %v1256 = vld [vmem:[#allocation6 + $0x4] sm:$0xf]
        %v1257 = vld [vmem:[#allocation6 + $0x8] sm:$0xf]
        %v1258 = vld [vmem:[#allocation6 + $0xc] sm:$0xf]
        %v1259 = vld [vmem:[#allocation6 + $0x10] sm:$0xf]
        %v1260 = vld [vmem:[#allocation6 + $0x14] sm:$0xf]
        %v1261 = vld [vmem:[#allocation6 + $0x18] sm:$0xf]
        %v1262 = vld [vmem:[#allocation6 + $0x1c] sm:$0xf]
        %v1263 = vld [vmem:[#allocation6 + $0x20] sm:$0xf]
        %v1264 = vld [vmem:[#allocation6 + $0x24] sm:$0xf]
        %v1265 = vld [vmem:[#allocation6 + $0x28] sm:$0xf]
        %v1266 = vld [vmem:[#allocation6 + $0x2c] sm:$0xf]
        %v1267 = vld [vmem:[#allocation6 + $0x30] sm:$0xf]
        %v1268 = vld [vmem:[#allocation6 + $0x34] sm:$0xf]
        %v1269 = vld [vmem:[#allocation6 + $0x38] sm:$0xf]
        %v1270 = vld [vmem:[#allocation6 + $0x3c] sm:$0xf]
        %v1271 = vld [vmem:[#allocation6 + $0x40] sm:$0xf]
        %v1272 = vld [vmem:[#allocation6 + $0x44] sm:$0xf]
        %v1273 = vld [vmem:[#allocation6 + $0x48] sm:$0xf]
        %v1274 = vld [vmem:[#allocation6 + $0x4c] sm:$0xf]
        %v1275 = vld [vmem:[#allocation6 + $0x50] sm:$0xf]
        %v1276 = vld [vmem:[#allocation6 + $0x54] sm:$0xf]
        %v1277 = vld [vmem:[#allocation6 + $0x58] sm:$0xf]
        %v1278 = vld [vmem:[#allocation6 + $0x5c] sm:$0xf]
        %v1279 = vld [vmem:[#allocation6 + $0x60] sm:$0xf]
        %v1280 = vld [vmem:[#allocation6 + $0x64] sm:$0xf]
        %v1281 = vld [vmem:[#allocation6 + $0x68] sm:$0xf]
        %v1282 = vld [vmem:[#allocation6 + $0x6c] sm:$0xf]
        %v1283 = vld [vmem:[#allocation6 + $0x70] sm:$0xf]
        %v1284 = vld [vmem:[#allocation6 + $0x74] sm:$0xf]
        %v1285 = vld [vmem:[#allocation6 + $0x78] sm:$0xf]
        %v1286 = vld [vmem:[#allocation6 + $0x7c] sm:$0xf]
        %v1287 = vld [vmem:[#allocation6 + $0x80] sm:$0xf]
        %v1288 = vld [vmem:[#allocation6 + $0x84] sm:$0xf]
        %v1289 = vld [vmem:[#allocation6 + $0x88] sm:$0xf]
        %v1290 = vld [vmem:[#allocation6 + $0x8c] sm:$0xf]
        %v1291 = vld [vmem:[#allocation6 + $0x90] sm:$0xf]
        %v1292 = vld [vmem:[#allocation6 + $0x94] sm:$0xf]
        %v1293 = vld [vmem:[#allocation6 + $0x98] sm:$0xf]
        %v1294 = vld [vmem:[#allocation6 + $0x9c] sm:$0xf]
        %v1295 = vld [vmem:[#allocation6 + $0xa0] sm:$0xf]
        %v1296 = vld [vmem:[#allocation6 + $0xa4] sm:$0xf]
        %v1297 = vld [vmem:[#allocation6 + $0xa8] sm:$0xf]
        %v1298 = vld [vmem:[#allocation6 + $0xac] sm:$0xf]
        %v1299 = vld [vmem:[#allocation6 + $0xb0] sm:$0xf]
        %v1300 = vld [vmem:[#allocation6 + $0xb4] sm:$0xf]
        %v1301 = vld [vmem:[#allocation6 + $0xb8] sm:$0xf]
        %v1302 = vld [vmem:[#allocation6 + $0xbc] sm:$0xf]
        %v1303 = vld [vmem:[#allocation6 + $0xc0] sm:$0xf]
        %v1304 = vld [vmem:[#allocation6 + $0xc4] sm:$0xf]
        %v1305 = vld [vmem:[#allocation6 + $0xc8] sm:$0xf]
        %v1306 = vld [vmem:[#allocation6 + $0xcc] sm:$0xf]
        %v1307 = vld [vmem:[#allocation6 + $0xd0] sm:$0xf]
        %v1308 = vld [vmem:[#allocation6 + $0xd4] sm:$0xf]
        %v1309 = vld [vmem:[#allocation6 + $0xd8] sm:$0xf]
        %v1310 = vld [vmem:[#allocation6 + $0xdc] sm:$0xf]
        %v1311 = vld [vmem:[#allocation6 + $0xe0] sm:$0xf]
        %v1312 = vld [vmem:[#allocation6 + $0xe4] sm:$0xf]
        %v1313 = vld [vmem:[#allocation6 + $0xe8] sm:$0xf]
        %v1314 = vld [vmem:[#allocation6 + $0xec] sm:$0xf]
        %v1315 = vld [vmem:[#allocation6 + $0xf0] sm:$0xf]
        %v1316 = vld [vmem:[#allocation6 + $0xf4] sm:$0xf]
        %v1317 = vld [vmem:[#allocation6 + $0xf8] sm:$0xf]
        %v1318 = vld [vmem:[#allocation6 + $0xfc] sm:$0xf]
        %v1383 = vunpack.c.l.b16 %v1255
        %v1384 = vunpack.c.l.b16 %v1256
        %v1385 = vunpack.c.l.b16 %v1257
        %v1386 = vunpack.c.l.b16 %v1258
        %v1387 = vunpack.c.l.b16 %v1259
        %v1388 = vunpack.c.l.b16 %v1260
        %v1389 = vunpack.c.l.b16 %v1261
        %v1390 = vunpack.c.l.b16 %v1262
        %v1391 = vunpack.c.l.b16 %v1263
        %v1392 = vunpack.c.l.b16 %v1264
        %v1393 = vunpack.c.l.b16 %v1265
        %v1394 = vunpack.c.l.b16 %v1266
        %v1395 = vunpack.c.l.b16 %v1267
        %v1396 = vunpack.c.l.b16 %v1268
        %v1397 = vunpack.c.l.b16 %v1269
        %v1398 = vunpack.c.l.b16 %v1270
        %v1399 = vunpack.c.l.b16 %v1271
        %v1400 = vunpack.c.l.b16 %v1272
        %v1401 = vunpack.c.l.b16 %v1273
        %v1402 = vunpack.c.l.b16 %v1274
        %v1403 = vunpack.c.l.b16 %v1275
        %v1404 = vunpack.c.l.b16 %v1276
        %v1405 = vunpack.c.l.b16 %v1277
        %v1406 = vunpack.c.l.b16 %v1278
        %v1407 = vunpack.c.l.b16 %v1279
        %v1408 = vunpack.c.l.b16 %v1280
        %v1409 = vunpack.c.l.b16 %v1281
        %v1410 = vunpack.c.l.b16 %v1282
        %v1411 = vunpack.c.l.b16 %v1283
        %v1412 = vunpack.c.l.b16 %v1284
        %v1413 = vunpack.c.l.b16 %v1285
        %v1414 = vunpack.c.l.b16 %v1286
        %v1415 = vunpack.c.l.b16 %v1287
        %v1416 = vunpack.c.l.b16 %v1288
        %v1417 = vunpack.c.l.b16 %v1289
        %v1418 = vunpack.c.l.b16 %v1290
        %v1419 = vunpack.c.l.b16 %v1291
        %v1420 = vunpack.c.l.b16 %v1292
        %v1421 = vunpack.c.l.b16 %v1293
        %v1422 = vunpack.c.l.b16 %v1294
        %v1423 = vunpack.c.l.b16 %v1295
        %v1424 = vunpack.c.l.b16 %v1296
        %v1425 = vunpack.c.l.b16 %v1297
        %v1426 = vunpack.c.l.b16 %v1298
        %v1427 = vunpack.c.l.b16 %v1299
        %v1428 = vunpack.c.l.b16 %v1300
        %v1429 = vunpack.c.l.b16 %v1301
        %v1430 = vunpack.c.l.b16 %v1302
        %v1431 = vunpack.c.l.b16 %v1303
        %v1432 = vunpack.c.l.b16 %v1304
        %v1433 = vunpack.c.l.b16 %v1305
        %v1434 = vunpack.c.l.b16 %v1306
        %v1435 = vunpack.c.l.b16 %v1307
        %v1436 = vunpack.c.l.b16 %v1308
        %v1437 = vunpack.c.l.b16 %v1309
        %v1438 = vunpack.c.l.b16 %v1310
        %v1439 = vunpack.c.l.b16 %v1311
        %v1440 = vunpack.c.l.b16 %v1312
        %v1441 = vunpack.c.l.b16 %v1313
        %v1442 = vunpack.c.l.b16 %v1314
        %v1443 = vunpack.c.l.b16 %v1315
        %v1444 = vunpack.c.l.b16 %v1316
        %v1445 = vunpack.c.l.b16 %v1317
        %v1446 = vunpack.c.l.b16 %v1318
        %v1447 = vpack.c.b16 %v1384, %v1383
        %v1448 = vpack.c.b16 %v1386, %v1385
        %v1449 = vpack.c.b16 %v1388, %v1387
        %v1450 = vpack.c.b16 %v1390, %v1389
        %v1451 = vpack.c.b16 %v1392, %v1391
        %v1452 = vpack.c.b16 %v1394, %v1393
        %v1453 = vpack.c.b16 %v1396, %v1395
        %v1454 = vpack.c.b16 %v1398, %v1397
        %v1455 = vpack.c.b16 %v1400, %v1399
        %v1456 = vpack.c.b16 %v1402, %v1401
        %v1457 = vpack.c.b16 %v1404, %v1403
        %v1458 = vpack.c.b16 %v1406, %v1405
        %v1459 = vpack.c.b16 %v1408, %v1407
        %v1460 = vpack.c.b16 %v1410, %v1409
        %v1461 = vpack.c.b16 %v1412, %v1411
        %v1462 = vpack.c.b16 %v1414, %v1413
        %v1463 = vpack.c.b16 %v1416, %v1415
        %v1464 = vpack.c.b16 %v1418, %v1417
        %v1465 = vpack.c.b16 %v1420, %v1419
        %v1466 = vpack.c.b16 %v1422, %v1421
        %v1467 = vpack.c.b16 %v1424, %v1423
        %v1468 = vpack.c.b16 %v1426, %v1425
        %v1469 = vpack.c.b16 %v1428, %v1427
        %v1470 = vpack.c.b16 %v1430, %v1429
        %v1471 = vpack.c.b16 %v1432, %v1431
        %v1472 = vpack.c.b16 %v1434, %v1433
        %v1473 = vpack.c.b16 %v1436, %v1435
        %v1474 = vpack.c.b16 %v1438, %v1437
        %v1475 = vpack.c.b16 %v1440, %v1439
        %v1476 = vpack.c.b16 %v1442, %v1441
        %v1477 = vpack.c.b16 %v1444, %v1443
        %v1478 = vpack.c.b16 %v1446, %v1445
        %1511 = vmatprep.subr.bf16.mxu0 0
        %1512 = vmatpush1.bf16.msra.mxu0 %v1447
        %1513 = vmatprep.subr.bf16.mxu0 0
        %1514 = vmatpush1.bf16.msra.mxu0 %v1448
        %1515 = vmatprep.subr.bf16.mxu0 0
        %1516 = vmatpush1.bf16.msra.mxu0 %v1449
        %1517 = vmatprep.subr.bf16.mxu0 0
        %1518 = vmatpush1.bf16.msra.mxu0 %v1450
        %1519 = vmatprep.subr.bf16.mxu0 0
        %1520 = vmatpush1.bf16.msra.mxu0 %v1451
        %1521 = vmatprep.subr.bf16.mxu0 0
        %1522 = vmatpush1.bf16.msra.mxu0 %v1452
        %1523 = vmatprep.subr.bf16.mxu0 0
        %1524 = vmatpush1.bf16.msra.mxu0 %v1453
        %1525 = vmatprep.subr.bf16.mxu0 0
        %1526 = vmatpush1.bf16.msra.mxu0 %v1454
        %1527 = vmatprep.subr.bf16.mxu0 0
        %1528 = vmatpush1.bf16.msra.mxu0 %v1455
        %1529 = vmatprep.subr.bf16.mxu0 0
        %1530 = vmatpush1.bf16.msra.mxu0 %v1456
        %1531 = vmatprep.subr.bf16.mxu0 0
        %1532 = vmatpush1.bf16.msra.mxu0 %v1457
        %1533 = vmatprep.subr.bf16.mxu0 0
        %1534 = vmatpush1.bf16.msra.mxu0 %v1458
        %1535 = vmatprep.subr.bf16.mxu0 0
        %1536 = vmatpush1.bf16.msra.mxu0 %v1459
        %1537 = vmatprep.subr.bf16.mxu0 0
        %1538 = vmatpush1.bf16.msra.mxu0 %v1460
        %1539 = vmatprep.subr.bf16.mxu0 0
        %1540 = vmatpush1.bf16.msra.mxu0 %v1461
        %1541 = vmatprep.subr.bf16.mxu0 0
        %1542 = vmatpush1.bf16.msra.mxu0 %v1462
        %1543 = vmatprep.mubr.bf16.mxu0 %v1252
        %1544 = vmatmul.mubr.bf16.gmra.mrb[0].mxu0 %v1251
        %v1545 = vpop.f32.mrb[0].mxu0
        %v1546 = vadd.f32 0.0, %v1545
        %v1547 = vpop.f32.mrb[0].mxu0
        %v1548 = vpop.f32.mrb[0].mxu0
        %v1549 = vpop.f32.mrb[0].mxu0
        %1550 = vdwg.mxu0
        %1551 = vmatprep.subr.bf16.mxu0 0
        %1552 = vmatpush1.bf16.msra.mxu0 %v1463
        %1553 = vmatprep.subr.bf16.mxu0 0
        %1554 = vmatpush1.bf16.msra.mxu0 %v1464
        %1555 = vmatprep.subr.bf16.mxu0 0
        %1556 = vmatpush1.bf16.msra.mxu0 %v1465
        %1557 = vmatprep.subr.bf16.mxu0 0
        %1558 = vmatpush1.bf16.msra.mxu0 %v1466
        %1559 = vmatprep.subr.bf16.mxu0 0
        %1560 = vmatpush1.bf16.msra.mxu0 %v1467
        %1561 = vmatprep.subr.bf16.mxu0 0
        %1562 = vmatpush1.bf16.msra.mxu0 %v1468
        %1563 = vmatprep.subr.bf16.mxu0 0
        %1564 = vmatpush1.bf16.msra.mxu0 %v1469
        %1565 = vmatprep.subr.bf16.mxu0 0
        %1566 = vmatpush1.bf16.msra.mxu0 %v1470
        %1567 = vmatprep.subr.bf16.mxu0 0
        %1568 = vmatpush1.bf16.msra.mxu0 %v1471
        %1569 = vmatprep.subr.bf16.mxu0 0
        %1570 = vmatpush1.bf16.msra.mxu0 %v1472
        %1571 = vmatprep.subr.bf16.mxu0 0
        %1572 = vmatpush1.bf16.msra.mxu0 %v1473
        %1573 = vmatprep.subr.bf16.mxu0 0
        %1574 = vmatpush1.bf16.msra.mxu0 %v1474
        %1575 = vmatprep.subr.bf16.mxu0 0
        %1576 = vmatpush1.bf16.msra.mxu0 %v1475
        %1577 = vmatprep.subr.bf16.mxu0 0
        %1578 = vmatpush1.bf16.msra.mxu0 %v1476
        %1579 = vmatprep.subr.bf16.mxu0 0
        %1580 = vmatpush1.bf16.msra.mxu0 %v1477
        %1581 = vmatprep.subr.bf16.mxu0 0
        %1582 = vmatpush1.bf16.msra.mxu0 %v1478
        %1583 = vmatprep.mubr.bf16.mxu0 %v1254
        %1584 = vmatmul.mubr.bf16.gmra.mrb[0].mxu0 %v1253
        %v1585 = vpop.f32.mrb[0].mxu0
        %v1586 = vadd.f32 %v1546, %v1585
        %v1587 = vpop.f32.mrb[0].mxu0
        %v1588 = vpop.f32.mrb[0].mxu0
        %v1589 = vpop.f32.mrb[0].mxu0
        %1590 = vdwg.mxu0
        %v1591 = vadd.f32 %v926, %v1586
        %v1592 = vld [vmem:[%s12] sm:$0x1]
        %v1593 = vlaneseq
        %v1594 = vshrl.u32 %v1593, 7
        %v1595 = vsub.s32 0, %v1594
        %v1596 = vrot.slane %v1592, %v1595
        %v1597 = vadd.f32 %v1591, %v1596
        %1598 = vst [vmem:[#allocation2] sm:$0xff] %v1597
        %s1599 = scalar_lea.vmem %s1, 64
        %v1600 = vld [vmem:[%s1599] sm:$0xf]
        %v1601 = vld [vmem:[%s1599 + $0x4] sm:$0xf]
        %v1602 = vld [vmem:[%s1599 + $0x8] sm:$0xf]
        %v1603 = vld [vmem:[%s1599 + $0xc] sm:$0xf]
        %v1604 = vld [vmem:[%s1599 + $0x10] sm:$0xf]
        %v1605 = vld [vmem:[%s1599 + $0x14] sm:$0xf]
        %v1606 = vld [vmem:[%s1599 + $0x18] sm:$0xf]
        %v1607 = vld [vmem:[%s1599 + $0x1c] sm:$0xf]
        %v1608 = vld [vmem:[%s1599 + $0x20] sm:$0xf]
        %v1609 = vld [vmem:[%s1599 + $0x24] sm:$0xf]
        %v1610 = vld [vmem:[%s1599 + $0x28] sm:$0xf]
        %v1611 = vld [vmem:[%s1599 + $0x2c] sm:$0xf]
        %v1612 = vld [vmem:[%s1599 + $0x30] sm:$0xf]
        %v1613 = vld [vmem:[%s1599 + $0x34] sm:$0xf]
        %v1614 = vld [vmem:[%s1599 + $0x38] sm:$0xf]
        %v1615 = vld [vmem:[%s1599 + $0x3c] sm:$0xf]
        %s1616 = scalar_lea.vmem %s2, 1
        %v1617 = vld [vmem:[%s1616] sm:$0x1]
        %s1618 = scalar_lea.vmem %s3, 2
        %v1619 = vld [vmem:[%s1618] sm:$0x3]
        %v1620 = vld [vmem:[%s5 + $0x1] sm:$0x1]
        %v1621 = vld [vmem:[%s6 + $0x1] sm:$0x1]
        %v1622 = vld [vmem:[%s4 + $0x1] sm:$0x1]
        %v1623 = vld [vmem:[#allocation2] sm:$0xff]
        %1624 = vadd.xlane.f32.xlu0 %v1623
        %v1625 = vpop.xlane.xlu0 %1624
        %v1626 = vmul.f32 %v1625, %v607
        %v1627 = vsub.f32 %v1623, %v1626
        %v1628 = vmul.f32 %v1627, %v1627
        %1629 = vadd.xlane.f32.xlu0 %v1628
        %v1630 = vpop.xlane.xlu0 %1629
        %v1631 = vmul.f32 %v1630, %v607
        %v1632 = vadd.f32 %v1631, 1e-05
        %v1633 = vrsqrt.pop %v1632
        %v1634 = vmul.f32 %v1627, %v1633
        %v1635 = vlaneseq
        %v1636 = vshrl.u32 %v1635, 7
        %v1637 = vsub.s32 0, %v1636
        %v1638 = vrot.slane %v1620, %v1637
        %v1639 = vmul.f32 %v1634, %v1638
        %v1640 = vlaneseq
        %v1641 = vshrl.u32 %v1640, 7
        %v1642 = vsub.s32 0, %v1641
        %v1643 = vrot.slane %v1621, %v1642
        %v1644 = vadd.f32 %v1639, %v1643
        %v1645 = vpack.c.bf16 %v1644, %v1644
        %v1662 = vunpack.c.l.b16 %v1600
        %v1663 = vunpack.c.l.b16 %v1601
        %v1664 = vunpack.c.l.b16 %v1602
        %v1665 = vunpack.c.l.b16 %v1603
        %v1666 = vunpack.c.l.b16 %v1604
        %v1667 = vunpack.c.l.b16 %v1605
        %v1668 = vunpack.c.l.b16 %v1606
        %v1669 = vunpack.c.l.b16 %v1607
        %v1670 = vunpack.c.l.b16 %v1608
        %v1671 = vunpack.c.l.b16 %v1609
        %v1672 = vunpack.c.l.b16 %v1610
        %v1673 = vunpack.c.l.b16 %v1611
        %v1674 = vunpack.c.l.b16 %v1612
        %v1675 = vunpack.c.l.b16 %v1613
        %v1676 = vunpack.c.l.b16 %v1614
        %v1677 = vunpack.c.l.b16 %v1615
        %v1678 = vpack.c.b16 %v1663, %v1662
        %v1679 = vpack.c.b16 %v1665, %v1664
        %v1680 = vpack.c.b16 %v1667, %v1666
        %v1681 = vpack.c.b16 %v1669, %v1668
        %v1682 = vpack.c.b16 %v1671, %v1670
        %v1683 = vpack.c.b16 %v1673, %v1672
        %v1684 = vpack.c.b16 %v1675, %v1674
        %v1685 = vpack.c.b16 %v1677, %v1676
        %1694 = vmatprep.subr.bf16.mxu0 0
        %1695 = vmatpush1.bf16.msra.mxu0 %v1678
        %1696 = vmatprep.subr.bf16.mxu0 0
        %1697 = vmatpush1.bf16.msra.mxu0 %v1679
        %1698 = vmatprep.subr.bf16.mxu0 0
        %1699 = vmatpush1.bf16.msra.mxu0 %v1680
        %1700 = vmatprep.subr.bf16.mxu0 0
        %1701 = vmatpush1.bf16.msra.mxu0 %v1681
        %1702 = vmatprep.subr.bf16.mxu0 0
        %1703 = vmatpush1.bf16.msra.mxu0 %v1682
        %1704 = vmatprep.subr.bf16.mxu0 0
        %1705 = vmatpush1.bf16.msra.mxu0 %v1683
        %1706 = vmatprep.subr.bf16.mxu0 0
        %1707 = vmatpush1.bf16.msra.mxu0 %v1684
        %1708 = vmatprep.subr.bf16.mxu0 0
        %1709 = vmatpush1.bf16.msra.mxu0 %v1685
        %1710 = vmatprep.subr.bf16.mxu0 0
        %1711 = vmatpush1.bf16.msra.mxu0 0
        %1712 = vmatprep.subr.bf16.mxu0 0
        %1713 = vmatpush1.bf16.msra.mxu0 0
        %1714 = vmatprep.subr.bf16.mxu0 0
        %1715 = vmatpush1.bf16.msra.mxu0 0
        %1716 = vmatprep.subr.bf16.mxu0 0
        %1717 = vmatpush1.bf16.msra.mxu0 0
        %1718 = vmatprep.subr.bf16.mxu0 0
        %1719 = vmatpush1.bf16.msra.mxu0 0
        %1720 = vmatprep.subr.bf16.mxu0 0
        %1721 = vmatpush1.bf16.msra.mxu0 0
        %1722 = vmatprep.subr.bf16.mxu0 0
        %1723 = vmatpush1.bf16.msra.mxu0 0
        %1724 = vmatprep.subr.bf16.mxu0 0
        %1725 = vmatpush1.bf16.msra.mxu0 0
        %1726 = vmatprep.mubr.bf16.mxu0 0
        %1727 = vmatmul.mubr.bf16.gmra.mrb[0].mxu0 %v1645
        %v1728 = vpop.f32.mrb[0].mxu0
        %v1729 = vadd.f32 0.0, %v1728
        %v1730 = vpop.f32.mrb[0].mxu0
        %v1731 = vpop.f32.mrb[0].mxu0
        %v1732 = vpop.f32.mrb[0].mxu0
        %1733 = vdwg.mxu0
        %1734 = vmatprep.subr.bf16.mxu0 0
        %1735 = vmatpush1.bf16.xpose.msra.mxu0 %v1645
        %1736 = vmatprep.subr.bf16.mxu0 0
        %1737 = vmatpush1.bf16.xpose.msra.mxu0 0
        %1738 = vmatprep.subr.bf16.mxu0 0
        %1739 = vmatpush1.bf16.xpose.msra.mxu0 0
        %1740 = vmatprep.subr.bf16.mxu0 0
        %1741 = vmatpush1.bf16.xpose.msra.mxu0 0
        %1742 = vmatprep.subr.bf16.mxu0 0
        %1743 = vmatpush1.bf16.xpose.msra.mxu0 0
        %1744 = vmatprep.subr.bf16.mxu0 0
        %1745 = vmatpush1.bf16.xpose.msra.mxu0 0
        %1746 = vmatprep.subr.bf16.mxu0 0
        %1747 = vmatpush1.bf16.xpose.msra.mxu0 0
        %1748 = vmatprep.subr.bf16.mxu0 0
        %1749 = vmatpush1.bf16.xpose.msra.mxu0 0
        %1750 = vmatprep.subr.bf16.mxu0 0
        %1751 = vmatpush1.bf16.xpose.msra.mxu0 0
        %1752 = vmatprep.subr.bf16.mxu0 0
        %1753 = vmatpush1.bf16.xpose.msra.mxu0 0
        %1754 = vmatprep.subr.bf16.mxu0 0
        %1755 = vmatpush1.bf16.xpose.msra.mxu0 0
        %1756 = vmatprep.subr.bf16.mxu0 0
        %1757 = vmatpush1.bf16.xpose.msra.mxu0 0
        %1758 = vmatprep.subr.bf16.mxu0 0
        %1759 = vmatpush1.bf16.xpose.msra.mxu0 0
        %1760 = vmatprep.subr.bf16.mxu0 0
        %1761 = vmatpush1.bf16.xpose.msra.mxu0 0
        %1762 = vmatprep.subr.bf16.mxu0 0
        %1763 = vmatpush1.bf16.xpose.msra.mxu0 0
        %1764 = vmatprep.subr.bf16.mxu0 0
        %1765 = vmatpush1.bf16.xpose.msra.mxu0 0
        %1766 = vmatprep.mubr.bf16.mxu0 0
        %1767 = vmatmul.mubr.bf16.gmra.mrb[0].mxu0 %v1617
        %v1768 = vpop.f32.mrb[0].mxu0
        %v1769 = vadd.f32 0.0, %v1768
        %v1770 = vpop.f32.mrb[0].mxu0
        %v1771 = vpop.f32.mrb[0].mxu0
        %v1772 = vpop.f32.mrb[0].mxu0
        %1773 = vdwg.mxu0
        %1775 = vset.pattern.permute.xlu0 0
        %1776 = vperm.xlu0 %1775, %v1729
        %v1777 = vpop.permute.xlu0 %1776
        %v1779 = vlaneseq
        %v1780 = vshrl.u32 %v1779, 7
        %v1781 = vsub.s32 0, %v1780
        %v1782 = vrot.slane %v1769, %v1781
        %v1783 = vmul.f32 %v1777, %v1782
        %v1784 = vmul.f32 %v1783, 0.088388346
        %v1785 = vadd.f32 %v1784, %v582
        %v1786 = vsel %vm768, %v1785, -inf
        %1787 = vmax.xlane.f32.xlu0 %v1786
        %v1788 = vpop.xlane.xlu0 %1787
        %v1789 = vsub.f32 %v1785, %v1788
        %v1790 = vmul.f32 %v1789, 1.442695
        %v1791 = vpow.pop %v1790
        %v1792 = vsel %vm768, %v1791, 0.0
        %1793 = vadd.xlane.f32.xlu0 %v1792
        %v1794 = vpop.xlane.xlu0 %1793
        %v1795 = vrcp.pop %v1794
        %1796 = vset.pattern.permute.xlu0 2
        %1797 = vperm.xlu0 %1796, %v1729
        %v1798 = vpop.permute.xlu0 %1797
        %v1800 = vlaneseq
        %v1801 = vshrl.u32 %v1800, 7
        %v1802 = vsub.s32 0, %v1801
        %v1803 = vrot.slane %v1619, %v1802
        %v1804 = vmul.f32 %v1798, %v1803
        %v1805 = vpack.c.bf16 %v1804, %v1804
        %v1806 = vpack.c.bf16 %v1791, %v1791
        %v1808 = vsel %vm768, %v1806, 0
        %v1811 = vsel %vm793, %v1805, 0
        %1813 = vmatprep.subr.bf16.mxu0 0
        %1814 = vmatpush1.bf16.msra.mxu0 %v1811
        %1815 = vmatprep.subr.bf16.mxu0 0
        %1816 = vmatpush1.bf16.msra.mxu0 0
        %1817 = vmatprep.subr.bf16.mxu0 0
        %1818 = vmatpush1.bf16.msra.mxu0 0
        %1819 = vmatprep.subr.bf16.mxu0 0
        %1820 = vmatpush1.bf16.msra.mxu0 0
        %1821 = vmatprep.subr.bf16.mxu0 0
        %1822 = vmatpush1.bf16.msra.mxu0 0
        %1823 = vmatprep.subr.bf16.mxu0 0
        %1824 = vmatpush1.bf16.msra.mxu0 0
        %1825 = vmatprep.subr.bf16.mxu0 0
        %1826 = vmatpush1.bf16.msra.mxu0 0
        %1827 = vmatprep.subr.bf16.mxu0 0
        %1828 = vmatpush1.bf16.msra.mxu0 0
        %1829 = vmatprep.subr.bf16.mxu0 0
        %1830 = vmatpush1.bf16.msra.mxu0 0
        %1831 = vmatprep.subr.bf16.mxu0 0
        %1832 = vmatpush1.bf16.msra.mxu0 0
        %1833 = vmatprep.subr.bf16.mxu0 0
        %1834 = vmatpush1.bf16.msra.mxu0 0
        %1835 = vmatprep.subr.bf16.mxu0 0
        %1836 = vmatpush1.bf16.msra.mxu0 0
        %1837 = vmatprep.subr.bf16.mxu0 0
        %1838 = vmatpush1.bf16.msra.mxu0 0
        %1839 = vmatprep.subr.bf16.mxu0 0
        %1840 = vmatpush1.bf16.msra.mxu0 0
        %1841 = vmatprep.subr.bf16.mxu0 0
        %1842 = vmatpush1.bf16.msra.mxu0 0
        %1843 = vmatprep.subr.bf16.mxu0 0
        %1844 = vmatpush1.bf16.msra.mxu0 0
        %1845 = vmatprep.mubr.bf16.mxu0 0
        %1846 = vmatmul.mubr.bf16.gmra.mrb[0].mxu0 %v1808
        %v1847 = vpop.f32.mrb[0].mxu0
        %v1848 = vadd.f32 0.0, %v1847
        %v1849 = vpop.f32.mrb[0].mxu0
        %v1850 = vpop.f32.mrb[0].mxu0
        %v1851 = vpop.f32.mrb[0].mxu0
        %1852 = vdwg.mxu0
        %v1853 = vmul.f32 %v1795, %v1848
        %v1854 = vadd.f32 %v1853, 0.0
        %1855 = vset.pattern.permute.xlu0 1
        %1856 = vperm.xlu0 %1855, %v1729
        %v1857 = vpop.permute.xlu0 %1856
        %v1859 = vlaneseq
        %v1860 = vshrl.u32 %v1859, 7
        %v1861 = vsub.s32 1, %v1860
        %v1862 = vrot.slane %v1769, %v1861
        %v1863 = vmul.f32 %v1857, %v1862
        %v1864 = vmul.f32 %v1863, 0.088388346
        %v1865 = vadd.f32 %v1864, %v582
        %v1866 = vsel %vm768, %v1865, -inf
        %1867 = vmax.xlane.f32.xlu0 %v1866
        %v1868 = vpop.xlane.xlu0 %1867
        %v1869 = vsub.f32 %v1865, %v1868
        %v1870 = vmul.f32 %v1869, 1.442695
        %v1871 = vpow.pop %v1870
        %v1872 = vsel %vm768, %v1871, 0.0
        %1873 = vadd.xlane.f32.xlu0 %v1872
        %v1874 = vpop.xlane.xlu0 %1873
        %v1875 = vrcp.pop %v1874
        %1876 = vset.pattern.permute.xlu0 3
        %1877 = vperm.xlu0 %1876, %v1729
        %v1878 = vpop.permute.xlu0 %1877
        %v1880 = vlaneseq
        %v1881 = vshrl.u32 %v1880, 7
        %v1882 = vsub.s32 1, %v1881
        %v1883 = vrot.slane %v1619, %v1882
        %v1884 = vmul.f32 %v1878, %v1883
        %v1885 = vpack.c.bf16 %v1884, %v1884
        %v1886 = vpack.c.bf16 %v1871, %v1871
        %v1888 = vsel %vm768, %v1886, 0
        %v1891 = vsel %vm793, %v1885, 0
        %1893 = vmatprep.subr.bf16.mxu0 0
        %1894 = vmatpush1.bf16.msra.mxu0 %v1891
        %1895 = vmatprep.subr.bf16.mxu0 0
        %1896 = vmatpush1.bf16.msra.mxu0 0
        %1897 = vmatprep.subr.bf16.mxu0 0
        %1898 = vmatpush1.bf16.msra.mxu0 0
        %1899 = vmatprep.subr.bf16.mxu0 0
        %1900 = vmatpush1.bf16.msra.mxu0 0
        %1901 = vmatprep.subr.bf16.mxu0 0
        %1902 = vmatpush1.bf16.msra.mxu0 0
        %1903 = vmatprep.subr.bf16.mxu0 0
        %1904 = vmatpush1.bf16.msra.mxu0 0
        %1905 = vmatprep.subr.bf16.mxu0 0
        %1906 = vmatpush1.bf16.msra.mxu0 0
        %1907 = vmatprep.subr.bf16.mxu0 0
        %1908 = vmatpush1.bf16.msra.mxu0 0
        %1909 = vmatprep.subr.bf16.mxu0 0
        %1910 = vmatpush1.bf16.msra.mxu0 0
        %1911 = vmatprep.subr.bf16.mxu0 0
        %1912 = vmatpush1.bf16.msra.mxu0 0
        %1913 = vmatprep.subr.bf16.mxu0 0
        %1914 = vmatpush1.bf16.msra.mxu0 0
        %1915 = vmatprep.subr.bf16.mxu0 0
        %1916 = vmatpush1.bf16.msra.mxu0 0
        %1917 = vmatprep.subr.bf16.mxu0 0
        %1918 = vmatpush1.bf16.msra.mxu0 0
        %1919 = vmatprep.subr.bf16.mxu0 0
        %1920 = vmatpush1.bf16.msra.mxu0 0
        %1921 = vmatprep.subr.bf16.mxu0 0
        %1922 = vmatpush1.bf16.msra.mxu0 0
        %1923 = vmatprep.subr.bf16.mxu0 0
        %1924 = vmatpush1.bf16.msra.mxu0 0
        %1925 = vmatprep.mubr.bf16.mxu0 0
        %1926 = vmatmul.mubr.bf16.gmra.mrb[0].mxu0 %v1888
        %v1927 = vpop.f32.mrb[0].mxu0
        %v1928 = vadd.f32 0.0, %v1927
        %v1929 = vpop.f32.mrb[0].mxu0
        %v1930 = vpop.f32.mrb[0].mxu0
        %v1931 = vpop.f32.mrb[0].mxu0
        %1932 = vdwg.mxu0
        %v1933 = vmul.f32 %v1875, %v1928
        %v1934 = vadd.f32 %v1854, %v1933
        %v1935 = vadd.f32 %v1623, %v1934
        %v1936 = vlaneseq
        %v1937 = vshrl.u32 %v1936, 7
        %v1938 = vsub.s32 0, %v1937
        %v1939 = vrot.slane %v1622, %v1938
        %v1940 = vadd.f32 %v1935, %v1939
        %1941 = vst [vmem:[#allocation2] sm:$0xff] %v1940
        %v1942 = vld [vmem:[#allocation2] sm:$0xff]
        %v1943 = vld [vmem:[%s7 + $0x1] sm:$0x1]
        %v1944 = vld [vmem:[%s8 + $0x1] sm:$0x1]
        %1945 = vadd.xlane.f32.xlu0 %v1942
        %v1946 = vpop.xlane.xlu0 %1945
        %v1947 = vmul.f32 %v1946, %v607
        %v1948 = vsub.f32 %v1942, %v1947
        %v1949 = vmul.f32 %v1948, %v1948
        %1950 = vadd.xlane.f32.xlu0 %v1949
        %v1951 = vpop.xlane.xlu0 %1950
        %v1952 = vmul.f32 %v1951, %v607
        %v1953 = vadd.f32 %v1952, 1e-05
        %v1954 = vrsqrt.pop %v1953
        %v1955 = vmul.f32 %v1948, %v1954
        %v1956 = vlaneseq
        %v1957 = vshrl.u32 %v1956, 7
        %v1958 = vsub.s32 0, %v1957
        %v1959 = vrot.slane %v1943, %v1958
        %v1960 = vmul.f32 %v1955, %v1959
        %v1961 = vlaneseq
        %v1962 = vshrl.u32 %v1961, 7
        %v1963 = vsub.s32 0, %v1962
        %v1964 = vrot.slane %v1944, %v1963
        %v1965 = vadd.f32 %v1960, %v1964
        %v1966 = vpack.c.bf16 %v1965, %v1965
        %s1967 = scalar_lea.vmem [#allocation3], 256
        %v1968 = vld [vmem:[%s1967] sm:$0xff]
        %v1969 = vld [vmem:[%s1967 + $0x8] sm:$0xff]
        %v1970 = vld [vmem:[%s1967 + $0x10] sm:$0xff]
        %v1971 = vld [vmem:[%s1967 + $0x18] sm:$0xff]
        %v1972 = vld [vmem:[%s1967 + $0x20] sm:$0xff]
        %v1973 = vld [vmem:[%s1967 + $0x28] sm:$0xff]
        %v1974 = vld [vmem:[%s1967 + $0x30] sm:$0xff]
        %v1975 = vld [vmem:[%s1967 + $0x38] sm:$0xff]
        %v1976 = vld [vmem:[%s1967 + $0x40] sm:$0xff]
        %v1977 = vld [vmem:[%s1967 + $0x48] sm:$0xff]
        %v1978 = vld [vmem:[%s1967 + $0x50] sm:$0xff]
        %v1979 = vld [vmem:[%s1967 + $0x58] sm:$0xff]
        %v1980 = vld [vmem:[%s1967 + $0x60] sm:$0xff]
        %v1981 = vld [vmem:[%s1967 + $0x68] sm:$0xff]
        %v1982 = vld [vmem:[%s1967 + $0x70] sm:$0xff]
        %v1983 = vld [vmem:[%s1967 + $0x78] sm:$0xff]
        %v1984 = vld [vmem:[%s1967 + $0x80] sm:$0xff]
        %v1985 = vld [vmem:[%s1967 + $0x88] sm:$0xff]
        %v1986 = vld [vmem:[%s1967 + $0x90] sm:$0xff]
        %v1987 = vld [vmem:[%s1967 + $0x98] sm:$0xff]
        %v1988 = vld [vmem:[%s1967 + $0xa0] sm:$0xff]
        %v1989 = vld [vmem:[%s1967 + $0xa8] sm:$0xff]
        %v1990 = vld [vmem:[%s1967 + $0xb0] sm:$0xff]
        %v1991 = vld [vmem:[%s1967 + $0xb8] sm:$0xff]
        %v1992 = vld [vmem:[%s1967 + $0xc0] sm:$0xff]
        %v1993 = vld [vmem:[%s1967 + $0xc8] sm:$0xff]
        %v1994 = vld [vmem:[%s1967 + $0xd0] sm:$0xff]
        %v1995 = vld [vmem:[%s1967 + $0xd8] sm:$0xff]
        %v1996 = vld [vmem:[%s1967 + $0xe0] sm:$0xff]
        %v1997 = vld [vmem:[%s1967 + $0xe8] sm:$0xff]
        %v1998 = vld [vmem:[%s1967 + $0xf0] sm:$0xff]
        %v1999 = vld [vmem:[%s1967 + $0xf8] sm:$0xff]
        %s2000 = scalar_lea.vmem %s10, 1
        %v2001 = vld [vmem:[%s2000] ss:$2 sm:$0xf]
        %v2003 = vlaneseq
        %v2004 = vshrl.u32 %v2003, 7
        %v2005 = vsub.s32 0, %v2004
        %v2006 = vrot.slane %v2001, %v2005
        %v2007 = vlaneseq
        %v2008 = vshrl.u32 %v2007, 7
        %v2009 = vsub.s32 1, %v2008
        %v2010 = vrot.slane %v2001, %v2009
        %v2011 = vlaneseq
        %v2012 = vshrl.u32 %v2011, 7
        %v2013 = vsub.s32 2, %v2012
        %v2014 = vrot.slane %v2001, %v2013
        %v2015 = vlaneseq
        %v2016 = vshrl.u32 %v2015, 7
        %v2017 = vsub.s32 3, %v2016
        %v2018 = vrot.slane %v2001, %v2017
        %v2055 = vunpack.c.l.b16 %v1968
        %v2056 = vunpack.c.h.b16 %v1968
        %v2057 = vunpack.c.l.b16 %v1969
        %v2058 = vunpack.c.h.b16 %v1969
        %v2059 = vunpack.c.l.b16 %v1970
        %v2060 = vunpack.c.h.b16 %v1970
        %v2061 = vunpack.c.l.b16 %v1971
        %v2062 = vunpack.c.h.b16 %v1971
        %v2063 = vunpack.c.l.b16 %v1972
        %v2064 = vunpack.c.h.b16 %v1972
        %v2065 = vunpack.c.l.b16 %v1973
        %v2066 = vunpack.c.h.b16 %v1973
        %v2067 = vunpack.c.l.b16 %v1974
        %v2068 = vunpack.c.h.b16 %v1974
        %v2069 = vunpack.c.l.b16 %v1975
        %v2070 = vunpack.c.h.b16 %v1975
        %v2071 = vunpack.c.l.b16 %v1976
        %v2072 = vunpack.c.h.b16 %v1976
        %v2073 = vunpack.c.l.b16 %v1977
        %v2074 = vunpack.c.h.b16 %v1977
        %v2075 = vunpack.c.l.b16 %v1978
        %v2076 = vunpack.c.h.b16 %v1978
        %v2077 = vunpack.c.l.b16 %v1979
        %v2078 = vunpack.c.h.b16 %v1979
        %v2079 = vunpack.c.l.b16 %v1980
        %v2080 = vunpack.c.h.b16 %v1980
        %v2081 = vunpack.c.l.b16 %v1981
        %v2082 = vunpack.c.h.b16 %v1981
        %v2083 = vunpack.c.l.b16 %v1982
        %v2084 = vunpack.c.h.b16 %v1982
        %v2085 = vunpack.c.l.b16 %v1983
        %v2086 = vunpack.c.h.b16 %v1983
        %v2087 = vunpack.c.l.b16 %v1984
        %v2088 = vunpack.c.h.b16 %v1984
        %v2089 = vunpack.c.l.b16 %v1985
        %v2090 = vunpack.c.h.b16 %v1985
        %v2091 = vunpack.c.l.b16 %v1986
        %v2092 = vunpack.c.h.b16 %v1986
        %v2093 = vunpack.c.l.b16 %v1987
        %v2094 = vunpack.c.h.b16 %v1987
        %v2095 = vunpack.c.l.b16 %v1988
        %v2096 = vunpack.c.h.b16 %v1988
        %v2097 = vunpack.c.l.b16 %v1989
        %v2098 = vunpack.c.h.b16 %v1989
        %v2099 = vunpack.c.l.b16 %v1990
        %v2100 = vunpack.c.h.b16 %v1990
        %v2101 = vunpack.c.l.b16 %v1991
        %v2102 = vunpack.c.h.b16 %v1991
        %v2103 = vunpack.c.l.b16 %v1992
        %v2104 = vunpack.c.h.b16 %v1992
        %v2105 = vunpack.c.l.b16 %v1993
        %v2106 = vunpack.c.h.b16 %v1993
        %v2107 = vunpack.c.l.b16 %v1994
        %v2108 = vunpack.c.h.b16 %v1994
        %v2109 = vunpack.c.l.b16 %v1995
        %v2110 = vunpack.c.h.b16 %v1995
        %v2111 = vunpack.c.l.b16 %v1996
        %v2112 = vunpack.c.h.b16 %v1996
        %v2113 = vunpack.c.l.b16 %v1997
        %v2114 = vunpack.c.h.b16 %v1997
        %v2115 = vunpack.c.l.b16 %v1998
        %v2116 = vunpack.c.h.b16 %v1998
        %v2117 = vunpack.c.l.b16 %v1999
        %v2118 = vunpack.c.h.b16 %v1999
        %v2119 = vpack.c.b16 %v2059, %v2055
        %v2120 = vpack.c.b16 %v2060, %v2056
        %v2121 = vpack.c.b16 %v2061, %v2057
        %v2122 = vpack.c.b16 %v2062, %v2058
        %v2123 = vpack.c.b16 %v2067, %v2063
        %v2124 = vpack.c.b16 %v2068, %v2064
        %v2125 = vpack.c.b16 %v2069, %v2065
        %v2126 = vpack.c.b16 %v2070, %v2066
        %v2127 = vpack.c.b16 %v2075, %v2071
        %v2128 = vpack.c.b16 %v2076, %v2072
        %v2129 = vpack.c.b16 %v2077, %v2073
        %v2130 = vpack.c.b16 %v2078, %v2074
        %v2131 = vpack.c.b16 %v2083, %v2079
        %v2132 = vpack.c.b16 %v2084, %v2080
        %v2133 = vpack.c.b16 %v2085, %v2081
        %v2134 = vpack.c.b16 %v2086, %v2082
        %v2135 = vpack.c.b16 %v2091, %v2087
        %v2136 = vpack.c.b16 %v2092, %v2088
        %v2137 = vpack.c.b16 %v2093, %v2089
        %v2138 = vpack.c.b16 %v2094, %v2090
        %v2139 = vpack.c.b16 %v2099, %v2095
        %v2140 = vpack.c.b16 %v2100, %v2096
        %v2141 = vpack.c.b16 %v2101, %v2097
        %v2142 = vpack.c.b16 %v2102, %v2098
        %v2143 = vpack.c.b16 %v2107, %v2103
        %v2144 = vpack.c.b16 %v2108, %v2104
        %v2145 = vpack.c.b16 %v2109, %v2105
        %v2146 = vpack.c.b16 %v2110, %v2106
        %v2147 = vpack.c.b16 %v2115, %v2111
        %v2148 = vpack.c.b16 %v2116, %v2112
        %v2149 = vpack.c.b16 %v2117, %v2113
        %v2150 = vpack.c.b16 %v2118, %v2114
        %2183 = vmatprep.subr.bf16.mxu0 %v2120
        %2184 = vmatpush1.bf16.msra.mxu0 %v2119
        %2185 = vmatprep.subr.bf16.mxu0 %v2124
        %2186 = vmatpush1.bf16.msra.mxu0 %v2123
        %2187 = vmatprep.subr.bf16.mxu0 %v2128
        %2188 = vmatpush1.bf16.msra.mxu0 %v2127
        %2189 = vmatprep.subr.bf16.mxu0 %v2132
        %2190 = vmatpush1.bf16.msra.mxu0 %v2131
        %2191 = vmatprep.subr.bf16.mxu0 %v2136
        %2192 = vmatpush1.bf16.msra.mxu0 %v2135
        %2193 = vmatprep.subr.bf16.mxu0 %v2140
        %2194 = vmatpush1.bf16.msra.mxu0 %v2139
        %2195 = vmatprep.subr.bf16.mxu0 %v2144
        %2196 = vmatpush1.bf16.msra.mxu0 %v2143
        %2197 = vmatprep.subr.bf16.mxu0 %v2148
        %2198 = vmatpush1.bf16.msra.mxu0 %v2147
        %2199 = vmatprep.subr.bf16.mxu0 0
        %2200 = vmatpush1.bf16.msra.mxu0 0
        %2201 = vmatprep.subr.bf16.mxu0 0
        %2202 = vmatpush1.bf16.msra.mxu0 0
        %2203 = vmatprep.subr.bf16.mxu0 0
        %2204 = vmatpush1.bf16.msra.mxu0 0
        %2205 = vmatprep.subr.bf16.mxu0 0
        %2206 = vmatpush1.bf16.msra.mxu0 0
        %2207 = vmatprep.subr.bf16.mxu0 0
        %2208 = vmatpush1.bf16.msra.mxu0 0
        %2209 = vmatprep.subr.bf16.mxu0 0
        %2210 = vmatpush1.bf16.msra.mxu0 0
        %2211 = vmatprep.subr.bf16.mxu0 0
        %2212 = vmatpush1.bf16.msra.mxu0 0
        %2213 = vmatprep.subr.bf16.mxu0 0
        %2214 = vmatpush1.bf16.msra.mxu0 0
        %2215 = vmatprep.mubr.bf16.mxu0 0
        %2216 = vmatmul.mubr.bf16.gmra.mrb[0].mxu0 %v1966
        %v2217 = vpop.f32.mrb[0].mxu0
        %v2218 = vadd.f32 %v2006, %v2217
        %v2219 = vpop.f32.mrb[0].mxu0
        %v2220 = vadd.f32 %v2010, %v2219
        %v2221 = vpop.f32.mrb[0].mxu0
        %v2222 = vpop.f32.mrb[0].mxu0
        %2223 = vdwg.mxu0
        %2224 = vmatprep.subr.bf16.mxu0 %v2122
        %2225 = vmatpush1.bf16.msra.mxu0 %v2121
        %2226 = vmatprep.subr.bf16.mxu0 %v2126
        %2227 = vmatpush1.bf16.msra.mxu0 %v2125
        %2228 = vmatprep.subr.bf16.mxu0 %v2130
        %2229 = vmatpush1.bf16.msra.mxu0 %v2129
        %2230 = vmatprep.subr.bf16.mxu0 %v2134
        %2231 = vmatpush1.bf16.msra.mxu0 %v2133
        %2232 = vmatprep.subr.bf16.mxu0 %v2138
        %2233 = vmatpush1.bf16.msra.mxu0 %v2137
        %2234 = vmatprep.subr.bf16.mxu0 %v2142
        %2235 = vmatpush1.bf16.msra.mxu0 %v2141
        %2236 = vmatprep.subr.bf16.mxu0 %v2146
        %2237 = vmatpush1.bf16.msra.mxu0 %v2145
        %2238 = vmatprep.subr.bf16.mxu0 %v2150
        %2239 = vmatpush1.bf16.msra.mxu0 %v2149
        %2240 = vmatprep.subr.bf16.mxu0 0
        %2241 = vmatpush1.bf16.msra.mxu0 0
        %2242 = vmatprep.subr.bf16.mxu0 0
        %2243 = vmatpush1.bf16.msra.mxu0 0
        %2244 = vmatprep.subr.bf16.mxu0 0
        %2245 = vmatpush1.bf16.msra.mxu0 0
        %2246 = vmatprep.subr.bf16.mxu0 0
        %2247 = vmatpush1.bf16.msra.mxu0 0
        %2248 = vmatprep.subr.bf16.mxu0 0
        %2249 = vmatpush1.bf16.msra.mxu0 0
        %2250 = vmatprep.subr.bf16.mxu0 0
        %2251 = vmatpush1.bf16.msra.mxu0 0
        %2252 = vmatprep.subr.bf16.mxu0 0
        %2253 = vmatpush1.bf16.msra.mxu0 0
        %2254 = vmatprep.subr.bf16.mxu0 0
        %2255 = vmatpush1.bf16.msra.mxu0 0
        %2256 = vmatprep.mubr.bf16.mxu0 0
        %2257 = vmatmul.mubr.bf16.gmra.mrb[0].mxu0 %v1966
        %v2258 = vpop.f32.mrb[0].mxu0
        %v2259 = vadd.f32 %v2014, %v2258
        %v2260 = vpop.f32.mrb[0].mxu0
        %v2261 = vadd.f32 %v2018, %v2260
        %v2262 = vpop.f32.mrb[0].mxu0
        %v2263 = vpop.f32.mrb[0].mxu0
        %2264 = vdwg.mxu0
        %v2265 = vmax.f32 %v2218, 0.0
        %v2266 = vmax.f32 %v2220, 0.0
        %v2267 = vmax.f32 %v2259, 0.0
        %v2268 = vmax.f32 %v2261, 0.0
        %v2269 = vpack.c.bf16 %v2265, %v2265
        %v2270 = vpack.c.bf16 %v2266, %v2266
        %v2271 = vpack.c.bf16 %v2267, %v2267
        %v2272 = vpack.c.bf16 %v2268, %v2268
        %s2273 = scalar_lea.vmem [#allocation6], 256
        %v2274 = vld [vmem:[%s2273] sm:$0xf]
        %v2275 = vld [vmem:[%s2273 + $0x4] sm:$0xf]
        %v2276 = vld [vmem:[%s2273 + $0x8] sm:$0xf]
        %v2277 = vld [vmem:[%s2273 + $0xc] sm:$0xf]
        %v2278 = vld [vmem:[%s2273 + $0x10] sm:$0xf]
        %v2279 = vld [vmem:[%s2273 + $0x14] sm:$0xf]
        %v2280 = vld [vmem:[%s2273 + $0x18] sm:$0xf]
        %v2281 = vld [vmem:[%s2273 + $0x1c] sm:$0xf]
        %v2282 = vld [vmem:[%s2273 + $0x20] sm:$0xf]
        %v2283 = vld [vmem:[%s2273 + $0x24] sm:$0xf]
        %v2284 = vld [vmem:[%s2273 + $0x28] sm:$0xf]
        %v2285 = vld [vmem:[%s2273 + $0x2c] sm:$0xf]
        %v2286 = vld [vmem:[%s2273 + $0x30] sm:$0xf]
        %v2287 = vld [vmem:[%s2273 + $0x34] sm:$0xf]
        %v2288 = vld [vmem:[%s2273 + $0x38] sm:$0xf]
        %v2289 = vld [vmem:[%s2273 + $0x3c] sm:$0xf]
        %v2290 = vld [vmem:[%s2273 + $0x40] sm:$0xf]
        %v2291 = vld [vmem:[%s2273 + $0x44] sm:$0xf]
        %v2292 = vld [vmem:[%s2273 + $0x48] sm:$0xf]
        %v2293 = vld [vmem:[%s2273 + $0x4c] sm:$0xf]
        %v2294 = vld [vmem:[%s2273 + $0x50] sm:$0xf]
        %v2295 = vld [vmem:[%s2273 + $0x54] sm:$0xf]
        %v2296 = vld [vmem:[%s2273 + $0x58] sm:$0xf]
        %v2297 = vld [vmem:[%s2273 + $0x5c] sm:$0xf]
        %v2298 = vld [vmem:[%s2273 + $0x60] sm:$0xf]
        %v2299 = vld [vmem:[%s2273 + $0x64] sm:$0xf]
        %v2300 = vld [vmem:[%s2273 + $0x68] sm:$0xf]
        %v2301 = vld [vmem:[%s2273 + $0x6c] sm:$0xf]
        %v2302 = vld [vmem:[%s2273 + $0x70] sm:$0xf]
        %v2303 = vld [vmem:[%s2273 + $0x74] sm:$0xf]
        %v2304 = vld [vmem:[%s2273 + $0x78] sm:$0xf]
        %v2305 = vld [vmem:[%s2273 + $0x7c] sm:$0xf]
        %v2306 = vld [vmem:[%s2273 + $0x80] sm:$0xf]
        %v2307 = vld [vmem:[%s2273 + $0x84] sm:$0xf]
        %v2308 = vld [vmem:[%s2273 + $0x88] sm:$0xf]
        %v2309 = vld [vmem:[%s2273 + $0x8c] sm:$0xf]
        %v2310 = vld [vmem:[%s2273 + $0x90] sm:$0xf]
        %v2311 = vld [vmem:[%s2273 + $0x94] sm:$0xf]
        %v2312 = vld [vmem:[%s2273 + $0x98] sm:$0xf]
        %v2313 = vld [vmem:[%s2273 + $0x9c] sm:$0xf]
        %v2314 = vld [vmem:[%s2273 + $0xa0] sm:$0xf]
        %v2315 = vld [vmem:[%s2273 + $0xa4] sm:$0xf]
        %v2316 = vld [vmem:[%s2273 + $0xa8] sm:$0xf]
        %v2317 = vld [vmem:[%s2273 + $0xac] sm:$0xf]
        %v2318 = vld [vmem:[%s2273 + $0xb0] sm:$0xf]
        %v2319 = vld [vmem:[%s2273 + $0xb4] sm:$0xf]
        %v2320 = vld [vmem:[%s2273 + $0xb8] sm:$0xf]
        %v2321 = vld [vmem:[%s2273 + $0xbc] sm:$0xf]
        %v2322 = vld [vmem:[%s2273 + $0xc0] sm:$0xf]
        %v2323 = vld [vmem:[%s2273 + $0xc4] sm:$0xf]
        %v2324 = vld [vmem:[%s2273 + $0xc8] sm:$0xf]
        %v2325 = vld [vmem:[%s2273 + $0xcc] sm:$0xf]
        %v2326 = vld [vmem:[%s2273 + $0xd0] sm:$0xf]
        %v2327 = vld [vmem:[%s2273 + $0xd4] sm:$0xf]
        %v2328 = vld [vmem:[%s2273 + $0xd8] sm:$0xf]
        %v2329 = vld [vmem:[%s2273 + $0xdc] sm:$0xf]
        %v2330 = vld [vmem:[%s2273 + $0xe0] sm:$0xf]
        %v2331 = vld [vmem:[%s2273 + $0xe4] sm:$0xf]
        %v2332 = vld [vmem:[%s2273 + $0xe8] sm:$0xf]
        %v2333 = vld [vmem:[%s2273 + $0xec] sm:$0xf]
        %v2334 = vld [vmem:[%s2273 + $0xf0] sm:$0xf]
        %v2335 = vld [vmem:[%s2273 + $0xf4] sm:$0xf]
        %v2336 = vld [vmem:[%s2273 + $0xf8] sm:$0xf]
        %v2337 = vld [vmem:[%s2273 + $0xfc] sm:$0xf]
        %v2402 = vunpack.c.l.b16 %v2274
        %v2403 = vunpack.c.l.b16 %v2275
        %v2404 = vunpack.c.l.b16 %v2276
        %v2405 = vunpack.c.l.b16 %v2277
        %v2406 = vunpack.c.l.b16 %v2278
        %v2407 = vunpack.c.l.b16 %v2279
        %v2408 = vunpack.c.l.b16 %v2280
        %v2409 = vunpack.c.l.b16 %v2281
        %v2410 = vunpack.c.l.b16 %v2282
        %v2411 = vunpack.c.l.b16 %v2283
        %v2412 = vunpack.c.l.b16 %v2284
        %v2413 = vunpack.c.l.b16 %v2285
        %v2414 = vunpack.c.l.b16 %v2286
        %v2415 = vunpack.c.l.b16 %v2287
        %v2416 = vunpack.c.l.b16 %v2288
        %v2417 = vunpack.c.l.b16 %v2289
        %v2418 = vunpack.c.l.b16 %v2290
        %v2419 = vunpack.c.l.b16 %v2291
        %v2420 = vunpack.c.l.b16 %v2292
        %v2421 = vunpack.c.l.b16 %v2293
        %v2422 = vunpack.c.l.b16 %v2294
        %v2423 = vunpack.c.l.b16 %v2295
        %v2424 = vunpack.c.l.b16 %v2296
        %v2425 = vunpack.c.l.b16 %v2297
        %v2426 = vunpack.c.l.b16 %v2298
        %v2427 = vunpack.c.l.b16 %v2299
        %v2428 = vunpack.c.l.b16 %v2300
        %v2429 = vunpack.c.l.b16 %v2301
        %v2430 = vunpack.c.l.b16 %v2302
        %v2431 = vunpack.c.l.b16 %v2303
        %v2432 = vunpack.c.l.b16 %v2304
        %v2433 = vunpack.c.l.b16 %v2305
        %v2434 = vunpack.c.l.b16 %v2306
        %v2435 = vunpack.c.l.b16 %v2307
        %v2436 = vunpack.c.l.b16 %v2308
        %v2437 = vunpack.c.l.b16 %v2309
        %v2438 = vunpack.c.l.b16 %v2310
        %v2439 = vunpack.c.l.b16 %v2311
        %v2440 = vunpack.c.l.b16 %v2312
        %v2441 = vunpack.c.l.b16 %v2313
        %v2442 = vunpack.c.l.b16 %v2314
        %v2443 = vunpack.c.l.b16 %v2315
        %v2444 = vunpack.c.l.b16 %v2316
        %v2445 = vunpack.c.l.b16 %v2317
        %v2446 = vunpack.c.l.b16 %v2318
        %v2447 = vunpack.c.l.b16 %v2319
        %v2448 = vunpack.c.l.b16 %v2320
        %v2449 = vunpack.c.l.b16 %v2321
        %v2450 = vunpack.c.l.b16 %v2322
        %v2451 = vunpack.c.l.b16 %v2323
        %v2452 = vunpack.c.l.b16 %v2324
        %v2453 = vunpack.c.l.b16 %v2325
        %v2454 = vunpack.c.l.b16 %v2326
        %v2455 = vunpack.c.l.b16 %v2327
        %v2456 = vunpack.c.l.b16 %v2328
        %v2457 = vunpack.c.l.b16 %v2329
        %v2458 = vunpack.c.l.b16 %v2330
        %v2459 = vunpack.c.l.b16 %v2331
        %v2460 = vunpack.c.l.b16 %v2332
        %v2461 = vunpack.c.l.b16 %v2333
        %v2462 = vunpack.c.l.b16 %v2334
        %v2463 = vunpack.c.l.b16 %v2335
        %v2464 = vunpack.c.l.b16 %v2336
        %v2465 = vunpack.c.l.b16 %v2337
        %v2466 = vpack.c.b16 %v2403, %v2402
        %v2467 = vpack.c.b16 %v2405, %v2404
        %v2468 = vpack.c.b16 %v2407, %v2406
        %v2469 = vpack.c.b16 %v2409, %v2408
        %v2470 = vpack.c.b16 %v2411, %v2410
        %v2471 = vpack.c.b16 %v2413, %v2412
        %v2472 = vpack.c.b16 %v2415, %v2414
        %v2473 = vpack.c.b16 %v2417, %v2416
        %v2474 = vpack.c.b16 %v2419, %v2418
        %v2475 = vpack.c.b16 %v2421, %v2420
        %v2476 = vpack.c.b16 %v2423, %v2422
        %v2477 = vpack.c.b16 %v2425, %v2424
        %v2478 = vpack.c.b16 %v2427, %v2426
        %v2479 = vpack.c.b16 %v2429, %v2428
        %v2480 = vpack.c.b16 %v2431, %v2430
        %v2481 = vpack.c.b16 %v2433, %v2432
        %v2482 = vpack.c.b16 %v2435, %v2434
        %v2483 = vpack.c.b16 %v2437, %v2436
        %v2484 = vpack.c.b16 %v2439, %v2438
        %v2485 = vpack.c.b16 %v2441, %v2440
        %v2486 = vpack.c.b16 %v2443, %v2442
        %v2487 = vpack.c.b16 %v2445, %v2444
        %v2488 = vpack.c.b16 %v2447, %v2446
        %v2489 = vpack.c.b16 %v2449, %v2448
        %v2490 = vpack.c.b16 %v2451, %v2450
        %v2491 = vpack.c.b16 %v2453, %v2452
        %v2492 = vpack.c.b16 %v2455, %v2454
        %v2493 = vpack.c.b16 %v2457, %v2456
        %v2494 = vpack.c.b16 %v2459, %v2458
        %v2495 = vpack.c.b16 %v2461, %v2460
        %v2496 = vpack.c.b16 %v2463, %v2462
        %v2497 = vpack.c.b16 %v2465, %v2464
        %2530 = vmatprep.subr.bf16.mxu0 0
        %2531 = vmatpush1.bf16.msra.mxu0 %v2466
        %2532 = vmatprep.subr.bf16.mxu0 0
        %2533 = vmatpush1.bf16.msra.mxu0 %v2467
        %2534 = vmatprep.subr.bf16.mxu0 0
        %2535 = vmatpush1.bf16.msra.mxu0 %v2468
        %2536 = vmatprep.subr.bf16.mxu0 0
        %2537 = vmatpush1.bf16.msra.mxu0 %v2469
        %2538 = vmatprep.subr.bf16.mxu0 0
        %2539 = vmatpush1.bf16.msra.mxu0 %v2470
        %2540 = vmatprep.subr.bf16.mxu0 0
        %2541 = vmatpush1.bf16.msra.mxu0 %v2471
        %2542 = vmatprep.subr.bf16.mxu0 0
        %2543 = vmatpush1.bf16.msra.mxu0 %v2472
        %2544 = vmatprep.subr.bf16.mxu0 0
        %2545 = vmatpush1.bf16.msra.mxu0 %v2473
        %2546 = vmatprep.subr.bf16.mxu0 0
        %2547 = vmatpush1.bf16.msra.mxu0 %v2474
        %2548 = vmatprep.subr.bf16.mxu0 0
        %2549 = vmatpush1.bf16.msra.mxu0 %v2475
        %2550 = vmatprep.subr.bf16.mxu0 0
        %2551 = vmatpush1.bf16.msra.mxu0 %v2476
        %2552 = vmatprep.subr.bf16.mxu0 0
        %2553 = vmatpush1.bf16.msra.mxu0 %v2477
        %2554 = vmatprep.subr.bf16.mxu0 0
        %2555 = vmatpush1.bf16.msra.mxu0 %v2478
        %2556 = vmatprep.subr.bf16.mxu0 0
        %2557 = vmatpush1.bf16.msra.mxu0 %v2479
        %2558 = vmatprep.subr.bf16.mxu0 0
        %2559 = vmatpush1.bf16.msra.mxu0 %v2480
        %2560 = vmatprep.subr.bf16.mxu0 0
        %2561 = vmatpush1.bf16.msra.mxu0 %v2481
        %2562 = vmatprep.mubr.bf16.mxu0 %v2270
        %2563 = vmatmul.mubr.bf16.gmra.mrb[0].mxu0 %v2269
        %v2564 = vpop.f32.mrb[0].mxu0
        %v2565 = vadd.f32 0.0, %v2564
        %v2566 = vpop.f32.mrb[0].mxu0
        %v2567 = vpop.f32.mrb[0].mxu0
        %v2568 = vpop.f32.mrb[0].mxu0
        %2569 = vdwg.mxu0
        %2570 = vmatprep.subr.bf16.mxu0 0
        %2571 = vmatpush1.bf16.msra.mxu0 %v2482
        %2572 = vmatprep.subr.bf16.mxu0 0
        %2573 = vmatpush1.bf16.msra.mxu0 %v2483
        %2574 = vmatprep.subr.bf16.mxu0 0
        %2575 = vmatpush1.bf16.msra.mxu0 %v2484
        %2576 = vmatprep.subr.bf16.mxu0 0
        %2577 = vmatpush1.bf16.msra.mxu0 %v2485
        %2578 = vmatprep.subr.bf16.mxu0 0
        %2579 = vmatpush1.bf16.msra.mxu0 %v2486
        %2580 = vmatprep.subr.bf16.mxu0 0
        %2581 = vmatpush1.bf16.msra.mxu0 %v2487
        %2582 = vmatprep.subr.bf16.mxu0 0
        %2583 = vmatpush1.bf16.msra.mxu0 %v2488
        %2584 = vmatprep.subr.bf16.mxu0 0
        %2585 = vmatpush1.bf16.msra.mxu0 %v2489
        %2586 = vmatprep.subr.bf16.mxu0 0
        %2587 = vmatpush1.bf16.msra.mxu0 %v2490
        %2588 = vmatprep.subr.bf16.mxu0 0
        %2589 = vmatpush1.bf16.msra.mxu0 %v2491
        %2590 = vmatprep.subr.bf16.mxu0 0
        %2591 = vmatpush1.bf16.msra.mxu0 %v2492
        %2592 = vmatprep.subr.bf16.mxu0 0
        %2593 = vmatpush1.bf16.msra.mxu0 %v2493
        %2594 = vmatprep.subr.bf16.mxu0 0
        %2595 = vmatpush1.bf16.msra.mxu0 %v2494
        %2596 = vmatprep.subr.bf16.mxu0 0
        %2597 = vmatpush1.bf16.msra.mxu0 %v2495
        %2598 = vmatprep.subr.bf16.mxu0 0
        %2599 = vmatpush1.bf16.msra.mxu0 %v2496
        %2600 = vmatprep.subr.bf16.mxu0 0
        %2601 = vmatpush1.bf16.msra.mxu0 %v2497
        %2602 = vmatprep.mubr.bf16.mxu0 %v2272
        %2603 = vmatmul.mubr.bf16.gmra.mrb[0].mxu0 %v2271
        %v2604 = vpop.f32.mrb[0].mxu0
        %v2605 = vadd.f32 %v2565, %v2604
        %v2606 = vpop.f32.mrb[0].mxu0
        %v2607 = vpop.f32.mrb[0].mxu0
        %v2608 = vpop.f32.mrb[0].mxu0
        %2609 = vdwg.mxu0
        %v2610 = vadd.f32 %v1942, %v2605
        %v2611 = vld [vmem:[%s12 + $0x1] sm:$0x1]
        %v2612 = vlaneseq
        %v2613 = vshrl.u32 %v2612, 7
        %v2614 = vsub.s32 0, %v2613
        %v2615 = vrot.slane %v2611, %v2614
        %v2616 = vadd.f32 %v2610, %v2615
        %2617 = vst [vmem:[#allocation2] sm:$0xff] %v2616
        %v2618 = vld [vmem:[#allocation2] sm:$0xff]
        %v2619 = vld [vmem:[%s13] sm:$0x1]
        %v2620 = vld [vmem:[%s14] sm:$0x1]
        %2621 = vadd.xlane.f32.xlu0 %v2618
        %v2622 = vpop.xlane.xlu0 %2621
        %v2623 = vmul.f32 %v2622, %v607
        %v2624 = vsub.f32 %v2618, %v2623
        %v2625 = vmul.f32 %v2624, %v2624
        %2626 = vadd.xlane.f32.xlu0 %v2625
        %v2627 = vpop.xlane.xlu0 %2626
        %v2628 = vmul.f32 %v2627, %v607
        %v2629 = vadd.f32 %v2628, 1e-05
        %v2630 = vrsqrt.pop %v2629
        %v2631 = vmul.f32 %v2624, %v2630
        %v2633 = vlaneseq
        %v2634 = vshrl.u32 %v2633, 7
        %v2635 = vsub.s32 0, %v2634
        %v2636 = vrot.slane %v2619, %v2635
        %v2638 = vmul.f32 %v2631, %v2636
        %v2640 = vlaneseq
        %v2641 = vshrl.u32 %v2640, 7
        %v2642 = vsub.s32 0, %v2641
        %v2643 = vrot.slane %v2620, %v2642
        %v2645 = vadd.f32 %v2638, %v2643
        %v2646 = vpack.c.bf16 %v2645, %v2645
        %v2647 = vld [vmem:[%s15] sm:$0xf]
        %v2648 = vld [vmem:[%s15 + $0x4] sm:$0xf]
        %v2649 = vld [vmem:[%s15 + $0x8] sm:$0xf]
        %v2650 = vld [vmem:[%s15 + $0xc] sm:$0xf]
        %v2651 = vld [vmem:[%s15 + $0x10] sm:$0xf]
        %v2652 = vld [vmem:[%s15 + $0x14] sm:$0xf]
        %v2653 = vld [vmem:[%s15 + $0x18] sm:$0xf]
        %v2654 = vld [vmem:[%s15 + $0x1c] sm:$0xf]
        %v2655 = vld [vmem:[%s15 + $0x20] sm:$0xf]
        %v2656 = vld [vmem:[%s15 + $0x24] sm:$0xf]
        %v2657 = vld [vmem:[%s15 + $0x28] sm:$0xf]
        %v2658 = vld [vmem:[%s15 + $0x2c] sm:$0xf]
        %v2659 = vld [vmem:[%s15 + $0x30] sm:$0xf]
        %v2660 = vld [vmem:[%s15 + $0x34] sm:$0xf]
        %v2661 = vld [vmem:[%s15 + $0x38] sm:$0xf]
        %v2662 = vld [vmem:[%s15 + $0x3c] sm:$0xf]
        %v2663 = vld [vmem:[%s16] sm:$0x1]
        %v2665 = vlaneseq
        %v2666 = vshrl.u32 %v2665, 7
        %v2667 = vsub.s32 0, %v2666
        %v2668 = vrot.slane %v2663, %v2667
        %v2686 = vunpack.c.l.b16 %v2647
        %v2687 = vunpack.c.l.b16 %v2648
        %v2688 = vunpack.c.l.b16 %v2649
        %v2689 = vunpack.c.l.b16 %v2650
        %v2690 = vunpack.c.l.b16 %v2651
        %v2691 = vunpack.c.l.b16 %v2652
        %v2692 = vunpack.c.l.b16 %v2653
        %v2693 = vunpack.c.l.b16 %v2654
        %v2694 = vunpack.c.l.b16 %v2655
        %v2695 = vunpack.c.l.b16 %v2656
        %v2696 = vunpack.c.l.b16 %v2657
        %v2697 = vunpack.c.l.b16 %v2658
        %v2698 = vunpack.c.l.b16 %v2659
        %v2699 = vunpack.c.l.b16 %v2660
        %v2700 = vunpack.c.l.b16 %v2661
        %v2701 = vunpack.c.l.b16 %v2662
        %v2702 = vpack.c.b16 %v2687, %v2686
        %v2703 = vpack.c.b16 %v2689, %v2688
        %v2704 = vpack.c.b16 %v2691, %v2690
        %v2705 = vpack.c.b16 %v2693, %v2692
        %v2706 = vpack.c.b16 %v2695, %v2694
        %v2707 = vpack.c.b16 %v2697, %v2696
        %v2708 = vpack.c.b16 %v2699, %v2698
        %v2709 = vpack.c.b16 %v2701, %v2700
        %2718 = vmatprep.subr.bf16.mxu0 0
        %2719 = vmatpush1.bf16.msra.mxu0 %v2702
        %2720 = vmatprep.subr.bf16.mxu0 0
        %2721 = vmatpush1.bf16.msra.mxu0 %v2703
        %2722 = vmatprep.subr.bf16.mxu0 0
        %2723 = vmatpush1.bf16.msra.mxu0 %v2704
        %2724 = vmatprep.subr.bf16.mxu0 0
        %2725 = vmatpush1.bf16.msra.mxu0 %v2705
        %2726 = vmatprep.subr.bf16.mxu0 0
        %2727 = vmatpush1.bf16.msra.mxu0 %v2706
        %2728 = vmatprep.subr.bf16.mxu0 0
        %2729 = vmatpush1.bf16.msra.mxu0 %v2707
        %2730 = vmatprep.subr.bf16.mxu0 0
        %2731 = vmatpush1.bf16.msra.mxu0 %v2708
        %2732 = vmatprep.subr.bf16.mxu0 0
        %2733 = vmatpush1.bf16.msra.mxu0 %v2709
        %2734 = vmatprep.subr.bf16.mxu0 0
        %2735 = vmatpush1.bf16.msra.mxu0 0
        %2736 = vmatprep.subr.bf16.mxu0 0
        %2737 = vmatpush1.bf16.msra.mxu0 0
        %2738 = vmatprep.subr.bf16.mxu0 0
        %2739 = vmatpush1.bf16.msra.mxu0 0
        %2740 = vmatprep.subr.bf16.mxu0 0
        %2741 = vmatpush1.bf16.msra.mxu0 0
        %2742 = vmatprep.subr.bf16.mxu0 0
        %2743 = vmatpush1.bf16.msra.mxu0 0
        %2744 = vmatprep.subr.bf16.mxu0 0
        %2745 = vmatpush1.bf16.msra.mxu0 0
        %2746 = vmatprep.subr.bf16.mxu0 0
        %2747 = vmatpush1.bf16.msra.mxu0 0
        %2748 = vmatprep.subr.bf16.mxu0 0
        %2749 = vmatpush1.bf16.msra.mxu0 0
        %2750 = vmatprep.mubr.bf16.mxu0 0
        %2751 = vmatmul.mubr.bf16.gmra.mrb[0].mxu0 %v2646
        %v2752 = vpop.f32.mrb[0].mxu0
        %v2753 = vadd.f32 %v2668, %v2752
        %v2754 = vpop.f32.mrb[0].mxu0
        %v2755 = vpop.f32.mrb[0].mxu0
        %v2756 = vpop.f32.mrb[0].mxu0
        %2757 = vdwg.mxu0
        %2758 = vst [vmem:[%s569] sm:$0xff] %v2753
        %s2759 = sand.u32 %s403, 1
        %s2760 = scalar_lea.sflag [#allocation5], %s2759
        %s2761 = sand.u32 %s403, 1
        %s2762 = smul.addr %s2761, 8
        %s2763 = scalar_lea.vmem [#allocation8], %s2762
        // Predicated region
        $region97: #{tpu_custom_call.1} parent=87 // pred_check
          %p2764 = pneg %p413
        $region98: #{tpu_custom_call.1} parent=87 // pred_check_branch
          %2766 = sbr.rel (%p2764) target = $region100
        $region99: #{tpu_custom_call.1} parent=87 // pred_region
          %s2768 = ssub.s32 128, 128
          %2769 = vsyncadd %s2760, %s2768
          %s2770 = smul.addr %s33, 128
          %s2771 = scalar_lea.hbm %s17, %s2770
          %s2773 = sshll.u32 %s2763, 4
          %s2774 = int_to_ptr.vmem [resolvable:$true] %s2773
          %2776 = dma.vmem_to_hbm [thread:$0]  %s2774, 128, %s2771, %s2760
        $region100: #{tpu_custom_call.1} parent=87 // pred_fallthru
          _
      $region88: #{tpu_custom_call.1} parent=5 // pred_fallthru
        _
      %p2777 = scmp.le.s32.totalorder 2, %s28
      // Predicated region
      $region101: #{tpu_custom_call.1} parent=5 // pred_check
        %p2778 = pneg %p2777
      $region102: #{tpu_custom_call.1} parent=5 // pred_check_branch
        %2780 = sbr.rel (%p2778) target = $region104
      $region103: #{tpu_custom_call.1} parent=5 // pred_region
        %s2781 = ssub.s32 %s28, 2
        // Predicated region
        $region105: #{tpu_custom_call.1} parent=103 // pred_check
          %p2782 = pneg %p419
        $region106: #{tpu_custom_call.1} parent=103 // pred_check_branch
          %2784 = sbr.rel (%p2782) target = $region108
        $region107: #{tpu_custom_call.1} parent=103 // pred_region
          %s2785 = sand.u32 %s404, 1
          %s2786 = scalar_lea.sflag [#allocation5], %s2785
          %s2787 = sand.u32 %s404, 1
          %s2788 = smul.addr %s2787, 8
          %s2789 = scalar_lea.vmem [#allocation8], %s2788
          %2790 = dma.done %s2786, 128
        $region108: #{tpu_custom_call.1} parent=103 // pred_fallthru
          _
      $region104: #{tpu_custom_call.1} parent=5 // pred_fallthru
        _
    $region6: #{tpu_custom_call.1} parent=1 // loop_footer
      %s32 = sadd.s32 1, %s28
    $region7: #{tpu_custom_call.1} parent=1 // loop_footer_branch
      %27 = sbr.rel target = $region3
    $region8: #{tpu_custom_call.1} parent=1 // loop_exit
      _
    %2791 = vsyncpa [#allocation4], 1
    %s2792 = scalar_lea.sflag [#allocation4], 1
    %2793 = vsyncpa %s2792, 1
    %2794 = vsyncpa [#allocation7], 1
    %2795 = vsyncpa [#allocation5], 1
    %s2796 = scalar_lea.sflag [#allocation5], 1
    %2797 = vsyncpa %s2796, 1

</llo_original>
